<compile_context>
chip_gen: v6e
topology: v6e:2x2x1
jax: 0.10.0
libtpu: 0.0.40
codegen_flags: <defaults>
</compile_context>

<pallas_src>
import math
import functools

import numpy as np
import jax
import jax.numpy as jnp
from jax.experimental import pallas as pl
from jax.experimental.pallas import tpu as pltpu

SQRT2 = math.sqrt(2.0)


# ---------------------------------------------------------------------------
# small helpers
# ---------------------------------------------------------------------------
def _round_up(x, m):
    return (x + m - 1) // m * m


def _vmem_limit_bytes():
    """Generation-aware VMEM budget (v5e/v6e: 128 MiB -> 80 MiB, v7x: 64 MiB
    -> 40 MiB); conservative fallback if the query is unavailable."""
    try:
        cap = int(pltpu.get_tpu_info().vmem_capacity_bytes)
    except Exception:
        cap = 64 * 1024 * 1024
    return int(max(32 * 1024 * 1024, min(cap * 5 // 8, 100 * 1024 * 1024)))


def _pick_tile(dim, cap, quantum=128):
    """Largest multiple of `quantum` that divides `dim` and is <= cap."""
    best = quantum
    t = quantum
    lim = min(cap, dim)
    while t <= lim:
        if dim % t == 0:
            best = t
        t += quantum
    return best


def _pick_rows(out_rows, in_row_bytes, acc_row_bytes, budget):
    """Largest divisor of out_rows whose input strip / accumulator fit budget."""
    per_row = max(1, max(in_row_bytes, acc_row_bytes))
    max_rows = max(1, min(out_rows, int(budget // per_row)))
    for t in range(max_rows, 0, -1):
        if out_rows % t == 0:
            return t
    return 1


# ---------------------------------------------------------------------------
# Pallas kernels
# ---------------------------------------------------------------------------
def _conv_act_kernel(x_ref, w_ref, b_ref, o_ref, acc_ref, *, th, wo, kh, kw):
    """Direct kh x kw stride-1 conv (in-kernel tap accumulation, no im2col)
    + bias + leaky_relu * sqrt(2) epilogue.

    x_ref  : (1, th+kh-1, wo+kw-1, tk)  bf16 halo'd row strip
    w_ref  : (kh*kw, tk, tco)           bf16 per-tap weight panels
    b_ref  : (1, tco)                   f32
    o_ref  : (1, th*wo, tco)            bf16
    acc_ref: (th*wo, tco)               f32 scratch (resident over K axis)
    """
    k = pl.program_id(2)

    @pl.when(k == 0)
    def _():
        acc_ref[...] = jnp.zeros_like(acc_ref)

    x = x_ref[0]                                # (th+kh-1, wo+kw-1, tk)
    tk = x.shape[-1]
    part = jnp.zeros(acc_ref.shape, jnp.float32)
    for t in range(kh * kw):
        di, dj = divmod(t, kw)
        xt = x[di:di + th, dj:dj + wo, :].reshape(th * wo, tk)
        part = part + jnp.dot(xt, w_ref[t], preferred_element_type=jnp.float32)
    acc_ref[...] += part

    @pl.when(k == pl.num_programs(2) - 1)
    def _():
        r = acc_ref[...] + b_ref[...]
        o_ref[0] = (jnp.where(r >= 0.0, r, 0.2 * r) * SQRT2).astype(o_ref.dtype)


def _fused_down_kernel(z2_ref, zs_ref, w2_ref, ws_ref, b_ref, o_ref, skip_ref,
                       *, th, wo):
    """Fused downsampling stage on space-to-depth inputs:
       main: 3x3 stride-1 conv (== blur o 3x3 stride-2) accumulated in o_ref
       skip: 2x2 stride-1 conv (== blur o 1x1 stride-2, pre-scaled by 1/sqrt2)
       epilogue: out = leaky(main + b) + skip   (all sqrt2 factors folded).
    """
    k = pl.program_id(2)

    @pl.when(k == 0)
    def _():
        o_ref[...] = jnp.zeros_like(o_ref)
        skip_ref[...] = jnp.zeros_like(skip_ref)

    z2 = z2_ref[0]                              # (th+2, wo+2, tk)
    zs = zs_ref[0]                              # (th+1, wo+1, tk)
    tk = z2.shape[-1]
    tco = o_ref.shape[-1]

    main = jnp.zeros((th * wo, tco), jnp.float32)
    for t in range(9):
        di, dj = divmod(t, 3)
        xt = z2[di:di + th, dj:dj + wo, :].reshape(th * wo, tk)
        main = main + jnp.dot(xt, w2_ref[t], preferred_element_type=jnp.float32)
    o_ref[0] += main

    skp = jnp.zeros((th * wo, tco), jnp.float32)
    for t in range(4):
        di, dj = divmod(t, 2)
        xt = zs[di:di + th, dj:dj + wo, :].reshape(th * wo, tk)
        skp = skp + jnp.dot(xt, ws_ref[t], preferred_element_type=jnp.float32)
    skip_ref[...] += skp

    @pl.when(k == pl.num_programs(2) - 1)
    def _():
        r = o_ref[0] + b_ref[...]
        o_ref[0] = jnp.where(r >= 0.0, r, 0.2 * r) + skip_ref[...]


# ---------------------------------------------------------------------------
# Pallas wrappers
# ---------------------------------------------------------------------------
def conv3x3_act(x_strips, w_taps, bias):
    """Direct 3x3 stride-1 conv + FusedLeakyReLU over halo'd row strips.

    x_strips: (NS, th+2, wo+2, CI) bf16   w_taps: (9, CI, CO) bf16
    bias    : (1, CO) f32                 -> (NS, th*wo, CO) bf16
    """
    NS, HS, WP, CI = x_strips.shape
    th, wo = HS - 2, WP - 2
    ntaps, _, CO = w_taps.shape
    vmem = _vmem_limit_bytes()
    tk = _pick_tile(CI, 512)
    tco = _pick_tile(CO, 256)
    grid = (NS, CO // tco, CI // tk)
    kern = functools.partial(_conv_act_kernel, th=th, wo=wo, kh=3, kw=3)
    return pl.pallas_call(
        kern,
        out_shape=jax.ShapeDtypeStruct((NS, th * wo, CO), jnp.bfloat16),
        grid_spec=pltpu.PrefetchScalarGridSpec(
            num_scalar_prefetch=0,
            grid=grid,
            in_specs=[
                pl.BlockSpec((1, HS, WP, tk), lambda ns, j, k: (ns, 0, 0, k)),
                pl.BlockSpec((ntaps, tk, tco), lambda ns, j, k: (0, k, j)),
                pl.BlockSpec((1, tco), lambda ns, j, k: (0, j)),
            ],
            out_specs=pl.BlockSpec((1, th * wo, tco),
                                   lambda ns, j, k: (ns, 0, j)),
            scratch_shapes=[pltpu.VMEM((th * wo, tco), jnp.float32)],
        ),
        compiler_params=pltpu.CompilerParams(
            dimension_semantics=("parallel", "parallel", "arbitrary"),
            vmem_limit_bytes=vmem),
    )(x_strips, w_taps, bias)


def fused_conv2_skip(z2_strips, zs_strips, w2_taps, ws_taps, bias):
    """Fused conv2 + skip + residual over space-to-depth row strips.

    z2_strips: (NS, th+2, wo+2, CI) bf16   zs_strips: (NS, th+1, wo+1, CI) bf16
    w2_taps  : (9, CI, CO) bf16            ws_taps  : (4, CI, CO) bf16
    bias     : (1, CO) f32                 -> (NS, th*wo, CO) f32
    """
    NS, H2, W2c, CI = z2_strips.shape
    th, wo = H2 - 2, W2c - 2
    NS2, Hs, Wsc, CIs = zs_strips.shape
    assert (NS2, Hs, Wsc, CIs) == (NS, th + 1, wo + 1, CI)
    CO = w2_taps.shape[-1]
    vmem = _vmem_limit_bytes()
    tk = _pick_tile(CI, 512)
    tco = _pick_tile(CO, 256)
    grid = (NS, CO // tco, CI // tk)
    kern = functools.partial(_fused_down_kernel, th=th, wo=wo)
    return pl.pallas_call(
        kern,
        out_shape=jax.ShapeDtypeStruct((NS, th * wo, CO), jnp.float32),
        grid_spec=pltpu.PrefetchScalarGridSpec(
            num_scalar_prefetch=0,
            grid=grid,
            in_specs=[
                pl.BlockSpec((1, H2, W2c, tk), lambda ns, j, k: (ns, 0, 0, k)),
                pl.BlockSpec((1, Hs, Wsc, tk), lambda ns, j, k: (ns, 0, 0, k)),
                pl.BlockSpec((9, tk, tco), lambda ns, j, k: (0, k, j)),
                pl.BlockSpec((4, tk, tco), lambda ns, j, k: (0, k, j)),
                pl.BlockSpec((1, tco), lambda ns, j, k: (0, j)),
            ],
            out_specs=pl.BlockSpec((1, th * wo, tco),
                                   lambda ns, j, k: (ns, 0, j)),
            scratch_shapes=[pltpu.VMEM((th * wo, tco), jnp.float32)],
        ),
        compiler_params=pltpu.CompilerParams(
            dimension_semantics=("parallel", "parallel", "arbitrary"),
            vmem_limit_bytes=vmem),
    )(z2_strips, zs_strips, w2_taps, ws_taps, bias)


# ---------------------------------------------------------------------------
# JAX glue: weight prep (blur pre-composition + space-to-depth), layout prep
# ---------------------------------------------------------------------------
def _blur2d():
    k1 = np.array([1.0, 3.0, 3.0, 1.0], np.float64)
    k = np.outer(k1, k1)
    k /= k.sum()
    return k.astype(np.float32)                              # (4, 4)


def _prep_conv1_weight(w_oikk, scale, cin_p, cout_p):
    """torch [O,I,3,3]*scale -> (9, cin_p, cout_p) bf16 per-tap panels."""
    O, I, KH, KW = w_oikk.shape
    w = jnp.asarray(w_oikk, jnp.float32) * scale
    w = jnp.transpose(w, (2, 3, 1, 0))                       # HWIO
    w = jnp.pad(w, ((0, 0), (0, 0), (0, cin_p - I), (0, cout_p - O)))
    return w.reshape(KH * KW, cin_p, cout_p).astype(jnp.bfloat16)


def _compose_blur_conv(w_hwio, blur):
    """Weight of blur (4x4, stride 1) followed by cross-correlation with w:
    Weff[u, v] = sum_{a+p=u, b+q=v} w[a, b] * blur[p, q]  (size KH+3, KW+3)."""
    KH, KW = w_hwio.shape[:2]
    out = jnp.zeros((KH + 3, KW + 3) + w_hwio.shape[2:], jnp.float32)
    for a in range(KH):
        for b in range(KW):
            for p in range(4):
                for q in range(4):
                    out = out.at[a + p, b + q].add(w_hwio[a, b] * float(blur[p, q]))
    return out


def _s2d_weight(w_eff, cin_p, cout_p):
    """Even-sized stride-2 weight (KH,KW,I,O) -> space-to-depth stride-1 form
    (KH/2*KW/2, 4*cin_p, cout_p), channel order (row-parity, col-parity, c)."""
    KH, KW, I, O = w_eff.shape
    w = jnp.pad(w_eff, ((0, 0), (0, 0), (0, cin_p - I), (0, cout_p - O)))
    w = w.reshape(KH // 2, 2, KW // 2, 2, cin_p, cout_p)
    w = jnp.transpose(w, (0, 2, 1, 3, 4, 5))
    return w.reshape((KH // 2) * (KW // 2), 4 * cin_p, cout_p).astype(jnp.bfloat16)


def _prep_bias(b, cout_p):
    b = jnp.asarray(b, jnp.float32)
    return jnp.pad(b, (0, cout_p - b.shape[0])).reshape(1, cout_p)


def _space_to_depth(z):
    """(N, Hp, Wp, C) -> (N, Hp/2, Wp/2, 4C), channel order (rh, rw, c)."""
    N, Hp, Wp, C = z.shape
    z = z.reshape(N, Hp // 2, 2, Wp // 2, 2, C)
    z = jnp.transpose(z, (0, 1, 3, 2, 4, 5))
    return z.reshape(N, Hp // 2, Wp // 2, 4 * C)


def _row_strips(z, th, halo):
    """(N, S*th+halo, Wp, C) -> (N*S, th+halo, Wp, C) overlapping row strips."""
    N, Hp, Wp, C = z.shape
    S = (Hp - halo) // th
    assert S * th + halo == Hp, (Hp, th, halo)
    strips = jnp.stack([z[:, s * th: s * th + th + halo] for s in range(S)],
                       axis=1)
    return strips.reshape(N * S, th + halo, Wp, C)


def resblock_forward(x_nchw, params):
    x = jnp.transpose(x_nchw, (0, 2, 3, 1)).astype(jnp.float32)   # NCHW->NHWC
    N, H, W, Cin = x.shape
    assert H % 2 == 0 and W % 2 == 0, "StyleGAN2 discriminator uses even H/W"
    Cout = params["w2"].shape[0]
    Cin_p = _round_up(Cin, 128)
    Cout_p = _round_up(Cout, 128)
    blur = _blur2d()
    budget = _vmem_limit_bytes() // 12

    # one-time layout prep: channel pad to 128, bf16, spatial pad 1
    xp = jnp.pad(x, ((0, 0), (0, 0), (0, 0), (0, Cin_p - Cin))).astype(jnp.bfloat16)
    xp1 = jnp.pad(xp, ((0, 0), (1, 1), (1, 1), (0, 0)))            # used twice

    # --- conv1: 3x3 s1 p1 + FusedLeakyReLU (direct conv, halo'd row strips) --
    w1 = _prep_conv1_weight(params["w1"], params["s1"], Cin_p, Cin_p)
    b1 = _prep_bias(params["b1"], Cin_p)
    th1 = _pick_rows(H, (W + 2) * min(Cin_p, 512) * 2,
                     W * min(Cin_p, 256) * 4, budget)
    x1s = _row_strips(xp1, th1, 2)                    # (N*S1, th1+2, W+2, Cin_p)
    S1 = x1s.shape[0] // N
    h = conv3x3_act(x1s, w1, b1)                      # (N*S1, th1*W, Cin_p) bf16
    h = h.reshape(N, S1, th1, W, Cin_p).reshape(N, H, W, Cin_p)

    # --- downsampling stage: blur folded into weights, stride-2 via s2d ------
    hpad = jnp.pad(h, ((0, 0), (2, 2), (2, 2), (0, 0)))
    z2 = _space_to_depth(hpad)                        # (N, H/2+2, W/2+2, 4Cin_p)
    zs = _space_to_depth(xp1)                         # (N, H/2+1, W/2+1, 4Cin_p)

    Ho, Wo = H // 2, W // 2
    th2 = _pick_rows(Ho, (Wo + 2) * min(4 * Cin_p, 512) * 2,
                     Wo * min(Cout_p, 256) * 4, budget)
    z2s = _row_strips(z2, th2, 2)                     # (N*S2, th2+2, Wo+2, 4Cin_p)
    zss = _row_strips(zs, th2, 1)                     # (N*S2, th2+1, Wo+1, 4Cin_p)
    S2 = z2s.shape[0] // N

    w2_hwio = jnp.transpose(jnp.asarray(params["w2"], jnp.float32) * params["s2"],
                            (2, 3, 1, 0))             # (3,3,Cin,Cout)
    w2_eff = _compose_blur_conv(w2_hwio, blur)        # (6,6,Cin,Cout)
    w2t = _s2d_weight(w2_eff, Cin_p, Cout_p)          # (9, 4Cin_p, Cout_p)

    ws_io = jnp.transpose(jnp.asarray(params["ws"], jnp.float32) * params["ss"],
                          (2, 3, 1, 0))[0, 0]         # (Cin, Cout)
    ws_eff = (jnp.asarray(blur)[:, :, None, None] * ws_io[None, None]) * (1.0 / SQRT2)
    wst = _s2d_weight(ws_eff, Cin_p, Cout_p)          # (4, 4Cin_p, Cout_p)

    b2 = _prep_bias(params["b2"], Cout_p)

    y = fused_conv2_skip(z2s, zss, w2t, wst, b2)      # (N*S2, th2*Wo, Cout_p) f32
    y = y.reshape(N, S2, th2, Wo, Cout_p).reshape(N, Ho, Wo, Cout_p)[..., :Cout]
    return jnp.transpose(y, (0, 3, 1, 2))             # back to NCHW


# ---------------------------------------------------------------------------
# Pure-JAX reference (lax.conv) for correctness checking
# ---------------------------------------------------------------------------
def ref_resblock(x_nchw, params):
    x = jnp.transpose(x_nchw, (0, 2, 3, 1)).astype(jnp.float32)

    def conv(xx, w_oikk, scale, stride, padding):
        w = jnp.transpose(w_oikk, (2, 3, 1, 0)) * scale          # HWIO
        return jax.lax.conv_general_dilated(
            xx, w, (stride, stride), [(padding, padding), (padding, padding)],
            dimension_numbers=("NHWC", "HWIO", "NHWC"))

    def blur(xx, pad):
        k1 = np.array([1.0, 3.0, 3.0, 1.0], np.float32)
        k = np.outer(k1, k1)
        k /= k.sum()
        C = xx.shape[-1]
        w = jnp.tile(jnp.asarray(k)[:, :, None, None], (1, 1, 1, C))
        return jax.lax.conv_general_dilated(
            xx, w, (1, 1), [(pad[0], pad[1]), (pad[0], pad[1])],
            dimension_numbers=("NHWC", "HWIO", "NHWC"), feature_group_count=C)

    def flrelu(xx, b):
        xx = xx + b.reshape(1, 1, 1, -1)
        return jnp.where(xx >= 0, xx, 0.2 * xx) * SQRT2

    h = flrelu(conv(x, params["w1"], params["s1"], 1, 1), params["b1"])
    h = flrelu(conv(blur(h, (2, 2)), params["w2"], params["s2"], 2, 0), params["b2"])
    s = conv(blur(x, (1, 1)), params["ws"], params["ss"], 2, 0)
    y = (h + s) / SQRT2
    return jnp.transpose(y, (0, 3, 1, 2))


# ---------------------------------------------------------------------------
if __name__ == "__main__":
    N, Cin, Cout, H, W = 2, 4, 8, 16, 16

    key = jax.random.PRNGKey(0)
    kx, k1, k2, k3 = jax.random.split(key, 4)
    x = jax.random.normal(kx, (N, Cin, H, W), jnp.float32)   # NCHW, like PyTorch

    params = {
        # EqualConv2d weights: torch.randn(out, in, k, k); biases init to zeros
        "w1": jax.random.normal(k1, (Cin, Cin, 3, 3), jnp.float32),
        "b1": jnp.zeros((Cin,), jnp.float32),        # FusedLeakyReLU bias (conv1)
        "s1": 1.0 / math.sqrt(Cin * 3 * 3),
        "w2": jax.random.normal(k2, (Cout, Cin, 3, 3), jnp.float32),
        "b2": jnp.zeros((Cout,), jnp.float32),       # FusedLeakyReLU bias (conv2)
        "s2": 1.0 / math.sqrt(Cin * 3 * 3),
        "ws": jax.random.normal(k3, (Cout, Cin, 1, 1), jnp.float32),
        "ss": 1.0 / math.sqrt(Cin * 1 * 1),
    }

    y = jax.block_until_ready(resblock_forward(x, params))
    y_ref = jax.block_until_ready(ref_resblock(x, params))
    assert y.shape == (N, Cout, H // 2, W // 2)
    # bf16 matmul operands (f32 accumulation) -> looser tolerance than pure f32
    np.testing.assert_allclose(np.asarray(y), np.asarray(y_ref), rtol=5e-2, atol=5e-2)
    print("KERNEL_OK")
</pallas_src>

<mosaic_0001>
module attributes {stable_mosaic.version = 11 : i64} {
  func.func @_conv_act_kernel(%arg0: i32, %arg1: i32, %arg2: i32, %arg3: memref<1x18x18x128xbf16, #tpu.memory_space<vmem>>, %arg4: memref<9x128x128xbf16, #tpu.memory_space<vmem>>, %arg5: memref<1x128xf32, #tpu.memory_space<vmem>>, %arg6: memref<1x256x128xbf16, #tpu.memory_space<vmem>>, %arg7: memref<256x128xf32, #tpu.memory_space<vmem>>) attributes {dimension_semantics = [#tpu.dimension_semantics<parallel>, #tpu.dimension_semantics<parallel>, #tpu.dimension_semantics<arbitrary>], iteration_bounds = array<i64: 2, 1, 1>, scalar_prefetch = 0 : i64, scratch_operands = 1 : i64, tpu.core_type = #tpu.core_type<tc>, window_params = [{transform_indices = @transform_0, window_bounds = array<i64: 1, 18, 18, 128>}, {transform_indices = @transform_1, window_bounds = array<i64: 9, 128, 128>}, {transform_indices = @transform_2, window_bounds = array<i64: 1, 128>}, {transform_indices = @transform_3, window_bounds = array<i64: 1, 256, 128>}]} {
    %c0_i32 = arith.constant 0 : i32
    %0 = arith.cmpi eq, %arg2, %c0_i32 : i32
    %1 = arith.extui %0 : i1 to i32
    %c0_i32_0 = arith.constant 0 : i32
    %2 = arith.cmpi ne, %1, %c0_i32_0 : i32
    scf.if %2 {
      %cst_38 = arith.constant 0.000000e+00 : f32
      %66 = vector.broadcast %cst_38 : f32 to vector<256x128xf32>
      %c0_39 = arith.constant 0 : index
      %c0_40 = arith.constant 0 : index
      %67 = vector.load %arg7[%c0_39, %c0_40] : memref<256x128xf32, #tpu.memory_space<vmem>>, vector<256x128xf32>
      tpu.vector_store %arg7[%c0_39, %c0_40], %66 {strides = array<i32>} : memref<256x128xf32, #tpu.memory_space<vmem>>, vector<256x128xf32>,
    } else {
    }
    %c0 = arith.constant 0 : index
    %c0_1 = arith.constant 0 : index
    %c0_2 = arith.constant 0 : index
    %c0_3 = arith.constant 0 : index
    %3 = vector.load %arg3[%c0, %c0_1, %c0_2, %c0_3] : memref<1x18x18x128xbf16, #tpu.memory_space<vmem>>, vector<1x18x18x128xbf16>
    %4 = vector.shape_cast %3 : vector<1x18x18x128xbf16> to vector<18x18x128xbf16>
    %cst = arith.constant 0.000000e+00 : f32
    %5 = vector.broadcast %cst : f32 to vector<256x128xf32>
    %6 = vector.extract_strided_slice %4 {offsets = [0, 0, 0], sizes = [16, 16, 128], strides = [1, 1, 1]} : vector<18x18x128xbf16> to vector<16x16x128xbf16>
    %7 = vector.shape_cast %6 : vector<16x16x128xbf16> to vector<256x128xbf16>
    %c0_4 = arith.constant 0 : index
    %c0_5 = arith.constant 0 : index
    %c0_6 = arith.constant 0 : index
    %8 = vector.load %arg4[%c0_4, %c0_5, %c0_6] : memref<9x128x128xbf16, #tpu.memory_space<vmem>>, vector<1x128x128xbf16>
    %9 = vector.shape_cast %8 : vector<1x128x128xbf16> to vector<128x128xbf16>
    %cst_7 = arith.constant dense<0.000000e+00> : vector<256x128xf32>
    %10 = tpu.matmul %7, %9, %cst_7 {dimension_numbers = #tpu.dot_dimension_numbers<[1], [0], [0], [1], [0, 0, 1, 1], [], []>} : vector<256x128xbf16>, vector<128x128xbf16>, vector<256x128xf32> -> vector<256x128xf32>
    %11 = arith.addf %5, %10 : vector<256x128xf32>
    %12 = vector.extract_strided_slice %4 {offsets = [0, 1, 0], sizes = [16, 16, 128], strides = [1, 1, 1]} : vector<18x18x128xbf16> to vector<16x16x128xbf16>
    %13 = vector.shape_cast %12 : vector<16x16x128xbf16> to vector<256x128xbf16>
    %c1 = arith.constant 1 : index
    %c0_8 = arith.constant 0 : index
    %c0_9 = arith.constant 0 : index
    %14 = vector.load %arg4[%c1, %c0_8, %c0_9] : memref<9x128x128xbf16, #tpu.memory_space<vmem>>, vector<1x128x128xbf16>
    %15 = vector.shape_cast %14 : vector<1x128x128xbf16> to vector<128x128xbf16>
    %cst_10 = arith.constant dense<0.000000e+00> : vector<256x128xf32>
    %16 = tpu.matmul %13, %15, %cst_10 {dimension_numbers = #tpu.dot_dimension_numbers<[1], [0], [0], [1], [0, 0, 1, 1], [], []>} : vector<256x128xbf16>, vector<128x128xbf16>, vector<256x128xf32> -> vector<256x128xf32>
    %17 = arith.addf %11, %16 : vector<256x128xf32>
    %18 = vector.extract_strided_slice %4 {offsets = [0, 2, 0], sizes = [16, 16, 128], strides = [1, 1, 1]} : vector<18x18x128xbf16> to vector<16x16x128xbf16>
    %19 = vector.shape_cast %18 : vector<16x16x128xbf16> to vector<256x128xbf16>
    %c2 = arith.constant 2 : index
    %c0_11 = arith.constant 0 : index
    %c0_12 = arith.constant 0 : index
    %20 = vector.load %arg4[%c2, %c0_11, %c0_12] : memref<9x128x128xbf16, #tpu.memory_space<vmem>>, vector<1x128x128xbf16>
    %21 = vector.shape_cast %20 : vector<1x128x128xbf16> to vector<128x128xbf16>
    %cst_13 = arith.constant dense<0.000000e+00> : vector<256x128xf32>
    %22 = tpu.matmul %19, %21, %cst_13 {dimension_numbers = #tpu.dot_dimension_numbers<[1], [0], [0], [1], [0, 0, 1, 1], [], []>} : vector<256x128xbf16>, vector<128x128xbf16>, vector<256x128xf32> -> vector<256x128xf32>
    %23 = arith.addf %17, %22 : vector<256x128xf32>
    %24 = vector.extract_strided_slice %4 {offsets = [1, 0, 0], sizes = [16, 16, 128], strides = [1, 1, 1]} : vector<18x18x128xbf16> to vector<16x16x128xbf16>
    %25 = vector.shape_cast %24 : vector<16x16x128xbf16> to vector<256x128xbf16>
    %c3 = arith.constant 3 : index
    %c0_14 = arith.constant 0 : index
    %c0_15 = arith.constant 0 : index
    %26 = vector.load %arg4[%c3, %c0_14, %c0_15] : memref<9x128x128xbf16, #tpu.memory_space<vmem>>, vector<1x128x128xbf16>
    %27 = vector.shape_cast %26 : vector<1x128x128xbf16> to vector<128x128xbf16>
    %cst_16 = arith.constant dense<0.000000e+00> : vector<256x128xf32>
    %28 = tpu.matmul %25, %27, %cst_16 {dimension_numbers = #tpu.dot_dimension_numbers<[1], [0], [0], [1], [0, 0, 1, 1], [], []>} : vector<256x128xbf16>, vector<128x128xbf16>, vector<256x128xf32> -> vector<256x128xf32>
    %29 = arith.addf %23, %28 : vector<256x128xf32>
    %30 = vector.extract_strided_slice %4 {offsets = [1, 1, 0], sizes = [16, 16, 128], strides = [1, 1, 1]} : vector<18x18x128xbf16> to vector<16x16x128xbf16>
    %31 = vector.shape_cast %30 : vector<16x16x128xbf16> to vector<256x128xbf16>
    %c4 = arith.constant 4 : index
    %c0_17 = arith.constant 0 : index
    %c0_18 = arith.constant 0 : index
    %32 = vector.load %arg4[%c4, %c0_17, %c0_18] : memref<9x128x128xbf16, #tpu.memory_space<vmem>>, vector<1x128x128xbf16>
    %33 = vector.shape_cast %32 : vector<1x128x128xbf16> to vector<128x128xbf16>
    %cst_19 = arith.constant dense<0.000000e+00> : vector<256x128xf32>
    %34 = tpu.matmul %31, %33, %cst_19 {dimension_numbers = #tpu.dot_dimension_numbers<[1], [0], [0], [1], [0, 0, 1, 1], [], []>} : vector<256x128xbf16>, vector<128x128xbf16>, vector<256x128xf32> -> vector<256x128xf32>
    %35 = arith.addf %29, %34 : vector<256x128xf32>
    %36 = vector.extract_strided_slice %4 {offsets = [1, 2, 0], sizes = [16, 16, 128], strides = [1, 1, 1]} : vector<18x18x128xbf16> to vector<16x16x128xbf16>
    %37 = vector.shape_cast %36 : vector<16x16x128xbf16> to vector<256x128xbf16>
    %c5 = arith.constant 5 : index
    %c0_20 = arith.constant 0 : index
    %c0_21 = arith.constant 0 : index
    %38 = vector.load %arg4[%c5, %c0_20, %c0_21] : memref<9x128x128xbf16, #tpu.memory_space<vmem>>, vector<1x128x128xbf16>
    %39 = vector.shape_cast %38 : vector<1x128x128xbf16> to vector<128x128xbf16>
    %cst_22 = arith.constant dense<0.000000e+00> : vector<256x128xf32>
    %40 = tpu.matmul %37, %39, %cst_22 {dimension_numbers = #tpu.dot_dimension_numbers<[1], [0], [0], [1], [0, 0, 1, 1], [], []>} : vector<256x128xbf16>, vector<128x128xbf16>, vector<256x128xf32> -> vector<256x128xf32>
    %41 = arith.addf %35, %40 : vector<256x128xf32>
    %42 = vector.extract_strided_slice %4 {offsets = [2, 0, 0], sizes = [16, 16, 128], strides = [1, 1, 1]} : vector<18x18x128xbf16> to vector<16x16x128xbf16>
    %43 = vector.shape_cast %42 : vector<16x16x128xbf16> to vector<256x128xbf16>
    %c6 = arith.constant 6 : index
    %c0_23 = arith.constant 0 : index
    %c0_24 = arith.constant 0 : index
    %44 = vector.load %arg4[%c6, %c0_23, %c0_24] : memref<9x128x128xbf16, #tpu.memory_space<vmem>>, vector<1x128x128xbf16>
    %45 = vector.shape_cast %44 : vector<1x128x128xbf16> to vector<128x128xbf16>
    %cst_25 = arith.constant dense<0.000000e+00> : vector<256x128xf32>
    %46 = tpu.matmul %43, %45, %cst_25 {dimension_numbers = #tpu.dot_dimension_numbers<[1], [0], [0], [1], [0, 0, 1, 1], [], []>} : vector<256x128xbf16>, vector<128x128xbf16>, vector<256x128xf32> -> vector<256x128xf32>
    %47 = arith.addf %41, %46 : vector<256x128xf32>
    %48 = vector.extract_strided_slice %4 {offsets = [2, 1, 0], sizes = [16, 16, 128], strides = [1, 1, 1]} : vector<18x18x128xbf16> to vector<16x16x128xbf16>
    %49 = vector.shape_cast %48 : vector<16x16x128xbf16> to vector<256x128xbf16>
    %c7 = arith.constant 7 : index
    %c0_26 = arith.constant 0 : index
    %c0_27 = arith.constant 0 : index
    %50 = vector.load %arg4[%c7, %c0_26, %c0_27] : memref<9x128x128xbf16, #tpu.memory_space<vmem>>, vector<1x128x128xbf16>
    %51 = vector.shape_cast %50 : vector<1x128x128xbf16> to vector<128x128xbf16>
    %cst_28 = arith.constant dense<0.000000e+00> : vector<256x128xf32>
    %52 = tpu.matmul %49, %51, %cst_28 {dimension_numbers = #tpu.dot_dimension_numbers<[1], [0], [0], [1], [0, 0, 1, 1], [], []>} : vector<256x128xbf16>, vector<128x128xbf16>, vector<256x128xf32> -> vector<256x128xf32>
    %53 = arith.addf %47, %52 : vector<256x128xf32>
    %54 = vector.extract_strided_slice %4 {offsets = [2, 2, 0], sizes = [16, 16, 128], strides = [1, 1, 1]} : vector<18x18x128xbf16> to vector<16x16x128xbf16>
    %55 = vector.shape_cast %54 : vector<16x16x128xbf16> to vector<256x128xbf16>
    %c8 = arith.constant 8 : index
    %c0_29 = arith.constant 0 : index
    %c0_30 = arith.constant 0 : index
    %56 = vector.load %arg4[%c8, %c0_29, %c0_30] : memref<9x128x128xbf16, #tpu.memory_space<vmem>>, vector<1x128x128xbf16>
    %57 = vector.shape_cast %56 : vector<1x128x128xbf16> to vector<128x128xbf16>
    %cst_31 = arith.constant dense<0.000000e+00> : vector<256x128xf32>
    %58 = tpu.matmul %55, %57, %cst_31 {dimension_numbers = #tpu.dot_dimension_numbers<[1], [0], [0], [1], [0, 0, 1, 1], [], []>} : vector<256x128xbf16>, vector<128x128xbf16>, vector<256x128xf32> -> vector<256x128xf32>
    %59 = arith.addf %53, %58 : vector<256x128xf32>
    %c0_32 = arith.constant 0 : index
    %c0_33 = arith.constant 0 : index
    %60 = vector.load %arg7[%c0_32, %c0_33] : memref<256x128xf32, #tpu.memory_space<vmem>>, vector<256x128xf32>
    %61 = arith.addf %60, %59 : vector<256x128xf32>
    %c0_34 = arith.constant 0 : index
    %c0_35 = arith.constant 0 : index
    %62 = vector.load %arg7[%c0_34, %c0_35] : memref<256x128xf32, #tpu.memory_space<vmem>>, vector<256x128xf32>
    tpu.vector_store %arg7[%c0_34, %c0_35], %61 {strides = array<i32>} : memref<256x128xf32, #tpu.memory_space<vmem>>, vector<256x128xf32>,
    %c0_i32_36 = arith.constant 0 : i32
    %63 = arith.cmpi eq, %arg2, %c0_i32_36 : i32
    %64 = arith.extui %63 : i1 to i32
    %c0_i32_37 = arith.constant 0 : i32
    %65 = arith.cmpi ne, %64, %c0_i32_37 : i32
    scf.if %65 {
      %c0_38 = arith.constant 0 : index
      %c0_39 = arith.constant 0 : index
      %66 = vector.load %arg7[%c0_38, %c0_39] : memref<256x128xf32, #tpu.memory_space<vmem>>, vector<256x128xf32>
      %c0_40 = arith.constant 0 : index
      %c0_41 = arith.constant 0 : index
      %67 = vector.load %arg5[%c0_40, %c0_41] : memref<1x128xf32, #tpu.memory_space<vmem>>, vector<1x128xf32>
      %68 = vector.broadcast %67 : vector<1x128xf32> to vector<256x128xf32>
      %69 = arith.addf %66, %68 : vector<256x128xf32>
      %cst_42 = arith.constant 0.000000e+00 : f32
      %70 = vector.broadcast %cst_42 : f32 to vector<256x128xf32>
      %71 = arith.cmpf oge, %69, %70 : vector<256x128xf32>
      %cst_43 = arith.constant 2.000000e-01 : f32
      %72 = vector.broadcast %cst_43 : f32 to vector<256x128xf32>
      %73 = arith.mulf %72, %69 : vector<256x128xf32>
      %74 = arith.select %71, %69, %73 : vector<256x128xi1>, vector<256x128xf32>
      %cst_44 = arith.constant 1.41421354 : f32
      %75 = vector.broadcast %cst_44 : f32 to vector<256x128xf32>
      %76 = arith.mulf %74, %75 : vector<256x128xf32>
      %77 = arith.truncf %76 : vector<256x128xf32> to vector<256x128xbf16>
      %c0_45 = arith.constant 0 : index
      %c0_46 = arith.constant 0 : index
      %c0_47 = arith.constant 0 : index
      %78 = vector.load %arg6[%c0_45, %c0_46, %c0_47] : memref<1x256x128xbf16, #tpu.memory_space<vmem>>, vector<1x256x128xbf16>
      %79 = vector.shape_cast %78 : vector<1x256x128xbf16> to vector<256x128xbf16>
      %80 = vector.shape_cast %77 : vector<256x128xbf16> to vector<1x256x128xbf16>
      tpu.vector_store %arg6[%c0_45, %c0_46, %c0_47], %80 {strides = array<i32>} : memref<1x256x128xbf16, #tpu.memory_space<vmem>>, vector<1x256x128xbf16>,
    } else {
    }
    return
  }
  func.func @transform_0(%arg0: i32, %arg1: i32, %arg2: i32) -> (i32, i32, i32, i32) {
    %c0_i32 = arith.constant 0 : i32
    %c0_i32_0 = arith.constant 0 : i32
    %c0_i32_1 = arith.constant 0 : i32
    return %arg0, %c0_i32, %c0_i32_0, %arg2 : i32, i32, i32, i32
  }
  func.func @transform_1(%arg0: i32, %arg1: i32, %arg2: i32) -> (i32, i32, i32) {
    %c0_i32 = arith.constant 0 : i32
    %c0_i32_0 = arith.constant 0 : i32
    return %c0_i32, %arg2, %arg1 : i32, i32, i32
  }
  func.func @transform_2(%arg0: i32, %arg1: i32, %arg2: i32) -> (i32, i32) {
    %c0_i32 = arith.constant 0 : i32
    %c0_i32_0 = arith.constant 0 : i32
    return %c0_i32, %arg1 : i32, i32
  }
  func.func @transform_3(%arg0: i32, %arg1: i32, %arg2: i32) -> (i32, i32, i32) {
    %c0_i32 = arith.constant 0 : i32
    %c0_i32_0 = arith.constant 0 : i32
    return %arg0, %c0_i32, %arg1 : i32, i32, i32
  }
}

</mosaic_0001>

<llo_original>
// kernel: tpu_custom_call.1
$region0: #{tpu_custom_call.1}
  #allocation0 [shape = 'u32[]', space=smem, size = 0x4, offset = 0x4, fixed_abs, tag = 'smem constant byte address 0x4 - core index']
  #allocation1 [shape = 'u32[144,128]{1,0:T(1,128)}', space=vmem, size = 0x12000, scoped, tag = 'internal scratch']
  #allocation2 [shape = 'f32[256,128]{1,0:T(8,128)}', space=vmem, size = 0x20000, scoped, tag = 'scratch operand']
  %s0 = inlined_call_operand.vmem [shape: bf16[2,18,18,128], index: 0, kind: input, shape index: {}]
  %s1 = inlined_call_operand.vmem [shape: bf16[9,128,128], index: 1, kind: input, shape index: {}]
  %s2 = inlined_call_operand.vmem [shape: f32[1,128], index: 2, kind: input, shape index: {}]
  %s3 = inlined_call_operand.hbm [shape: bf16[2,256,128], index: 3, kind: output, shape index: {}]
  %s4 = sld [smem:[#allocation0]]
  $region53: #{tpu_custom_call.1} parent=0
    _
  %s6 = ssub.s32 1, %s4
  %s7 = scalar_select 0, %s6, %s4
  $region1: #{tpu_custom_call.1} parent=0
    #allocation3 [shape = 'u8[131072]{0}', space=vmem, size = 0x20000, scoped, tag = 'output window, operand 0']
    #allocation4 [shape = 's32[2]{0}', space=sflag, size = 0x8, scoped, tag = 'scoped memory for tpu_custom_call.1']
    %8 = vsyncpa [#allocation4], 0
    %s9 = scalar_lea.sflag [#allocation4], 1
    %10 = vsyncpa %s9, 0
    loop: start=0, step=1, limit=4
    $region2: #{tpu_custom_call.1} parent=1 // loop_pre_header
      _
    $region3: #{tpu_custom_call.1} parent=1 // loop_header
      %s12 = sphi 0, %s16
      %p13 = scmp.ge.s32.totalorder %s12, 4
      %s19 = sphi 0, %s38
      %s20 = sphi 0, %s34
      %s21 = sphi 0, %s30
      %s22 = sphi 0, %s19
      %s23 = sphi 0, %s20
      %s24 = sphi 0, %s21
      %s25 = sphi 0, %s22
      %s26 = sphi 0, %s23
      %s27 = sphi 0, %s24
      %s43 = sphi 0, %s45
      %s46 = sphi 0, %s43
      %s47 = sphi 0, %s46
      %s63 = sphi 0, %s47
      %s71 = sphi 0, %s73
      %s74 = sphi 0, %s71
      %s75 = sphi 0, %s74
      %s91 = sphi 0, %s75
      %s97 = sphi 0, %s99
      %s100 = sphi 0, %s97
      %s101 = sphi 0, %s100
      %s117 = sphi 0, %s101
      %s125 = sphi 0, %s127
      %s128 = sphi 0, %s125
      %s129 = sphi 0, %s128
      %s145 = sphi 0, %s129
    $region4: #{tpu_custom_call.1} parent=1 // loop_header_branch
      %15 = sbr.rel (%p13) target = $region8
    $region5: #{tpu_custom_call.1} parent=1 // loop_body
      %s17 = ssub.s32 %s12, 1
      %s18 = ssub.s32 %s12, 2
      %s28 = sadd.s32 1, %s21
      %p29 = scmp.ge.s32.totalorder %s28, 1
      %s30 = scalar_select %p29, 0, %s28
      %s31 = sadd.s32 1, %s20
      %s32 = scalar_select %p29, %s31, %s20
      %p33 = scmp.ge.s32.totalorder %s32, 1
      %s34 = scalar_select %p33, 0, %s32
      %s35 = sadd.s32 1, %s19
      %s36 = scalar_select %p33, %s35, %s19
      %p37 = scmp.ge.s32.totalorder %s36, 2
      %s38 = scalar_select %p37, 0, %s36
      %s39 = ssub.s32 %s19, %s38
      %s40 = ssub.s32 %s21, %s30
      %s41 = sor.u32 %s39, %s40
      %p42 = scmp.eq.s32.totalorder %s41, 0
      %s44 = sadd.s32 %s43, 1
      %s45 = scalar_select %p42, %s43, %s44
      %p48 = pneg %p42
      %p49 = scmp.eq.s32.totalorder %s12, 1
      %p50 = por %p48, %p49
      %p51 = scmp.ne.s32.totalorder %s43, %s46
      %p52 = scmp.eq.s32.totalorder %s12, 0
      %p53 = por %p51, %p52
      %p54 = scmp.ne.s32.totalorder %s43, %s46
      %p55 = scmp.eq.s32.totalorder %s17, 1
      %p56 = por %p54, %p55
      %p57 = scmp.ne.s32.totalorder %s46, %s47
      %p58 = scmp.eq.s32.totalorder %s17, 0
      %p59 = por %p57, %p58
      %p60 = scmp.ne.s32.totalorder %s46, %s47
      %p61 = scmp.eq.s32.totalorder %s18, 1
      %p62 = por %p60, %p61
      %p64 = scmp.ne.s32.totalorder %s47, %s63
      %p65 = scmp.eq.s32.totalorder %s18, 0
      %p66 = por %p64, %p65
      %s67 = ssub.s32 %s21, %s30
      %s68 = ssub.s32 %s20, %s34
      %s69 = sor.u32 %s67, %s68
      %p70 = scmp.eq.s32.totalorder %s69, 0
      %s72 = sadd.s32 %s71, 1
      %s73 = scalar_select %p70, %s71, %s72
      %p76 = pneg %p70
      %p77 = scmp.eq.s32.totalorder %s12, 1
      %p78 = por %p76, %p77
      %p79 = scmp.ne.s32.totalorder %s71, %s74
      %p80 = scmp.eq.s32.totalorder %s12, 0
      %p81 = por %p79, %p80
      %p82 = scmp.ne.s32.totalorder %s71, %s74
      %p83 = scmp.eq.s32.totalorder %s17, 1
      %p84 = por %p82, %p83
      %p85 = scmp.ne.s32.totalorder %s74, %s75
      %p86 = scmp.eq.s32.totalorder %s17, 0
      %p87 = por %p85, %p86
      %p88 = scmp.ne.s32.totalorder %s74, %s75
      %p89 = scmp.eq.s32.totalorder %s18, 1
      %p90 = por %p88, %p89
      %p92 = scmp.ne.s32.totalorder %s75, %s91
      %p93 = scmp.eq.s32.totalorder %s18, 0
      %p94 = por %p92, %p93
      %s95 = ssub.s32 %s20, %s34
      %p96 = scmp.eq.s32.totalorder %s95, 0
      %s98 = sadd.s32 %s97, 1
      %s99 = scalar_select %p96, %s97, %s98
      %p102 = pneg %p96
      %p103 = scmp.eq.s32.totalorder %s12, 1
      %p104 = por %p102, %p103
      %p105 = scmp.ne.s32.totalorder %s97, %s100
      %p106 = scmp.eq.s32.totalorder %s12, 0
      %p107 = por %p105, %p106
      %p108 = scmp.ne.s32.totalorder %s97, %s100
      %p109 = scmp.eq.s32.totalorder %s17, 1
      %p110 = por %p108, %p109
      %p111 = scmp.ne.s32.totalorder %s100, %s101
      %p112 = scmp.eq.s32.totalorder %s17, 0
      %p113 = por %p111, %p112
      %p114 = scmp.ne.s32.totalorder %s100, %s101
      %p115 = scmp.eq.s32.totalorder %s18, 1
      %p116 = por %p114, %p115
      %p118 = scmp.ne.s32.totalorder %s101, %s117
      %p119 = scmp.eq.s32.totalorder %s18, 0
      %p120 = por %p118, %p119
      %s121 = ssub.s32 %s19, %s38
      %s122 = ssub.s32 %s20, %s34
      %s123 = sor.u32 %s121, %s122
      %p124 = scmp.eq.s32.totalorder %s123, 0
      %s126 = sadd.s32 %s125, 1
      %s127 = scalar_select %p124, %s125, %s126
      %p130 = pneg %p124
      %p131 = scmp.eq.s32.totalorder %s12, 1
      %p132 = por %p130, %p131
      %p133 = scmp.ne.s32.totalorder %s125, %s128
      %p134 = scmp.eq.s32.totalorder %s12, 0
      %p135 = por %p133, %p134
      %p136 = scmp.ne.s32.totalorder %s125, %s128
      %p137 = scmp.eq.s32.totalorder %s17, 1
      %p138 = por %p136, %p137
      %p139 = scmp.ne.s32.totalorder %s128, %s129
      %p140 = scmp.eq.s32.totalorder %s17, 0
      %p141 = por %p139, %p140
      %p142 = scmp.ne.s32.totalorder %s128, %s129
      %p143 = scmp.eq.s32.totalorder %s18, 1
      %p144 = por %p142, %p143
      %p146 = scmp.ne.s32.totalorder %s129, %s145
      %p147 = scmp.eq.s32.totalorder %s18, 0
      %p148 = por %p146, %p147
      %p149 = scmp.le.s32.totalorder 1, %s12
      %p150 = scmp.lt.s32.totalorder %s12, 3
      %p151 = pnand %p149, %p150
      %p152 = pneg %p151
      // Predicated region
      $region9: #{tpu_custom_call.1} parent=5 // pred_check
        _
      $region10: #{tpu_custom_call.1} parent=5 // pred_check_branch
        %154 = sbr.rel (%p151) target = $region12
      $region11: #{tpu_custom_call.1} parent=5 // pred_region
        %s155 = ssub.s32 %s12, 1
        // Predicated region
        $region13: #{tpu_custom_call.1} parent=11 // pred_check
          %p156 = pneg %p87
        $region14: #{tpu_custom_call.1} parent=11 // pred_check_branch
          %158 = sbr.rel (%p156) target = $region16
        $region15: #{tpu_custom_call.1} parent=11 // pred_region
          %s159 = smul.u32 16, %s24
          %p160 = scmp.lt.s32.totalorder %s159, 15
          %s161 = scalar_select %p160, %s159, 15
          %p162 = scmp.lt.s32.totalorder %s23, 0
          %s163 = scalar_select %p162, %s23, 0
          %s164 = sadd.s32 %s163, %s161
          %s165 = smul.addr %s164, 4
          %s166 = scalar_lea.vmem %s1, %s165
          %s167 = smul.u32 16, %s24
        $region16: #{tpu_custom_call.1} parent=11 // pred_fallthru
          _
        // Predicated region
        $region17: #{tpu_custom_call.1} parent=11 // pred_check
          %p168 = pneg %p113
        $region18: #{tpu_custom_call.1} parent=11 // pred_check_branch
          %170 = sbr.rel (%p168) target = $region20
        $region19: #{tpu_custom_call.1} parent=11 // pred_region
          %p171 = scmp.lt.s32.totalorder %s23, 0
          %s172 = scalar_select %p171, %s23, 0
          %s173 = scalar_lea.vmem %s2, %s172
        $region20: #{tpu_custom_call.1} parent=11 // pred_fallthru
          _
      $region12: #{tpu_custom_call.1} parent=5 // pred_fallthru
        _
      %p174 = scmp.lt.s32.totalorder %s12, 2
      // Predicated region
      $region21: #{tpu_custom_call.1} parent=5 // pred_check
        %p175 = pneg %p174
      $region22: #{tpu_custom_call.1} parent=5 // pred_check_branch
        %177 = sbr.rel (%p175) target = $region24
      $region23: #{tpu_custom_call.1} parent=5 // pred_region
        // Predicated region
        $region25: #{tpu_custom_call.1} parent=23 // pred_check
          %p178 = pneg %p53
        $region26: #{tpu_custom_call.1} parent=23 // pred_check_branch
          %180 = sbr.rel (%p178) target = $region28
        $region27: #{tpu_custom_call.1} parent=23 // pred_region
          %p181 = scmp.lt.s32.totalorder %s19, 1
          %s182 = scalar_select %p181, %s19, 1
          %p183 = scmp.lt.s32.totalorder %s21, 0
          %s184 = scalar_select %p183, %s21, 0
          %s185 = smul.addr %s182, 54
          %s186 = sadd.s32 %s184, %s185
          %s187 = smul.addr %s186, 4
          %s188 = scalar_lea.vmem %s0, %s187
        $region28: #{tpu_custom_call.1} parent=23 // pred_fallthru
          _
      $region24: #{tpu_custom_call.1} parent=5 // pred_fallthru
        _
      %p189 = scmp.le.s32.totalorder 1, %s12
      %p190 = scmp.lt.s32.totalorder %s12, 3
      %p191 = pnand %p189, %p190
      %p192 = pneg %p191
      // Predicated region
      $region29: #{tpu_custom_call.1} parent=5 // pred_check
        _
      $region30: #{tpu_custom_call.1} parent=5 // pred_check_branch
        %194 = sbr.rel (%p191) target = $region32
      $region31: #{tpu_custom_call.1} parent=5 // pred_region
        %s195 = ssub.s32 %s12, 1
        %p196 = scmp.lt.s32.totalorder %s22, 1
        %s197 = scalar_select %p196, %s22, 1
        %p198 = scmp.lt.s32.totalorder %s24, 0
        %s199 = scalar_select %p198, %s24, 0
        %s200 = smul.addr %s197, 54
        %s201 = sadd.s32 %s199, %s200
        %s202 = smul.addr %s201, 4
        %s203 = scalar_lea.vmem %s0, %s202
        %p204 = pneg %p59
        %p205 = pneg %p56
        %s206 = smul.u32 16, %s24
        %p207 = scmp.lt.s32.totalorder %s206, 15
        %s208 = scalar_select %p207, %s206, 15
        %p209 = scmp.lt.s32.totalorder %s23, 0
        %s210 = scalar_select %p209, %s23, 0
        %s211 = sadd.s32 %s210, %s208
        %s212 = smul.addr %s211, 4
        %s213 = scalar_lea.vmem %s1, %s212
        %p214 = pneg %p87
        %p215 = pneg %p84
        %p216 = scmp.lt.s32.totalorder %s23, 0
        %s217 = scalar_select %p216, %s23, 0
        %s218 = scalar_lea.vmem %s2, %s217
        %p219 = pneg %p113
        %p220 = pneg %p110
        %p221 = pneg %p141
        %p222 = pneg %p138
        %s223 = sand.u32 %s128, 1
        %s224 = scalar_lea.sflag [#allocation4], %s223
        %s225 = sand.u32 %s128, 1
        %s226 = smul.addr %s225, 128
        %s227 = scalar_lea.vmem [#allocation3], %s226
        %p228 = scmp.lt.s32.totalorder %s22, 1
        %s229 = scalar_select %p228, %s22, 1
        %p230 = scmp.lt.s32.totalorder %s24, 0
        %s231 = scalar_select %p230, %s24, 0
        %s232 = smul.addr %s229, 54
        %s233 = sadd.s32 %s231, %s232
        %s234 = smul.addr %s233, 4
        %s235 = scalar_lea.vmem %s0, %s234
        %s236 = smul.u32 16, %s24
        %p237 = scmp.lt.s32.totalorder %s236, 15
        %s238 = scalar_select %p237, %s236, 15
        %p239 = scmp.lt.s32.totalorder %s23, 0
        %s240 = scalar_select %p239, %s23, 0
        %s241 = sadd.s32 %s240, %s238
        %s242 = smul.addr %s241, 4
        %s243 = scalar_lea.vmem %s1, %s242
        %s244 = smul.u32 16, %s24
        %p245 = scmp.lt.s32.totalorder %s23, 0
        %s246 = scalar_select %p245, %s23, 0
        %s247 = scalar_lea.vmem %s2, %s246
        %p249 = scmp.eq.s32.totalorder %s24, 0
        // Predicated region
        $region33: #{tpu_custom_call.1} parent=31 // pred_check
          %p250 = pneg %p249
        $region34: #{tpu_custom_call.1} parent=31 // pred_check_branch
          %252 = sbr.rel (%p250) target = $region36
        $region35: #{tpu_custom_call.1} parent=31 // pred_region
          %253 = vst [vmem:[#allocation2] sm:$0xff] 0.0
          %254 = vst [vmem:[#allocation2 + $0x8] sm:$0xff] 0.0
          %255 = vst [vmem:[#allocation2 + $0x10] sm:$0xff] 0.0
          %256 = vst [vmem:[#allocation2 + $0x18] sm:$0xff] 0.0
          %257 = vst [vmem:[#allocation2 + $0x20] sm:$0xff] 0.0
          %258 = vst [vmem:[#allocation2 + $0x28] sm:$0xff] 0.0
          %259 = vst [vmem:[#allocation2 + $0x30] sm:$0xff] 0.0
          %260 = vst [vmem:[#allocation2 + $0x38] sm:$0xff] 0.0
          %261 = vst [vmem:[#allocation2 + $0x40] sm:$0xff] 0.0
          %262 = vst [vmem:[#allocation2 + $0x48] sm:$0xff] 0.0
          %263 = vst [vmem:[#allocation2 + $0x50] sm:$0xff] 0.0
          %264 = vst [vmem:[#allocation2 + $0x58] sm:$0xff] 0.0
          %265 = vst [vmem:[#allocation2 + $0x60] sm:$0xff] 0.0
          %266 = vst [vmem:[#allocation2 + $0x68] sm:$0xff] 0.0
          %267 = vst [vmem:[#allocation2 + $0x70] sm:$0xff] 0.0
          %268 = vst [vmem:[#allocation2 + $0x78] sm:$0xff] 0.0
          %269 = vst [vmem:[#allocation2 + $0x80] sm:$0xff] 0.0
          %270 = vst [vmem:[#allocation2 + $0x88] sm:$0xff] 0.0
          %271 = vst [vmem:[#allocation2 + $0x90] sm:$0xff] 0.0
          %272 = vst [vmem:[#allocation2 + $0x98] sm:$0xff] 0.0
          %273 = vst [vmem:[#allocation2 + $0xa0] sm:$0xff] 0.0
          %274 = vst [vmem:[#allocation2 + $0xa8] sm:$0xff] 0.0
          %275 = vst [vmem:[#allocation2 + $0xb0] sm:$0xff] 0.0
          %276 = vst [vmem:[#allocation2 + $0xb8] sm:$0xff] 0.0
          %277 = vst [vmem:[#allocation2 + $0xc0] sm:$0xff] 0.0
          %278 = vst [vmem:[#allocation2 + $0xc8] sm:$0xff] 0.0
          %279 = vst [vmem:[#allocation2 + $0xd0] sm:$0xff] 0.0
          %280 = vst [vmem:[#allocation2 + $0xd8] sm:$0xff] 0.0
          %281 = vst [vmem:[#allocation2 + $0xe0] sm:$0xff] 0.0
          %282 = vst [vmem:[#allocation2 + $0xe8] sm:$0xff] 0.0
          %283 = vst [vmem:[#allocation2 + $0xf0] sm:$0xff] 0.0
          %284 = vst [vmem:[#allocation2 + $0xf8] sm:$0xff] 0.0
        $region36: #{tpu_custom_call.1} parent=31 // pred_fallthru
          _
        %v285 = vld [vmem:[%s235] sm:$0xf]
        %v286 = vld [vmem:[%s235 + $0x4] sm:$0xf]
        %v287 = vld [vmem:[%s235 + $0x8] sm:$0x1]
        %v288 = vld [vmem:[%s235 + $0xc] sm:$0xf]
        %v289 = vld [vmem:[%s235 + $0x10] sm:$0xf]
        %v290 = vld [vmem:[%s235 + $0x14] sm:$0x1]
        %v291 = vld [vmem:[%s235 + $0x18] sm:$0xf]
        %v292 = vld [vmem:[%s235 + $0x1c] sm:$0xf]
        %v293 = vld [vmem:[%s235 + $0x20] sm:$0x1]
        %v294 = vld [vmem:[%s235 + $0x24] sm:$0xf]
        %v295 = vld [vmem:[%s235 + $0x28] sm:$0xf]
        %v296 = vld [vmem:[%s235 + $0x2c] sm:$0x1]
        %v297 = vld [vmem:[%s235 + $0x30] sm:$0xf]
        %v298 = vld [vmem:[%s235 + $0x34] sm:$0xf]
        %v299 = vld [vmem:[%s235 + $0x38] sm:$0x1]
        %v300 = vld [vmem:[%s235 + $0x3c] sm:$0xf]
        %v301 = vld [vmem:[%s235 + $0x40] sm:$0xf]
        %v302 = vld [vmem:[%s235 + $0x44] sm:$0x1]
        %v303 = vld [vmem:[%s235 + $0x48] sm:$0xf]
        %v304 = vld [vmem:[%s235 + $0x4c] sm:$0xf]
        %v305 = vld [vmem:[%s235 + $0x50] sm:$0x1]
        %v306 = vld [vmem:[%s235 + $0x54] sm:$0xf]
        %v307 = vld [vmem:[%s235 + $0x58] sm:$0xf]
        %v308 = vld [vmem:[%s235 + $0x5c] sm:$0x1]
        %v309 = vld [vmem:[%s235 + $0x60] sm:$0xf]
        %v310 = vld [vmem:[%s235 + $0x64] sm:$0xf]
        %v311 = vld [vmem:[%s235 + $0x68] sm:$0x1]
        %v312 = vld [vmem:[%s235 + $0x6c] sm:$0xf]
        %v313 = vld [vmem:[%s235 + $0x70] sm:$0xf]
        %v314 = vld [vmem:[%s235 + $0x74] sm:$0x1]
        %v315 = vld [vmem:[%s235 + $0x78] sm:$0xf]
        %v316 = vld [vmem:[%s235 + $0x7c] sm:$0xf]
        %v317 = vld [vmem:[%s235 + $0x80] sm:$0x1]
        %v318 = vld [vmem:[%s235 + $0x84] sm:$0xf]
        %v319 = vld [vmem:[%s235 + $0x88] sm:$0xf]
        %v320 = vld [vmem:[%s235 + $0x8c] sm:$0x1]
        %v321 = vld [vmem:[%s235 + $0x90] sm:$0xf]
        %v322 = vld [vmem:[%s235 + $0x94] sm:$0xf]
        %v323 = vld [vmem:[%s235 + $0x98] sm:$0x1]
        %v324 = vld [vmem:[%s235 + $0x9c] sm:$0xf]
        %v325 = vld [vmem:[%s235 + $0xa0] sm:$0xf]
        %v326 = vld [vmem:[%s235 + $0xa4] sm:$0x1]
        %v327 = vld [vmem:[%s235 + $0xa8] sm:$0xf]
        %v328 = vld [vmem:[%s235 + $0xac] sm:$0xf]
        %v329 = vld [vmem:[%s235 + $0xb0] sm:$0x1]
        %v330 = vld [vmem:[%s235 + $0xb4] sm:$0xf]
        %v331 = vld [vmem:[%s235 + $0xb8] sm:$0xf]
        %v332 = vld [vmem:[%s235 + $0xbc] sm:$0x1]
        %v333 = vld [vmem:[%s235 + $0xc0] sm:$0xf]
        %v334 = vld [vmem:[%s235 + $0xc4] sm:$0xf]
        %v335 = vld [vmem:[%s235 + $0xc8] sm:$0x1]
        %v336 = vld [vmem:[%s235 + $0xcc] sm:$0xf]
        %v337 = vld [vmem:[%s235 + $0xd0] sm:$0xf]
        %v338 = vld [vmem:[%s235 + $0xd4] sm:$0x1]
        %v339 = vld [vmem:[%s243] sm:$0xf]
        %v340 = vld [vmem:[%s243 + $0x4] sm:$0xf]
        %v341 = vld [vmem:[%s243 + $0x8] sm:$0xf]
        %v342 = vld [vmem:[%s243 + $0xc] sm:$0xf]
        %v343 = vld [vmem:[%s243 + $0x10] sm:$0xf]
        %v344 = vld [vmem:[%s243 + $0x14] sm:$0xf]
        %v345 = vld [vmem:[%s243 + $0x18] sm:$0xf]
        %v346 = vld [vmem:[%s243 + $0x1c] sm:$0xf]
        %v347 = vld [vmem:[%s243 + $0x20] sm:$0xf]
        %v348 = vld [vmem:[%s243 + $0x24] sm:$0xf]
        %v349 = vld [vmem:[%s243 + $0x28] sm:$0xf]
        %v350 = vld [vmem:[%s243 + $0x2c] sm:$0xf]
        %v351 = vld [vmem:[%s243 + $0x30] sm:$0xf]
        %v352 = vld [vmem:[%s243 + $0x34] sm:$0xf]
        %v353 = vld [vmem:[%s243 + $0x38] sm:$0xf]
        %v354 = vld [vmem:[%s243 + $0x3c] sm:$0xf]
        %vm355 = vsmask.f32 3328
        %vm356 = vsmask.f32 7440
        %vm357 = vmor %vm355, %vm356
        %v359 = vshrl.u32 %v285, 16
        %v361 = vrot.slane %v359, 4
        %v362 = vshll.u32 %v285, 16
        %v364 = vrot.slane %v362, 5
        %v365 = vor.u32 %v361, %v364
        %v366 = vrot.slane %v365, 4
        %v368 = vshll.u32 %v286, 16
        %v370 = vrot.slane %v368, 5
        %v371 = vsel %vm357, %v366, %v370
        %v372 = vshrl.u32 %v286, 16
        %v374 = vrot.slane %v372, 4
        %v375 = vor.u32 %v374, %v370
        %v376 = vrot.slane %v375, 4
        %v378 = vshll.u32 %v287, 16
        %v380 = vrot.slane %v378, 5
        %v381 = vsel %vm357, %v376, %v380
        %v383 = vshrl.u32 %v288, 16
        %v385 = vrot.slane %v383, 4
        %v386 = vshll.u32 %v288, 16
        %v388 = vrot.slane %v386, 5
        %v389 = vor.u32 %v385, %v388
        %v390 = vrot.slane %v389, 4
        %v392 = vshll.u32 %v289, 16
        %v394 = vrot.slane %v392, 5
        %v395 = vsel %vm357, %v390, %v394
        %v396 = vshrl.u32 %v289, 16
        %v398 = vrot.slane %v396, 4
        %v399 = vor.u32 %v398, %v394
        %v400 = vrot.slane %v399, 4
        %v402 = vshll.u32 %v290, 16
        %v404 = vrot.slane %v402, 5
        %v405 = vsel %vm357, %v400, %v404
        %v407 = vshrl.u32 %v291, 16
        %v409 = vrot.slane %v407, 4
        %v410 = vshll.u32 %v291, 16
        %v412 = vrot.slane %v410, 5
        %v413 = vor.u32 %v409, %v412
        %v414 = vrot.slane %v413, 4
        %v416 = vshll.u32 %v292, 16
        %v418 = vrot.slane %v416, 5
        %v419 = vsel %vm357, %v414, %v418
        %v420 = vshrl.u32 %v292, 16
        %v422 = vrot.slane %v420, 4
        %v423 = vor.u32 %v422, %v418
        %v424 = vrot.slane %v423, 4
        %v426 = vshll.u32 %v293, 16
        %v428 = vrot.slane %v426, 5
        %v429 = vsel %vm357, %v424, %v428
        %v431 = vshrl.u32 %v294, 16
        %v433 = vrot.slane %v431, 4
        %v434 = vshll.u32 %v294, 16
        %v436 = vrot.slane %v434, 5
        %v437 = vor.u32 %v433, %v436
        %v438 = vrot.slane %v437, 4
        %v440 = vshll.u32 %v295, 16
        %v442 = vrot.slane %v440, 5
        %v443 = vsel %vm357, %v438, %v442
        %v444 = vshrl.u32 %v295, 16
        %v446 = vrot.slane %v444, 4
        %v447 = vor.u32 %v446, %v442
        %v448 = vrot.slane %v447, 4
        %v450 = vshll.u32 %v296, 16
        %v452 = vrot.slane %v450, 5
        %v453 = vsel %vm357, %v448, %v452
        %v455 = vshrl.u32 %v297, 16
        %v457 = vrot.slane %v455, 4
        %v458 = vshll.u32 %v297, 16
        %v460 = vrot.slane %v458, 5
        %v461 = vor.u32 %v457, %v460
        %v462 = vrot.slane %v461, 4
        %v464 = vshll.u32 %v298, 16
        %v466 = vrot.slane %v464, 5
        %v467 = vsel %vm357, %v462, %v466
        %v468 = vshrl.u32 %v298, 16
        %v470 = vrot.slane %v468, 4
        %v471 = vor.u32 %v470, %v466
        %v472 = vrot.slane %v471, 4
        %v474 = vshll.u32 %v299, 16
        %v476 = vrot.slane %v474, 5
        %v477 = vsel %vm357, %v472, %v476
        %v479 = vshrl.u32 %v300, 16
        %v481 = vrot.slane %v479, 4
        %v482 = vshll.u32 %v300, 16
        %v484 = vrot.slane %v482, 5
        %v485 = vor.u32 %v481, %v484
        %v486 = vrot.slane %v485, 4
        %v488 = vshll.u32 %v301, 16
        %v490 = vrot.slane %v488, 5
        %v491 = vsel %vm357, %v486, %v490
        %v492 = vshrl.u32 %v301, 16
        %v494 = vrot.slane %v492, 4
        %v495 = vor.u32 %v494, %v490
        %v496 = vrot.slane %v495, 4
        %v498 = vshll.u32 %v302, 16
        %v500 = vrot.slane %v498, 5
        %v501 = vsel %vm357, %v496, %v500
        %v503 = vshrl.u32 %v303, 16
        %v505 = vrot.slane %v503, 4
        %v506 = vshll.u32 %v303, 16
        %v508 = vrot.slane %v506, 5
        %v509 = vor.u32 %v505, %v508
        %v510 = vrot.slane %v509, 4
        %v512 = vshll.u32 %v304, 16
        %v514 = vrot.slane %v512, 5
        %v515 = vsel %vm357, %v510, %v514
        %v516 = vshrl.u32 %v304, 16
        %v518 = vrot.slane %v516, 4
        %v519 = vor.u32 %v518, %v514
        %v520 = vrot.slane %v519, 4
        %v522 = vshll.u32 %v305, 16
        %v524 = vrot.slane %v522, 5
        %v525 = vsel %vm357, %v520, %v524
        %v527 = vshrl.u32 %v306, 16
        %v529 = vrot.slane %v527, 4
        %v530 = vshll.u32 %v306, 16
        %v532 = vrot.slane %v530, 5
        %v533 = vor.u32 %v529, %v532
        %v534 = vrot.slane %v533, 4
        %v536 = vshll.u32 %v307, 16
        %v538 = vrot.slane %v536, 5
        %v539 = vsel %vm357, %v534, %v538
        %v540 = vshrl.u32 %v307, 16
        %v542 = vrot.slane %v540, 4
        %v543 = vor.u32 %v542, %v538
        %v544 = vrot.slane %v543, 4
        %v546 = vshll.u32 %v308, 16
        %v548 = vrot.slane %v546, 5
        %v549 = vsel %vm357, %v544, %v548
        %v551 = vshrl.u32 %v309, 16
        %v553 = vrot.slane %v551, 4
        %v554 = vshll.u32 %v309, 16
        %v556 = vrot.slane %v554, 5
        %v557 = vor.u32 %v553, %v556
        %v558 = vrot.slane %v557, 4
        %v560 = vshll.u32 %v310, 16
        %v562 = vrot.slane %v560, 5
        %v563 = vsel %vm357, %v558, %v562
        %v564 = vshrl.u32 %v310, 16
        %v566 = vrot.slane %v564, 4
        %v567 = vor.u32 %v566, %v562
        %v568 = vrot.slane %v567, 4
        %v570 = vshll.u32 %v311, 16
        %v572 = vrot.slane %v570, 5
        %v573 = vsel %vm357, %v568, %v572
        %v575 = vshrl.u32 %v312, 16
        %v577 = vrot.slane %v575, 4
        %v578 = vshll.u32 %v312, 16
        %v580 = vrot.slane %v578, 5
        %v581 = vor.u32 %v577, %v580
        %v582 = vrot.slane %v581, 4
        %v584 = vshll.u32 %v313, 16
        %v586 = vrot.slane %v584, 5
        %v587 = vsel %vm357, %v582, %v586
        %v588 = vshrl.u32 %v313, 16
        %v590 = vrot.slane %v588, 4
        %v591 = vor.u32 %v590, %v586
        %v592 = vrot.slane %v591, 4
        %v594 = vshll.u32 %v314, 16
        %v596 = vrot.slane %v594, 5
        %v597 = vsel %vm357, %v592, %v596
        %v599 = vshrl.u32 %v315, 16
        %v601 = vrot.slane %v599, 4
        %v602 = vshll.u32 %v315, 16
        %v604 = vrot.slane %v602, 5
        %v605 = vor.u32 %v601, %v604
        %v606 = vrot.slane %v605, 4
        %v608 = vshll.u32 %v316, 16
        %v610 = vrot.slane %v608, 5
        %v611 = vsel %vm357, %v606, %v610
        %v612 = vshrl.u32 %v316, 16
        %v614 = vrot.slane %v612, 4
        %v615 = vor.u32 %v614, %v610
        %v616 = vrot.slane %v615, 4
        %v618 = vshll.u32 %v317, 16
        %v620 = vrot.slane %v618, 5
        %v621 = vsel %vm357, %v616, %v620
        %v623 = vshrl.u32 %v318, 16
        %v625 = vrot.slane %v623, 4
        %v626 = vshll.u32 %v318, 16
        %v628 = vrot.slane %v626, 5
        %v629 = vor.u32 %v625, %v628
        %v630 = vrot.slane %v629, 4
        %v632 = vshll.u32 %v319, 16
        %v634 = vrot.slane %v632, 5
        %v635 = vsel %vm357, %v630, %v634
        %v636 = vshrl.u32 %v319, 16
        %v638 = vrot.slane %v636, 4
        %v639 = vor.u32 %v638, %v634
        %v640 = vrot.slane %v639, 4
        %v642 = vshll.u32 %v320, 16
        %v644 = vrot.slane %v642, 5
        %v645 = vsel %vm357, %v640, %v644
        %v647 = vshrl.u32 %v321, 16
        %v649 = vrot.slane %v647, 4
        %v650 = vshll.u32 %v321, 16
        %v652 = vrot.slane %v650, 5
        %v653 = vor.u32 %v649, %v652
        %v654 = vrot.slane %v653, 4
        %v656 = vshll.u32 %v322, 16
        %v658 = vrot.slane %v656, 5
        %v659 = vsel %vm357, %v654, %v658
        %v660 = vshrl.u32 %v322, 16
        %v662 = vrot.slane %v660, 4
        %v663 = vor.u32 %v662, %v658
        %v664 = vrot.slane %v663, 4
        %v666 = vshll.u32 %v323, 16
        %v668 = vrot.slane %v666, 5
        %v669 = vsel %vm357, %v664, %v668
        %v671 = vshrl.u32 %v324, 16
        %v673 = vrot.slane %v671, 4
        %v674 = vshll.u32 %v324, 16
        %v676 = vrot.slane %v674, 5
        %v677 = vor.u32 %v673, %v676
        %v678 = vrot.slane %v677, 4
        %v680 = vshll.u32 %v325, 16
        %v682 = vrot.slane %v680, 5
        %v683 = vsel %vm357, %v678, %v682
        %v684 = vshrl.u32 %v325, 16
        %v686 = vrot.slane %v684, 4
        %v687 = vor.u32 %v686, %v682
        %v688 = vrot.slane %v687, 4
        %v690 = vshll.u32 %v326, 16
        %v692 = vrot.slane %v690, 5
        %v693 = vsel %vm357, %v688, %v692
        %v695 = vshrl.u32 %v327, 16
        %v697 = vrot.slane %v695, 4
        %v698 = vshll.u32 %v327, 16
        %v700 = vrot.slane %v698, 5
        %v701 = vor.u32 %v697, %v700
        %v702 = vrot.slane %v701, 4
        %v704 = vshll.u32 %v328, 16
        %v706 = vrot.slane %v704, 5
        %v707 = vsel %vm357, %v702, %v706
        %v708 = vshrl.u32 %v328, 16
        %v710 = vrot.slane %v708, 4
        %v711 = vor.u32 %v710, %v706
        %v712 = vrot.slane %v711, 4
        %v714 = vshll.u32 %v329, 16
        %v716 = vrot.slane %v714, 5
        %v717 = vsel %vm357, %v712, %v716
        %v719 = vshrl.u32 %v330, 16
        %v721 = vrot.slane %v719, 4
        %v722 = vshll.u32 %v330, 16
        %v724 = vrot.slane %v722, 5
        %v725 = vor.u32 %v721, %v724
        %v726 = vrot.slane %v725, 4
        %v728 = vshll.u32 %v331, 16
        %v730 = vrot.slane %v728, 5
        %v731 = vsel %vm357, %v726, %v730
        %v732 = vshrl.u32 %v331, 16
        %v734 = vrot.slane %v732, 4
        %v735 = vor.u32 %v734, %v730
        %v736 = vrot.slane %v735, 4
        %v738 = vshll.u32 %v332, 16
        %v740 = vrot.slane %v738, 5
        %v741 = vsel %vm357, %v736, %v740
        %s742 = scalar_lea.vmem %s243, 64
        %v743 = vld [vmem:[%s742] sm:$0xf]
        %v744 = vld [vmem:[%s742 + $0x4] sm:$0xf]
        %v745 = vld [vmem:[%s742 + $0x8] sm:$0xf]
        %v746 = vld [vmem:[%s742 + $0xc] sm:$0xf]
        %v747 = vld [vmem:[%s742 + $0x10] sm:$0xf]
        %v748 = vld [vmem:[%s742 + $0x14] sm:$0xf]
        %v749 = vld [vmem:[%s742 + $0x18] sm:$0xf]
        %v750 = vld [vmem:[%s742 + $0x1c] sm:$0xf]
        %v751 = vld [vmem:[%s742 + $0x20] sm:$0xf]
        %v752 = vld [vmem:[%s742 + $0x24] sm:$0xf]
        %v753 = vld [vmem:[%s742 + $0x28] sm:$0xf]
        %v754 = vld [vmem:[%s742 + $0x2c] sm:$0xf]
        %v755 = vld [vmem:[%s742 + $0x30] sm:$0xf]
        %v756 = vld [vmem:[%s742 + $0x34] sm:$0xf]
        %v757 = vld [vmem:[%s742 + $0x38] sm:$0xf]
        %v758 = vld [vmem:[%s742 + $0x3c] sm:$0xf]
        %v759 = vunpack.c.l.b16 %v371
        %v760 = vunpack.c.l.b16 %v381
        %v761 = vunpack.c.l.b16 %v395
        %v762 = vunpack.c.l.b16 %v405
        %v763 = vunpack.c.l.b16 %v419
        %v764 = vunpack.c.l.b16 %v429
        %v765 = vunpack.c.l.b16 %v443
        %v766 = vunpack.c.l.b16 %v453
        %v767 = vunpack.c.l.b16 %v467
        %v768 = vunpack.c.l.b16 %v477
        %v769 = vunpack.c.l.b16 %v491
        %v770 = vunpack.c.l.b16 %v501
        %v771 = vunpack.c.l.b16 %v515
        %v772 = vunpack.c.l.b16 %v525
        %v773 = vunpack.c.l.b16 %v539
        %v774 = vunpack.c.l.b16 %v549
        %v775 = vunpack.c.l.b16 %v563
        %v776 = vunpack.c.l.b16 %v573
        %v777 = vunpack.c.l.b16 %v587
        %v778 = vunpack.c.l.b16 %v597
        %v779 = vunpack.c.l.b16 %v611
        %v780 = vunpack.c.l.b16 %v621
        %v781 = vunpack.c.l.b16 %v635
        %v782 = vunpack.c.l.b16 %v645
        %v783 = vunpack.c.l.b16 %v659
        %v784 = vunpack.c.l.b16 %v669
        %v785 = vunpack.c.l.b16 %v683
        %v786 = vunpack.c.l.b16 %v693
        %v787 = vunpack.c.l.b16 %v707
        %v788 = vunpack.c.l.b16 %v717
        %v789 = vunpack.c.l.b16 %v731
        %v790 = vunpack.c.l.b16 %v741
        %v791 = vpack.c.b16 %v760, %v759
        %v792 = vpack.c.b16 %v762, %v761
        %v793 = vpack.c.b16 %v764, %v763
        %v794 = vpack.c.b16 %v766, %v765
        %v795 = vpack.c.b16 %v768, %v767
        %v796 = vpack.c.b16 %v770, %v769
        %v797 = vpack.c.b16 %v772, %v771
        %v798 = vpack.c.b16 %v774, %v773
        %v799 = vpack.c.b16 %v776, %v775
        %v800 = vpack.c.b16 %v778, %v777
        %v801 = vpack.c.b16 %v780, %v779
        %v802 = vpack.c.b16 %v782, %v781
        %v803 = vpack.c.b16 %v784, %v783
        %v804 = vpack.c.b16 %v786, %v785
        %v805 = vpack.c.b16 %v788, %v787
        %v806 = vpack.c.b16 %v790, %v789
        %v839 = vunpack.c.l.b16 %v743
        %v840 = vunpack.c.l.b16 %v744
        %v841 = vunpack.c.l.b16 %v745
        %v842 = vunpack.c.l.b16 %v746
        %v843 = vunpack.c.l.b16 %v747
        %v844 = vunpack.c.l.b16 %v748
        %v845 = vunpack.c.l.b16 %v749
        %v846 = vunpack.c.l.b16 %v750
        %v847 = vunpack.c.l.b16 %v751
        %v848 = vunpack.c.l.b16 %v752
        %v849 = vunpack.c.l.b16 %v753
        %v850 = vunpack.c.l.b16 %v754
        %v851 = vunpack.c.l.b16 %v755
        %v852 = vunpack.c.l.b16 %v756
        %v853 = vunpack.c.l.b16 %v757
        %v854 = vunpack.c.l.b16 %v758
        %v855 = vpack.c.b16 %v840, %v839
        %v856 = vpack.c.b16 %v842, %v841
        %v857 = vpack.c.b16 %v844, %v843
        %v858 = vpack.c.b16 %v846, %v845
        %v859 = vpack.c.b16 %v848, %v847
        %v860 = vpack.c.b16 %v850, %v849
        %v861 = vpack.c.b16 %v852, %v851
        %v862 = vpack.c.b16 %v854, %v853
        %871 = vmatprep.subr.bf16.mxu0 0
        %872 = vmatpush1.bf16.msra.mxu0 %v862
        %873 = vmatprep.subr.bf16.mxu0 0
        %874 = vmatpush1.bf16.msra.mxu0 %v861
        %875 = vmatprep.subr.bf16.mxu0 0
        %876 = vmatpush1.bf16.msra.mxu0 %v860
        %877 = vmatprep.subr.bf16.mxu0 0
        %878 = vmatpush1.bf16.msra.mxu0 %v859
        %879 = vmatprep.subr.bf16.mxu0 0
        %880 = vmatpush1.bf16.msra.mxu0 %v858
        %881 = vmatprep.subr.bf16.mxu0 0
        %882 = vmatpush1.bf16.msra.mxu0 %v857
        %883 = vmatprep.subr.bf16.mxu0 0
        %884 = vmatpush1.bf16.msra.mxu0 %v856
        %885 = vmatprep.subr.bf16.mxu0 0
        %886 = vmatpush1.bf16.msra.mxu0 %v855
        %887 = vmatprep.subr.bf16.mxu0 0
        %888 = vmatpush2.bf16.msra.mxu0 0
        %889 = vmatprep.subr.bf16.mxu0 0
        %890 = vmatpush2.bf16.msra.mxu0 0
        %891 = vmatprep.subr.bf16.mxu0 0
        %892 = vmatpush2.bf16.msra.mxu0 0
        %893 = vmatprep.subr.bf16.mxu0 0
        %894 = vmatpush2.bf16.msra.mxu0 0
        %895 = vmatprep.subr.bf16.mxu0 0
        %896 = vmatpush2.bf16.msra.mxu0 0
        %897 = vmatprep.subr.bf16.mxu0 0
        %898 = vmatpush2.bf16.msra.mxu0 0
        %899 = vmatprep.subr.bf16.mxu0 0
        %900 = vmatpush2.bf16.msra.mxu0 0
        %901 = vmatprep.subr.bf16.mxu0 0
        %902 = vmatpush2.bf16.msra.mxu0 0
        %903 = vmatprep.mubr.bf16.mxu0 0
        %904 = vmatmul.mubr.bf16.gmra.mxu0 %v791
        %v905 = vpop.f32.mrf.mxu0
        %v906 = vadd.f32 0.0, %v905
        %v907 = vpop.f32.mrf.mxu0
        %v908 = vpop.f32.mrf.mxu0
        %v909 = vadd.f32 0.0, %v908
        %v910 = vpop.f32.mrf.mxu0
        %911 = vmatprep.mubr.bf16.mxu0 0
        %912 = vmatmul.mubr.bf16.gmra.mxu0 %v792
        %v913 = vpop.f32.mrf.mxu0
        %v914 = vadd.f32 0.0, %v913
        %v915 = vpop.f32.mrf.mxu0
        %v916 = vpop.f32.mrf.mxu0
        %v917 = vadd.f32 0.0, %v916
        %v918 = vpop.f32.mrf.mxu0
        %919 = vmatprep.mubr.bf16.mxu0 0
        %920 = vmatmul.mubr.bf16.gmra.mxu0 %v793
        %v921 = vpop.f32.mrf.mxu0
        %v922 = vadd.f32 0.0, %v921
        %v923 = vpop.f32.mrf.mxu0
        %v924 = vpop.f32.mrf.mxu0
        %v925 = vadd.f32 0.0, %v924
        %v926 = vpop.f32.mrf.mxu0
        %927 = vmatprep.mubr.bf16.mxu0 0
        %928 = vmatmul.mubr.bf16.gmra.mxu0 %v794
        %v929 = vpop.f32.mrf.mxu0
        %v930 = vadd.f32 0.0, %v929
        %v931 = vpop.f32.mrf.mxu0
        %v932 = vpop.f32.mrf.mxu0
        %v933 = vadd.f32 0.0, %v932
        %v934 = vpop.f32.mrf.mxu0
        %935 = vmatprep.mubr.bf16.mxu0 0
        %936 = vmatmul.mubr.bf16.gmra.mxu0 %v795
        %v937 = vpop.f32.mrf.mxu0
        %v938 = vadd.f32 0.0, %v937
        %v939 = vpop.f32.mrf.mxu0
        %v940 = vpop.f32.mrf.mxu0
        %v941 = vadd.f32 0.0, %v940
        %v942 = vpop.f32.mrf.mxu0
        %943 = vmatprep.mubr.bf16.mxu0 0
        %944 = vmatmul.mubr.bf16.gmra.mxu0 %v796
        %v945 = vpop.f32.mrf.mxu0
        %v946 = vadd.f32 0.0, %v945
        %v947 = vpop.f32.mrf.mxu0
        %v948 = vpop.f32.mrf.mxu0
        %v949 = vadd.f32 0.0, %v948
        %v950 = vpop.f32.mrf.mxu0
        %951 = vmatprep.mubr.bf16.mxu0 0
        %952 = vmatmul.mubr.bf16.gmra.mxu0 %v797
        %v953 = vpop.f32.mrf.mxu0
        %v954 = vadd.f32 0.0, %v953
        %v955 = vpop.f32.mrf.mxu0
        %v956 = vpop.f32.mrf.mxu0
        %v957 = vadd.f32 0.0, %v956
        %v958 = vpop.f32.mrf.mxu0
        %959 = vmatprep.mubr.bf16.mxu0 0
        %960 = vmatmul.mubr.bf16.gmra.mxu0 %v798
        %v961 = vpop.f32.mrf.mxu0
        %v962 = vadd.f32 0.0, %v961
        %v963 = vpop.f32.mrf.mxu0
        %v964 = vpop.f32.mrf.mxu0
        %v965 = vadd.f32 0.0, %v964
        %v966 = vpop.f32.mrf.mxu0
        %967 = vmatprep.mubr.bf16.mxu0 0
        %968 = vmatmul.mubr.bf16.gmra.mxu0 %v799
        %v969 = vpop.f32.mrf.mxu0
        %v970 = vadd.f32 0.0, %v969
        %v971 = vpop.f32.mrf.mxu0
        %v972 = vpop.f32.mrf.mxu0
        %v973 = vadd.f32 0.0, %v972
        %v974 = vpop.f32.mrf.mxu0
        %975 = vmatprep.mubr.bf16.mxu0 0
        %976 = vmatmul.mubr.bf16.gmra.mxu0 %v800
        %v977 = vpop.f32.mrf.mxu0
        %v978 = vadd.f32 0.0, %v977
        %v979 = vpop.f32.mrf.mxu0
        %v980 = vpop.f32.mrf.mxu0
        %v981 = vadd.f32 0.0, %v980
        %v982 = vpop.f32.mrf.mxu0
        %983 = vmatprep.mubr.bf16.mxu0 0
        %984 = vmatmul.mubr.bf16.gmra.mxu0 %v801
        %v985 = vpop.f32.mrf.mxu0
        %v986 = vadd.f32 0.0, %v985
        %v987 = vpop.f32.mrf.mxu0
        %v988 = vpop.f32.mrf.mxu0
        %v989 = vadd.f32 0.0, %v988
        %v990 = vpop.f32.mrf.mxu0
        %991 = vmatprep.mubr.bf16.mxu0 0
        %992 = vmatmul.mubr.bf16.gmra.mxu0 %v802
        %v993 = vpop.f32.mrf.mxu0
        %v994 = vadd.f32 0.0, %v993
        %v995 = vpop.f32.mrf.mxu0
        %v996 = vpop.f32.mrf.mxu0
        %v997 = vadd.f32 0.0, %v996
        %v998 = vpop.f32.mrf.mxu0
        %999 = vmatprep.mubr.bf16.mxu0 0
        %1000 = vmatmul.mubr.bf16.gmra.mxu0 %v803
        %v1001 = vpop.f32.mrf.mxu0
        %v1002 = vadd.f32 0.0, %v1001
        %v1003 = vpop.f32.mrf.mxu0
        %v1004 = vpop.f32.mrf.mxu0
        %v1005 = vadd.f32 0.0, %v1004
        %v1006 = vpop.f32.mrf.mxu0
        %1007 = vmatprep.mubr.bf16.mxu0 0
        %1008 = vmatmul.mubr.bf16.gmra.mxu0 %v804
        %v1009 = vpop.f32.mrf.mxu0
        %v1010 = vadd.f32 0.0, %v1009
        %v1011 = vpop.f32.mrf.mxu0
        %v1012 = vpop.f32.mrf.mxu0
        %v1013 = vadd.f32 0.0, %v1012
        %v1014 = vpop.f32.mrf.mxu0
        %1015 = vmatprep.mubr.bf16.mxu0 0
        %1016 = vmatmul.mubr.bf16.gmra.mxu0 %v805
        %v1017 = vpop.f32.mrf.mxu0
        %v1018 = vadd.f32 0.0, %v1017
        %v1019 = vpop.f32.mrf.mxu0
        %v1020 = vpop.f32.mrf.mxu0
        %v1021 = vadd.f32 0.0, %v1020
        %v1022 = vpop.f32.mrf.mxu0
        %1023 = vmatprep.mubr.bf16.mxu0 0
        %1024 = vmatmul.mubr.bf16.gmra.mxu0 %v806
        %v1025 = vpop.f32.mrf.mxu0
        %v1026 = vadd.f32 0.0, %v1025
        %v1027 = vpop.f32.mrf.mxu0
        %v1028 = vpop.f32.mrf.mxu0
        %v1029 = vadd.f32 0.0, %v1028
        %v1030 = vpop.f32.mrf.mxu0
        %1031 = vdwg.mxu0
        %v1064 = vunpack.c.l.b16 %v285
        %v1065 = vunpack.c.l.b16 %v286
        %v1066 = vunpack.c.l.b16 %v288
        %v1067 = vunpack.c.l.b16 %v289
        %v1068 = vunpack.c.l.b16 %v291
        %v1069 = vunpack.c.l.b16 %v292
        %v1070 = vunpack.c.l.b16 %v294
        %v1071 = vunpack.c.l.b16 %v295
        %v1072 = vunpack.c.l.b16 %v297
        %v1073 = vunpack.c.l.b16 %v298
        %v1074 = vunpack.c.l.b16 %v300
        %v1075 = vunpack.c.l.b16 %v301
        %v1076 = vunpack.c.l.b16 %v303
        %v1077 = vunpack.c.l.b16 %v304
        %v1078 = vunpack.c.l.b16 %v306
        %v1079 = vunpack.c.l.b16 %v307
        %v1080 = vunpack.c.l.b16 %v309
        %v1081 = vunpack.c.l.b16 %v310
        %v1082 = vunpack.c.l.b16 %v312
        %v1083 = vunpack.c.l.b16 %v313
        %v1084 = vunpack.c.l.b16 %v315
        %v1085 = vunpack.c.l.b16 %v316
        %v1086 = vunpack.c.l.b16 %v318
        %v1087 = vunpack.c.l.b16 %v319
        %v1088 = vunpack.c.l.b16 %v321
        %v1089 = vunpack.c.l.b16 %v322
        %v1090 = vunpack.c.l.b16 %v324
        %v1091 = vunpack.c.l.b16 %v325
        %v1092 = vunpack.c.l.b16 %v327
        %v1093 = vunpack.c.l.b16 %v328
        %v1094 = vunpack.c.l.b16 %v330
        %v1095 = vunpack.c.l.b16 %v331
        %v1096 = vpack.c.b16 %v1065, %v1064
        %v1097 = vpack.c.b16 %v1067, %v1066
        %v1098 = vpack.c.b16 %v1069, %v1068
        %v1099 = vpack.c.b16 %v1071, %v1070
        %v1100 = vpack.c.b16 %v1073, %v1072
        %v1101 = vpack.c.b16 %v1075, %v1074
        %v1102 = vpack.c.b16 %v1077, %v1076
        %v1103 = vpack.c.b16 %v1079, %v1078
        %v1104 = vpack.c.b16 %v1081, %v1080
        %v1105 = vpack.c.b16 %v1083, %v1082
        %v1106 = vpack.c.b16 %v1085, %v1084
        %v1107 = vpack.c.b16 %v1087, %v1086
        %v1108 = vpack.c.b16 %v1089, %v1088
        %v1109 = vpack.c.b16 %v1091, %v1090
        %v1110 = vpack.c.b16 %v1093, %v1092
        %v1111 = vpack.c.b16 %v1095, %v1094
        %v1144 = vunpack.c.l.b16 %v339
        %v1145 = vunpack.c.l.b16 %v340
        %v1146 = vunpack.c.l.b16 %v341
        %v1147 = vunpack.c.l.b16 %v342
        %v1148 = vunpack.c.l.b16 %v343
        %v1149 = vunpack.c.l.b16 %v344
        %v1150 = vunpack.c.l.b16 %v345
        %v1151 = vunpack.c.l.b16 %v346
        %v1152 = vunpack.c.l.b16 %v347
        %v1153 = vunpack.c.l.b16 %v348
        %v1154 = vunpack.c.l.b16 %v349
        %v1155 = vunpack.c.l.b16 %v350
        %v1156 = vunpack.c.l.b16 %v351
        %v1157 = vunpack.c.l.b16 %v352
        %v1158 = vunpack.c.l.b16 %v353
        %v1159 = vunpack.c.l.b16 %v354
        %v1160 = vpack.c.b16 %v1145, %v1144
        %v1161 = vpack.c.b16 %v1147, %v1146
        %v1162 = vpack.c.b16 %v1149, %v1148
        %v1163 = vpack.c.b16 %v1151, %v1150
        %v1164 = vpack.c.b16 %v1153, %v1152
        %v1165 = vpack.c.b16 %v1155, %v1154
        %v1166 = vpack.c.b16 %v1157, %v1156
        %v1167 = vpack.c.b16 %v1159, %v1158
        %1176 = vmatprep.subr.bf16.mxu0 0
        %1177 = vmatpush1.bf16.msra.mxu0 %v1167
        %1178 = vmatprep.subr.bf16.mxu0 0
        %1179 = vmatpush1.bf16.msra.mxu0 %v1166
        %1180 = vmatprep.subr.bf16.mxu0 0
        %1181 = vmatpush1.bf16.msra.mxu0 %v1165
        %1182 = vmatprep.subr.bf16.mxu0 0
        %1183 = vmatpush1.bf16.msra.mxu0 %v1164
        %1184 = vmatprep.subr.bf16.mxu0 0
        %1185 = vmatpush1.bf16.msra.mxu0 %v1163
        %1186 = vmatprep.subr.bf16.mxu0 0
        %1187 = vmatpush1.bf16.msra.mxu0 %v1162
        %1188 = vmatprep.subr.bf16.mxu0 0
        %1189 = vmatpush1.bf16.msra.mxu0 %v1161
        %1190 = vmatprep.subr.bf16.mxu0 0
        %1191 = vmatpush1.bf16.msra.mxu0 %v1160
        %1192 = vmatprep.subr.bf16.mxu0 0
        %1193 = vmatpush2.bf16.msra.mxu0 0
        %1194 = vmatprep.subr.bf16.mxu0 0
        %1195 = vmatpush2.bf16.msra.mxu0 0
        %1196 = vmatprep.subr.bf16.mxu0 0
        %1197 = vmatpush2.bf16.msra.mxu0 0
        %1198 = vmatprep.subr.bf16.mxu0 0
        %1199 = vmatpush2.bf16.msra.mxu0 0
        %1200 = vmatprep.subr.bf16.mxu0 0
        %1201 = vmatpush2.bf16.msra.mxu0 0
        %1202 = vmatprep.subr.bf16.mxu0 0
        %1203 = vmatpush2.bf16.msra.mxu0 0
        %1204 = vmatprep.subr.bf16.mxu0 0
        %1205 = vmatpush2.bf16.msra.mxu0 0
        %1206 = vmatprep.subr.bf16.mxu0 0
        %1207 = vmatpush2.bf16.msra.mxu0 0
        %1208 = vmatprep.mubr.bf16.mxu0 0
        %1209 = vmatmul.mubr.bf16.gmra.mxu0 %v1096
        %v1210 = vpop.f32.mrf.mxu0
        %v1211 = vadd.f32 %v906, %v1210
        %v1212 = vpop.f32.mrf.mxu0
        %v1213 = vpop.f32.mrf.mxu0
        %v1214 = vadd.f32 %v909, %v1213
        %v1215 = vpop.f32.mrf.mxu0
        %1216 = vmatprep.mubr.bf16.mxu0 0
        %1217 = vmatmul.mubr.bf16.gmra.mxu0 %v1097
        %v1218 = vpop.f32.mrf.mxu0
        %v1219 = vadd.f32 %v914, %v1218
        %v1220 = vpop.f32.mrf.mxu0
        %v1221 = vpop.f32.mrf.mxu0
        %v1222 = vadd.f32 %v917, %v1221
        %v1223 = vpop.f32.mrf.mxu0
        %1224 = vmatprep.mubr.bf16.mxu0 0
        %1225 = vmatmul.mubr.bf16.gmra.mxu0 %v1098
        %v1226 = vpop.f32.mrf.mxu0
        %v1227 = vadd.f32 %v922, %v1226
        %v1228 = vpop.f32.mrf.mxu0
        %v1229 = vpop.f32.mrf.mxu0
        %v1230 = vadd.f32 %v925, %v1229
        %v1231 = vpop.f32.mrf.mxu0
        %1232 = vmatprep.mubr.bf16.mxu0 0
        %1233 = vmatmul.mubr.bf16.gmra.mxu0 %v1099
        %v1234 = vpop.f32.mrf.mxu0
        %v1235 = vadd.f32 %v930, %v1234
        %v1236 = vpop.f32.mrf.mxu0
        %v1237 = vpop.f32.mrf.mxu0
        %v1238 = vadd.f32 %v933, %v1237
        %v1239 = vpop.f32.mrf.mxu0
        %1240 = vmatprep.mubr.bf16.mxu0 0
        %1241 = vmatmul.mubr.bf16.gmra.mxu0 %v1100
        %v1242 = vpop.f32.mrf.mxu0
        %v1243 = vadd.f32 %v938, %v1242
        %v1244 = vpop.f32.mrf.mxu0
        %v1245 = vpop.f32.mrf.mxu0
        %v1246 = vadd.f32 %v941, %v1245
        %v1247 = vpop.f32.mrf.mxu0
        %1248 = vmatprep.mubr.bf16.mxu0 0
        %1249 = vmatmul.mubr.bf16.gmra.mxu0 %v1101
        %v1250 = vpop.f32.mrf.mxu0
        %v1251 = vadd.f32 %v946, %v1250
        %v1252 = vpop.f32.mrf.mxu0
        %v1253 = vpop.f32.mrf.mxu0
        %v1254 = vadd.f32 %v949, %v1253
        %v1255 = vpop.f32.mrf.mxu0
        %1256 = vmatprep.mubr.bf16.mxu0 0
        %1257 = vmatmul.mubr.bf16.gmra.mxu0 %v1102
        %v1258 = vpop.f32.mrf.mxu0
        %v1259 = vadd.f32 %v954, %v1258
        %v1260 = vpop.f32.mrf.mxu0
        %v1261 = vpop.f32.mrf.mxu0
        %v1262 = vadd.f32 %v957, %v1261
        %v1263 = vpop.f32.mrf.mxu0
        %1264 = vmatprep.mubr.bf16.mxu0 0
        %1265 = vmatmul.mubr.bf16.gmra.mxu0 %v1103
        %v1266 = vpop.f32.mrf.mxu0
        %v1267 = vadd.f32 %v962, %v1266
        %v1268 = vpop.f32.mrf.mxu0
        %v1269 = vpop.f32.mrf.mxu0
        %v1270 = vadd.f32 %v965, %v1269
        %v1271 = vpop.f32.mrf.mxu0
        %1272 = vmatprep.mubr.bf16.mxu0 0
        %1273 = vmatmul.mubr.bf16.gmra.mxu0 %v1104
        %v1274 = vpop.f32.mrf.mxu0
        %v1275 = vadd.f32 %v970, %v1274
        %v1276 = vpop.f32.mrf.mxu0
        %v1277 = vpop.f32.mrf.mxu0
        %v1278 = vadd.f32 %v973, %v1277
        %v1279 = vpop.f32.mrf.mxu0
        %1280 = vmatprep.mubr.bf16.mxu0 0
        %1281 = vmatmul.mubr.bf16.gmra.mxu0 %v1105
        %v1282 = vpop.f32.mrf.mxu0
        %v1283 = vadd.f32 %v978, %v1282
        %v1284 = vpop.f32.mrf.mxu0
        %v1285 = vpop.f32.mrf.mxu0
        %v1286 = vadd.f32 %v981, %v1285
        %v1287 = vpop.f32.mrf.mxu0
        %1288 = vmatprep.mubr.bf16.mxu0 0
        %1289 = vmatmul.mubr.bf16.gmra.mxu0 %v1106
        %v1290 = vpop.f32.mrf.mxu0
        %v1291 = vadd.f32 %v986, %v1290
        %v1292 = vpop.f32.mrf.mxu0
        %v1293 = vpop.f32.mrf.mxu0
        %v1294 = vadd.f32 %v989, %v1293
        %v1295 = vpop.f32.mrf.mxu0
        %1296 = vmatprep.mubr.bf16.mxu0 0
        %1297 = vmatmul.mubr.bf16.gmra.mxu0 %v1107
        %v1298 = vpop.f32.mrf.mxu0
        %v1299 = vadd.f32 %v994, %v1298
        %v1300 = vpop.f32.mrf.mxu0
        %v1301 = vpop.f32.mrf.mxu0
        %v1302 = vadd.f32 %v997, %v1301
        %v1303 = vpop.f32.mrf.mxu0
        %1304 = vmatprep.mubr.bf16.mxu0 0
        %1305 = vmatmul.mubr.bf16.gmra.mxu0 %v1108
        %v1306 = vpop.f32.mrf.mxu0
        %v1307 = vadd.f32 %v1002, %v1306
        %v1308 = vpop.f32.mrf.mxu0
        %v1309 = vpop.f32.mrf.mxu0
        %v1310 = vadd.f32 %v1005, %v1309
        %v1311 = vpop.f32.mrf.mxu0
        %1312 = vmatprep.mubr.bf16.mxu0 0
        %1313 = vmatmul.mubr.bf16.gmra.mxu0 %v1109
        %v1314 = vpop.f32.mrf.mxu0
        %v1315 = vadd.f32 %v1010, %v1314
        %v1316 = vpop.f32.mrf.mxu0
        %v1317 = vpop.f32.mrf.mxu0
        %v1318 = vadd.f32 %v1013, %v1317
        %v1319 = vpop.f32.mrf.mxu0
        %1320 = vmatprep.mubr.bf16.mxu0 0
        %1321 = vmatmul.mubr.bf16.gmra.mxu0 %v1110
        %v1322 = vpop.f32.mrf.mxu0
        %v1323 = vadd.f32 %v1018, %v1322
        %v1324 = vpop.f32.mrf.mxu0
        %v1325 = vpop.f32.mrf.mxu0
        %v1326 = vadd.f32 %v1021, %v1325
        %v1327 = vpop.f32.mrf.mxu0
        %1328 = vmatprep.mubr.bf16.mxu0 0
        %1329 = vmatmul.mubr.bf16.gmra.mxu0 %v1111
        %v1330 = vpop.f32.mrf.mxu0
        %v1331 = vadd.f32 %v1026, %v1330
        %v1332 = vpop.f32.mrf.mxu0
        %v1333 = vpop.f32.mrf.mxu0
        %v1334 = vadd.f32 %v1029, %v1333
        %v1335 = vpop.f32.mrf.mxu0
        %1336 = vdwg.mxu0
        %vm1353 = vcmask 1042432
        %vm1354 = vcmask 1046532
        %vm1355 = vmor %vm1353, %vm1354
        %v1356 = vrot.slane %v285, 5
        %v1357 = vrot.slane %v1356, 4
        %v1358 = vrot.slane %v286, 5
        %v1359 = vsel %vm1355, %v1357, %v1358
        %v1360 = vrot.slane %v1358, 4
        %v1361 = vrot.slane %v287, 5
        %v1362 = vsel %vm1355, %v1360, %v1361
        %v1363 = vrot.slane %v288, 5
        %v1364 = vrot.slane %v1363, 4
        %v1365 = vrot.slane %v289, 5
        %v1366 = vsel %vm1355, %v1364, %v1365
        %v1367 = vrot.slane %v1365, 4
        %v1368 = vrot.slane %v290, 5
        %v1369 = vsel %vm1355, %v1367, %v1368
        %v1370 = vrot.slane %v291, 5
        %v1371 = vrot.slane %v1370, 4
        %v1372 = vrot.slane %v292, 5
        %v1373 = vsel %vm1355, %v1371, %v1372
        %v1374 = vrot.slane %v1372, 4
        %v1375 = vrot.slane %v293, 5
        %v1376 = vsel %vm1355, %v1374, %v1375
        %v1377 = vrot.slane %v294, 5
        %v1378 = vrot.slane %v1377, 4
        %v1379 = vrot.slane %v295, 5
        %v1380 = vsel %vm1355, %v1378, %v1379
        %v1381 = vrot.slane %v1379, 4
        %v1382 = vrot.slane %v296, 5
        %v1383 = vsel %vm1355, %v1381, %v1382
        %v1384 = vrot.slane %v297, 5
        %v1385 = vrot.slane %v1384, 4
        %v1386 = vrot.slane %v298, 5
        %v1387 = vsel %vm1355, %v1385, %v1386
        %v1388 = vrot.slane %v1386, 4
        %v1389 = vrot.slane %v299, 5
        %v1390 = vsel %vm1355, %v1388, %v1389
        %v1391 = vrot.slane %v300, 5
        %v1392 = vrot.slane %v1391, 4
        %v1393 = vrot.slane %v301, 5
        %v1394 = vsel %vm1355, %v1392, %v1393
        %v1395 = vrot.slane %v1393, 4
        %v1396 = vrot.slane %v302, 5
        %v1397 = vsel %vm1355, %v1395, %v1396
        %v1398 = vrot.slane %v303, 5
        %v1399 = vrot.slane %v1398, 4
        %v1400 = vrot.slane %v304, 5
        %v1401 = vsel %vm1355, %v1399, %v1400
        %v1402 = vrot.slane %v1400, 4
        %v1403 = vrot.slane %v305, 5
        %v1404 = vsel %vm1355, %v1402, %v1403
        %v1405 = vrot.slane %v306, 5
        %v1406 = vrot.slane %v1405, 4
        %v1407 = vrot.slane %v307, 5
        %v1408 = vsel %vm1355, %v1406, %v1407
        %v1409 = vrot.slane %v1407, 4
        %v1410 = vrot.slane %v308, 5
        %v1411 = vsel %vm1355, %v1409, %v1410
        %v1412 = vrot.slane %v309, 5
        %v1413 = vrot.slane %v1412, 4
        %v1414 = vrot.slane %v310, 5
        %v1415 = vsel %vm1355, %v1413, %v1414
        %v1416 = vrot.slane %v1414, 4
        %v1417 = vrot.slane %v311, 5
        %v1418 = vsel %vm1355, %v1416, %v1417
        %v1419 = vrot.slane %v312, 5
        %v1420 = vrot.slane %v1419, 4
        %v1421 = vrot.slane %v313, 5
        %v1422 = vsel %vm1355, %v1420, %v1421
        %v1423 = vrot.slane %v1421, 4
        %v1424 = vrot.slane %v314, 5
        %v1425 = vsel %vm1355, %v1423, %v1424
        %v1426 = vrot.slane %v315, 5
        %v1427 = vrot.slane %v1426, 4
        %v1428 = vrot.slane %v316, 5
        %v1429 = vsel %vm1355, %v1427, %v1428
        %v1430 = vrot.slane %v1428, 4
        %v1431 = vrot.slane %v317, 5
        %v1432 = vsel %vm1355, %v1430, %v1431
        %v1433 = vrot.slane %v318, 5
        %v1434 = vrot.slane %v1433, 4
        %v1435 = vrot.slane %v319, 5
        %v1436 = vsel %vm1355, %v1434, %v1435
        %v1437 = vrot.slane %v1435, 4
        %v1438 = vrot.slane %v320, 5
        %v1439 = vsel %vm1355, %v1437, %v1438
        %v1440 = vrot.slane %v321, 5
        %v1441 = vrot.slane %v1440, 4
        %v1442 = vrot.slane %v322, 5
        %v1443 = vsel %vm1355, %v1441, %v1442
        %v1444 = vrot.slane %v1442, 4
        %v1445 = vrot.slane %v323, 5
        %v1446 = vsel %vm1355, %v1444, %v1445
        %v1447 = vrot.slane %v324, 5
        %v1448 = vrot.slane %v1447, 4
        %v1449 = vrot.slane %v325, 5
        %v1450 = vsel %vm1355, %v1448, %v1449
        %v1451 = vrot.slane %v1449, 4
        %v1452 = vrot.slane %v326, 5
        %v1453 = vsel %vm1355, %v1451, %v1452
        %v1454 = vrot.slane %v327, 5
        %v1455 = vrot.slane %v1454, 4
        %v1456 = vrot.slane %v328, 5
        %v1457 = vsel %vm1355, %v1455, %v1456
        %v1458 = vrot.slane %v1456, 4
        %v1459 = vrot.slane %v329, 5
        %v1460 = vsel %vm1355, %v1458, %v1459
        %v1461 = vrot.slane %v330, 5
        %v1462 = vrot.slane %v1461, 4
        %v1463 = vrot.slane %v331, 5
        %v1464 = vsel %vm1355, %v1462, %v1463
        %v1465 = vrot.slane %v1463, 4
        %v1466 = vrot.slane %v332, 5
        %v1467 = vsel %vm1355, %v1465, %v1466
        %s1468 = scalar_lea.vmem %s243, 128
        %v1469 = vld [vmem:[%s1468] sm:$0xf]
        %v1470 = vld [vmem:[%s1468 + $0x4] sm:$0xf]
        %v1471 = vld [vmem:[%s1468 + $0x8] sm:$0xf]
        %v1472 = vld [vmem:[%s1468 + $0xc] sm:$0xf]
        %v1473 = vld [vmem:[%s1468 + $0x10] sm:$0xf]
        %v1474 = vld [vmem:[%s1468 + $0x14] sm:$0xf]
        %v1475 = vld [vmem:[%s1468 + $0x18] sm:$0xf]
        %v1476 = vld [vmem:[%s1468 + $0x1c] sm:$0xf]
        %v1477 = vld [vmem:[%s1468 + $0x20] sm:$0xf]
        %v1478 = vld [vmem:[%s1468 + $0x24] sm:$0xf]
        %v1479 = vld [vmem:[%s1468 + $0x28] sm:$0xf]
        %v1480 = vld [vmem:[%s1468 + $0x2c] sm:$0xf]
        %v1481 = vld [vmem:[%s1468 + $0x30] sm:$0xf]
        %v1482 = vld [vmem:[%s1468 + $0x34] sm:$0xf]
        %v1483 = vld [vmem:[%s1468 + $0x38] sm:$0xf]
        %v1484 = vld [vmem:[%s1468 + $0x3c] sm:$0xf]
        %v1485 = vunpack.c.l.b16 %v1359
        %v1486 = vunpack.c.l.b16 %v1362
        %v1487 = vunpack.c.l.b16 %v1366
        %v1488 = vunpack.c.l.b16 %v1369
        %v1489 = vunpack.c.l.b16 %v1373
        %v1490 = vunpack.c.l.b16 %v1376
        %v1491 = vunpack.c.l.b16 %v1380
        %v1492 = vunpack.c.l.b16 %v1383
        %v1493 = vunpack.c.l.b16 %v1387
        %v1494 = vunpack.c.l.b16 %v1390
        %v1495 = vunpack.c.l.b16 %v1394
        %v1496 = vunpack.c.l.b16 %v1397
        %v1497 = vunpack.c.l.b16 %v1401
        %v1498 = vunpack.c.l.b16 %v1404
        %v1499 = vunpack.c.l.b16 %v1408
        %v1500 = vunpack.c.l.b16 %v1411
        %v1501 = vunpack.c.l.b16 %v1415
        %v1502 = vunpack.c.l.b16 %v1418
        %v1503 = vunpack.c.l.b16 %v1422
        %v1504 = vunpack.c.l.b16 %v1425
        %v1505 = vunpack.c.l.b16 %v1429
        %v1506 = vunpack.c.l.b16 %v1432
        %v1507 = vunpack.c.l.b16 %v1436
        %v1508 = vunpack.c.l.b16 %v1439
        %v1509 = vunpack.c.l.b16 %v1443
        %v1510 = vunpack.c.l.b16 %v1446
        %v1511 = vunpack.c.l.b16 %v1450
        %v1512 = vunpack.c.l.b16 %v1453
        %v1513 = vunpack.c.l.b16 %v1457
        %v1514 = vunpack.c.l.b16 %v1460
        %v1515 = vunpack.c.l.b16 %v1464
        %v1516 = vunpack.c.l.b16 %v1467
        %v1517 = vpack.c.b16 %v1486, %v1485
        %v1518 = vpack.c.b16 %v1488, %v1487
        %v1519 = vpack.c.b16 %v1490, %v1489
        %v1520 = vpack.c.b16 %v1492, %v1491
        %v1521 = vpack.c.b16 %v1494, %v1493
        %v1522 = vpack.c.b16 %v1496, %v1495
        %v1523 = vpack.c.b16 %v1498, %v1497
        %v1524 = vpack.c.b16 %v1500, %v1499
        %v1525 = vpack.c.b16 %v1502, %v1501
        %v1526 = vpack.c.b16 %v1504, %v1503
        %v1527 = vpack.c.b16 %v1506, %v1505
        %v1528 = vpack.c.b16 %v1508, %v1507
        %v1529 = vpack.c.b16 %v1510, %v1509
        %v1530 = vpack.c.b16 %v1512, %v1511
        %v1531 = vpack.c.b16 %v1514, %v1513
        %v1532 = vpack.c.b16 %v1516, %v1515
        %v1565 = vunpack.c.l.b16 %v1469
        %v1566 = vunpack.c.l.b16 %v1470
        %v1567 = vunpack.c.l.b16 %v1471
        %v1568 = vunpack.c.l.b16 %v1472
        %v1569 = vunpack.c.l.b16 %v1473
        %v1570 = vunpack.c.l.b16 %v1474
        %v1571 = vunpack.c.l.b16 %v1475
        %v1572 = vunpack.c.l.b16 %v1476
        %v1573 = vunpack.c.l.b16 %v1477
        %v1574 = vunpack.c.l.b16 %v1478
        %v1575 = vunpack.c.l.b16 %v1479
        %v1576 = vunpack.c.l.b16 %v1480
        %v1577 = vunpack.c.l.b16 %v1481
        %v1578 = vunpack.c.l.b16 %v1482
        %v1579 = vunpack.c.l.b16 %v1483
        %v1580 = vunpack.c.l.b16 %v1484
        %v1581 = vpack.c.b16 %v1566, %v1565
        %v1582 = vpack.c.b16 %v1568, %v1567
        %v1583 = vpack.c.b16 %v1570, %v1569
        %v1584 = vpack.c.b16 %v1572, %v1571
        %v1585 = vpack.c.b16 %v1574, %v1573
        %v1586 = vpack.c.b16 %v1576, %v1575
        %v1587 = vpack.c.b16 %v1578, %v1577
        %v1588 = vpack.c.b16 %v1580, %v1579
        %1597 = vmatprep.subr.bf16.mxu0 0
        %1598 = vmatpush1.bf16.msra.mxu0 %v1588
        %1599 = vmatprep.subr.bf16.mxu0 0
        %1600 = vmatpush1.bf16.msra.mxu0 %v1587
        %1601 = vmatprep.subr.bf16.mxu0 0
        %1602 = vmatpush1.bf16.msra.mxu0 %v1586
        %1603 = vmatprep.subr.bf16.mxu0 0
        %1604 = vmatpush1.bf16.msra.mxu0 %v1585
        %1605 = vmatprep.subr.bf16.mxu0 0
        %1606 = vmatpush1.bf16.msra.mxu0 %v1584
        %1607 = vmatprep.subr.bf16.mxu0 0
        %1608 = vmatpush1.bf16.msra.mxu0 %v1583
        %1609 = vmatprep.subr.bf16.mxu0 0
        %1610 = vmatpush1.bf16.msra.mxu0 %v1582
        %1611 = vmatprep.subr.bf16.mxu0 0
        %1612 = vmatpush1.bf16.msra.mxu0 %v1581
        %1613 = vmatprep.subr.bf16.mxu0 0
        %1614 = vmatpush2.bf16.msra.mxu0 0
        %1615 = vmatprep.subr.bf16.mxu0 0
        %1616 = vmatpush2.bf16.msra.mxu0 0
        %1617 = vmatprep.subr.bf16.mxu0 0
        %1618 = vmatpush2.bf16.msra.mxu0 0
        %1619 = vmatprep.subr.bf16.mxu0 0
        %1620 = vmatpush2.bf16.msra.mxu0 0
        %1621 = vmatprep.subr.bf16.mxu0 0
        %1622 = vmatpush2.bf16.msra.mxu0 0
        %1623 = vmatprep.subr.bf16.mxu0 0
        %1624 = vmatpush2.bf16.msra.mxu0 0
        %1625 = vmatprep.subr.bf16.mxu0 0
        %1626 = vmatpush2.bf16.msra.mxu0 0
        %1627 = vmatprep.subr.bf16.mxu0 0
        %1628 = vmatpush2.bf16.msra.mxu0 0
        %1629 = vmatprep.mubr.bf16.mxu0 0
        %1630 = vmatmul.mubr.bf16.gmra.mxu0 %v1517
        %v1631 = vpop.f32.mrf.mxu0
        %v1632 = vadd.f32 0.0, %v1631
        %v1633 = vpop.f32.mrf.mxu0
        %v1634 = vpop.f32.mrf.mxu0
        %v1635 = vadd.f32 0.0, %v1634
        %v1636 = vpop.f32.mrf.mxu0
        %1637 = vmatprep.mubr.bf16.mxu0 0
        %1638 = vmatmul.mubr.bf16.gmra.mxu0 %v1518
        %v1639 = vpop.f32.mrf.mxu0
        %v1640 = vadd.f32 0.0, %v1639
        %v1641 = vpop.f32.mrf.mxu0
        %v1642 = vpop.f32.mrf.mxu0
        %v1643 = vadd.f32 0.0, %v1642
        %v1644 = vpop.f32.mrf.mxu0
        %1645 = vmatprep.mubr.bf16.mxu0 0
        %1646 = vmatmul.mubr.bf16.gmra.mxu0 %v1519
        %v1647 = vpop.f32.mrf.mxu0
        %v1648 = vadd.f32 0.0, %v1647
        %v1649 = vpop.f32.mrf.mxu0
        %v1650 = vpop.f32.mrf.mxu0
        %v1651 = vadd.f32 0.0, %v1650
        %v1652 = vpop.f32.mrf.mxu0
        %1653 = vmatprep.mubr.bf16.mxu0 0
        %1654 = vmatmul.mubr.bf16.gmra.mxu0 %v1520
        %v1655 = vpop.f32.mrf.mxu0
        %v1656 = vadd.f32 0.0, %v1655
        %v1657 = vpop.f32.mrf.mxu0
        %v1658 = vpop.f32.mrf.mxu0
        %v1659 = vadd.f32 0.0, %v1658
        %v1660 = vpop.f32.mrf.mxu0
        %1661 = vmatprep.mubr.bf16.mxu0 0
        %1662 = vmatmul.mubr.bf16.gmra.mxu0 %v1521
        %v1663 = vpop.f32.mrf.mxu0
        %v1664 = vadd.f32 0.0, %v1663
        %v1665 = vpop.f32.mrf.mxu0
        %v1666 = vpop.f32.mrf.mxu0
        %v1667 = vadd.f32 0.0, %v1666
        %v1668 = vpop.f32.mrf.mxu0
        %1669 = vmatprep.mubr.bf16.mxu0 0
        %1670 = vmatmul.mubr.bf16.gmra.mxu0 %v1522
        %v1671 = vpop.f32.mrf.mxu0
        %v1672 = vadd.f32 0.0, %v1671
        %v1673 = vpop.f32.mrf.mxu0
        %v1674 = vpop.f32.mrf.mxu0
        %v1675 = vadd.f32 0.0, %v1674
        %v1676 = vpop.f32.mrf.mxu0
        %1677 = vmatprep.mubr.bf16.mxu0 0
        %1678 = vmatmul.mubr.bf16.gmra.mxu0 %v1523
        %v1679 = vpop.f32.mrf.mxu0
        %v1680 = vadd.f32 0.0, %v1679
        %v1681 = vpop.f32.mrf.mxu0
        %v1682 = vpop.f32.mrf.mxu0
        %v1683 = vadd.f32 0.0, %v1682
        %v1684 = vpop.f32.mrf.mxu0
        %1685 = vmatprep.mubr.bf16.mxu0 0
        %1686 = vmatmul.mubr.bf16.gmra.mxu0 %v1524
        %v1687 = vpop.f32.mrf.mxu0
        %v1688 = vadd.f32 0.0, %v1687
        %v1689 = vpop.f32.mrf.mxu0
        %v1690 = vpop.f32.mrf.mxu0
        %v1691 = vadd.f32 0.0, %v1690
        %v1692 = vpop.f32.mrf.mxu0
        %1693 = vmatprep.mubr.bf16.mxu0 0
        %1694 = vmatmul.mubr.bf16.gmra.mxu0 %v1525
        %v1695 = vpop.f32.mrf.mxu0
        %v1696 = vadd.f32 0.0, %v1695
        %v1697 = vpop.f32.mrf.mxu0
        %v1698 = vpop.f32.mrf.mxu0
        %v1699 = vadd.f32 0.0, %v1698
        %v1700 = vpop.f32.mrf.mxu0
        %1701 = vmatprep.mubr.bf16.mxu0 0
        %1702 = vmatmul.mubr.bf16.gmra.mxu0 %v1526
        %v1703 = vpop.f32.mrf.mxu0
        %v1704 = vadd.f32 0.0, %v1703
        %v1705 = vpop.f32.mrf.mxu0
        %v1706 = vpop.f32.mrf.mxu0
        %v1707 = vadd.f32 0.0, %v1706
        %v1708 = vpop.f32.mrf.mxu0
        %1709 = vmatprep.mubr.bf16.mxu0 0
        %1710 = vmatmul.mubr.bf16.gmra.mxu0 %v1527
        %v1711 = vpop.f32.mrf.mxu0
        %v1712 = vadd.f32 0.0, %v1711
        %v1713 = vpop.f32.mrf.mxu0
        %v1714 = vpop.f32.mrf.mxu0
        %v1715 = vadd.f32 0.0, %v1714
        %v1716 = vpop.f32.mrf.mxu0
        %1717 = vmatprep.mubr.bf16.mxu0 0
        %1718 = vmatmul.mubr.bf16.gmra.mxu0 %v1528
        %v1719 = vpop.f32.mrf.mxu0
        %v1720 = vadd.f32 0.0, %v1719
        %v1721 = vpop.f32.mrf.mxu0
        %v1722 = vpop.f32.mrf.mxu0
        %v1723 = vadd.f32 0.0, %v1722
        %v1724 = vpop.f32.mrf.mxu0
        %1725 = vmatprep.mubr.bf16.mxu0 0
        %1726 = vmatmul.mubr.bf16.gmra.mxu0 %v1529
        %v1727 = vpop.f32.mrf.mxu0
        %v1728 = vadd.f32 0.0, %v1727
        %v1729 = vpop.f32.mrf.mxu0
        %v1730 = vpop.f32.mrf.mxu0
        %v1731 = vadd.f32 0.0, %v1730
        %v1732 = vpop.f32.mrf.mxu0
        %1733 = vmatprep.mubr.bf16.mxu0 0
        %1734 = vmatmul.mubr.bf16.gmra.mxu0 %v1530
        %v1735 = vpop.f32.mrf.mxu0
        %v1736 = vadd.f32 0.0, %v1735
        %v1737 = vpop.f32.mrf.mxu0
        %v1738 = vpop.f32.mrf.mxu0
        %v1739 = vadd.f32 0.0, %v1738
        %v1740 = vpop.f32.mrf.mxu0
        %1741 = vmatprep.mubr.bf16.mxu0 0
        %1742 = vmatmul.mubr.bf16.gmra.mxu0 %v1531
        %v1743 = vpop.f32.mrf.mxu0
        %v1744 = vadd.f32 0.0, %v1743
        %v1745 = vpop.f32.mrf.mxu0
        %v1746 = vpop.f32.mrf.mxu0
        %v1747 = vadd.f32 0.0, %v1746
        %v1748 = vpop.f32.mrf.mxu0
        %1749 = vmatprep.mubr.bf16.mxu0 0
        %1750 = vmatmul.mubr.bf16.gmra.mxu0 %v1532
        %v1751 = vpop.f32.mrf.mxu0
        %v1752 = vadd.f32 0.0, %v1751
        %v1753 = vpop.f32.mrf.mxu0
        %v1754 = vpop.f32.mrf.mxu0
        %v1755 = vadd.f32 0.0, %v1754
        %v1756 = vpop.f32.mrf.mxu0
        %1757 = vdwg.mxu0
        %v1758 = vadd.f32 %v1211, %v1632
        %v1759 = vadd.f32 %v1214, %v1635
        %v1760 = vadd.f32 %v1219, %v1640
        %v1761 = vadd.f32 %v1222, %v1643
        %v1762 = vadd.f32 %v1227, %v1648
        %v1763 = vadd.f32 %v1230, %v1651
        %v1764 = vadd.f32 %v1235, %v1656
        %v1765 = vadd.f32 %v1238, %v1659
        %v1766 = vadd.f32 %v1243, %v1664
        %v1767 = vadd.f32 %v1246, %v1667
        %v1768 = vadd.f32 %v1251, %v1672
        %v1769 = vadd.f32 %v1254, %v1675
        %v1770 = vadd.f32 %v1259, %v1680
        %v1771 = vadd.f32 %v1262, %v1683
        %v1772 = vadd.f32 %v1267, %v1688
        %v1773 = vadd.f32 %v1270, %v1691
        %v1774 = vadd.f32 %v1275, %v1696
        %v1775 = vadd.f32 %v1278, %v1699
        %v1776 = vadd.f32 %v1283, %v1704
        %v1777 = vadd.f32 %v1286, %v1707
        %v1778 = vadd.f32 %v1291, %v1712
        %v1779 = vadd.f32 %v1294, %v1715
        %v1780 = vadd.f32 %v1299, %v1720
        %v1781 = vadd.f32 %v1302, %v1723
        %v1782 = vadd.f32 %v1307, %v1728
        %v1783 = vadd.f32 %v1310, %v1731
        %v1784 = vadd.f32 %v1315, %v1736
        %v1785 = vadd.f32 %v1318, %v1739
        %v1786 = vadd.f32 %v1323, %v1744
        %v1787 = vadd.f32 %v1326, %v1747
        %v1788 = vadd.f32 %v1331, %v1752
        %v1789 = vadd.f32 %v1334, %v1755
        %s1790 = scalar_lea.vmem %s243, 192
        %v1791 = vld [vmem:[%s1790] sm:$0xf]
        %v1792 = vld [vmem:[%s1790 + $0x4] sm:$0xf]
        %v1793 = vld [vmem:[%s1790 + $0x8] sm:$0xf]
        %v1794 = vld [vmem:[%s1790 + $0xc] sm:$0xf]
        %v1795 = vld [vmem:[%s1790 + $0x10] sm:$0xf]
        %v1796 = vld [vmem:[%s1790 + $0x14] sm:$0xf]
        %v1797 = vld [vmem:[%s1790 + $0x18] sm:$0xf]
        %v1798 = vld [vmem:[%s1790 + $0x1c] sm:$0xf]
        %v1799 = vld [vmem:[%s1790 + $0x20] sm:$0xf]
        %v1800 = vld [vmem:[%s1790 + $0x24] sm:$0xf]
        %v1801 = vld [vmem:[%s1790 + $0x28] sm:$0xf]
        %v1802 = vld [vmem:[%s1790 + $0x2c] sm:$0xf]
        %v1803 = vld [vmem:[%s1790 + $0x30] sm:$0xf]
        %v1804 = vld [vmem:[%s1790 + $0x34] sm:$0xf]
        %v1805 = vld [vmem:[%s1790 + $0x38] sm:$0xf]
        %v1806 = vld [vmem:[%s1790 + $0x3c] sm:$0xf]
        %v1809 = vunpack.c.l.b16 %v333
        %v1810 = vunpack.c.l.b16 %v334
        %v1811 = vpack.c.b16 %v1810, %v1809
        %v1829 = vunpack.c.l.b16 %v1791
        %v1830 = vunpack.c.l.b16 %v1792
        %v1831 = vunpack.c.l.b16 %v1793
        %v1832 = vunpack.c.l.b16 %v1794
        %v1833 = vunpack.c.l.b16 %v1795
        %v1834 = vunpack.c.l.b16 %v1796
        %v1835 = vunpack.c.l.b16 %v1797
        %v1836 = vunpack.c.l.b16 %v1798
        %v1837 = vunpack.c.l.b16 %v1799
        %v1838 = vunpack.c.l.b16 %v1800
        %v1839 = vunpack.c.l.b16 %v1801
        %v1840 = vunpack.c.l.b16 %v1802
        %v1841 = vunpack.c.l.b16 %v1803
        %v1842 = vunpack.c.l.b16 %v1804
        %v1843 = vunpack.c.l.b16 %v1805
        %v1844 = vunpack.c.l.b16 %v1806
        %v1845 = vpack.c.b16 %v1830, %v1829
        %v1846 = vpack.c.b16 %v1832, %v1831
        %v1847 = vpack.c.b16 %v1834, %v1833
        %v1848 = vpack.c.b16 %v1836, %v1835
        %v1849 = vpack.c.b16 %v1838, %v1837
        %v1850 = vpack.c.b16 %v1840, %v1839
        %v1851 = vpack.c.b16 %v1842, %v1841
        %v1852 = vpack.c.b16 %v1844, %v1843
        %1861 = vmatprep.subr.bf16.mxu0 0
        %1862 = vmatpush1.bf16.msra.mxu0 %v1852
        %1863 = vmatprep.subr.bf16.mxu0 0
        %1864 = vmatpush1.bf16.msra.mxu0 %v1851
        %1865 = vmatprep.subr.bf16.mxu0 0
        %1866 = vmatpush1.bf16.msra.mxu0 %v1850
        %1867 = vmatprep.subr.bf16.mxu0 0
        %1868 = vmatpush1.bf16.msra.mxu0 %v1849
        %1869 = vmatprep.subr.bf16.mxu0 0
        %1870 = vmatpush1.bf16.msra.mxu0 %v1848
        %1871 = vmatprep.subr.bf16.mxu0 0
        %1872 = vmatpush1.bf16.msra.mxu0 %v1847
        %1873 = vmatprep.subr.bf16.mxu0 0
        %1874 = vmatpush1.bf16.msra.mxu0 %v1846
        %1875 = vmatprep.subr.bf16.mxu0 0
        %1876 = vmatpush1.bf16.msra.mxu0 %v1845
        %1877 = vmatprep.subr.bf16.mxu0 0
        %1878 = vmatpush2.bf16.msra.mxu0 0
        %1879 = vmatprep.subr.bf16.mxu0 0
        %1880 = vmatpush2.bf16.msra.mxu0 0
        %1881 = vmatprep.subr.bf16.mxu0 0
        %1882 = vmatpush2.bf16.msra.mxu0 0
        %1883 = vmatprep.subr.bf16.mxu0 0
        %1884 = vmatpush2.bf16.msra.mxu0 0
        %1885 = vmatprep.subr.bf16.mxu0 0
        %1886 = vmatpush2.bf16.msra.mxu0 0
        %1887 = vmatprep.subr.bf16.mxu0 0
        %1888 = vmatpush2.bf16.msra.mxu0 0
        %1889 = vmatprep.subr.bf16.mxu0 0
        %1890 = vmatpush2.bf16.msra.mxu0 0
        %1891 = vmatprep.subr.bf16.mxu0 0
        %1892 = vmatpush2.bf16.msra.mxu0 0
        %1893 = vmatprep.mubr.bf16.mxu0 0
        %1894 = vmatmul.mubr.bf16.gmra.mxu0 %v1097
        %v1895 = vpop.f32.mrf.mxu0
        %v1896 = vadd.f32 0.0, %v1895
        %v1897 = vpop.f32.mrf.mxu0
        %v1898 = vpop.f32.mrf.mxu0
        %v1899 = vadd.f32 0.0, %v1898
        %v1900 = vpop.f32.mrf.mxu0
        %1901 = vmatprep.mubr.bf16.mxu0 0
        %1902 = vmatmul.mubr.bf16.gmra.mxu0 %v1098
        %v1903 = vpop.f32.mrf.mxu0
        %v1904 = vadd.f32 0.0, %v1903
        %v1905 = vpop.f32.mrf.mxu0
        %v1906 = vpop.f32.mrf.mxu0
        %v1907 = vadd.f32 0.0, %v1906
        %v1908 = vpop.f32.mrf.mxu0
        %1909 = vmatprep.mubr.bf16.mxu0 0
        %1910 = vmatmul.mubr.bf16.gmra.mxu0 %v1099
        %v1911 = vpop.f32.mrf.mxu0
        %v1912 = vadd.f32 0.0, %v1911
        %v1913 = vpop.f32.mrf.mxu0
        %v1914 = vpop.f32.mrf.mxu0
        %v1915 = vadd.f32 0.0, %v1914
        %v1916 = vpop.f32.mrf.mxu0
        %1917 = vmatprep.mubr.bf16.mxu0 0
        %1918 = vmatmul.mubr.bf16.gmra.mxu0 %v1100
        %v1919 = vpop.f32.mrf.mxu0
        %v1920 = vadd.f32 0.0, %v1919
        %v1921 = vpop.f32.mrf.mxu0
        %v1922 = vpop.f32.mrf.mxu0
        %v1923 = vadd.f32 0.0, %v1922
        %v1924 = vpop.f32.mrf.mxu0
        %1925 = vmatprep.mubr.bf16.mxu0 0
        %1926 = vmatmul.mubr.bf16.gmra.mxu0 %v1101
        %v1927 = vpop.f32.mrf.mxu0
        %v1928 = vadd.f32 0.0, %v1927
        %v1929 = vpop.f32.mrf.mxu0
        %v1930 = vpop.f32.mrf.mxu0
        %v1931 = vadd.f32 0.0, %v1930
        %v1932 = vpop.f32.mrf.mxu0
        %1933 = vmatprep.mubr.bf16.mxu0 0
        %1934 = vmatmul.mubr.bf16.gmra.mxu0 %v1102
        %v1935 = vpop.f32.mrf.mxu0
        %v1936 = vadd.f32 0.0, %v1935
        %v1937 = vpop.f32.mrf.mxu0
        %v1938 = vpop.f32.mrf.mxu0
        %v1939 = vadd.f32 0.0, %v1938
        %v1940 = vpop.f32.mrf.mxu0
        %1941 = vmatprep.mubr.bf16.mxu0 0
        %1942 = vmatmul.mubr.bf16.gmra.mxu0 %v1103
        %v1943 = vpop.f32.mrf.mxu0
        %v1944 = vadd.f32 0.0, %v1943
        %v1945 = vpop.f32.mrf.mxu0
        %v1946 = vpop.f32.mrf.mxu0
        %v1947 = vadd.f32 0.0, %v1946
        %v1948 = vpop.f32.mrf.mxu0
        %1949 = vmatprep.mubr.bf16.mxu0 0
        %1950 = vmatmul.mubr.bf16.gmra.mxu0 %v1104
        %v1951 = vpop.f32.mrf.mxu0
        %v1952 = vadd.f32 0.0, %v1951
        %v1953 = vpop.f32.mrf.mxu0
        %v1954 = vpop.f32.mrf.mxu0
        %v1955 = vadd.f32 0.0, %v1954
        %v1956 = vpop.f32.mrf.mxu0
        %1957 = vmatprep.mubr.bf16.mxu0 0
        %1958 = vmatmul.mubr.bf16.gmra.mxu0 %v1105
        %v1959 = vpop.f32.mrf.mxu0
        %v1960 = vadd.f32 0.0, %v1959
        %v1961 = vpop.f32.mrf.mxu0
        %v1962 = vpop.f32.mrf.mxu0
        %v1963 = vadd.f32 0.0, %v1962
        %v1964 = vpop.f32.mrf.mxu0
        %1965 = vmatprep.mubr.bf16.mxu0 0
        %1966 = vmatmul.mubr.bf16.gmra.mxu0 %v1106
        %v1967 = vpop.f32.mrf.mxu0
        %v1968 = vadd.f32 0.0, %v1967
        %v1969 = vpop.f32.mrf.mxu0
        %v1970 = vpop.f32.mrf.mxu0
        %v1971 = vadd.f32 0.0, %v1970
        %v1972 = vpop.f32.mrf.mxu0
        %1973 = vmatprep.mubr.bf16.mxu0 0
        %1974 = vmatmul.mubr.bf16.gmra.mxu0 %v1107
        %v1975 = vpop.f32.mrf.mxu0
        %v1976 = vadd.f32 0.0, %v1975
        %v1977 = vpop.f32.mrf.mxu0
        %v1978 = vpop.f32.mrf.mxu0
        %v1979 = vadd.f32 0.0, %v1978
        %v1980 = vpop.f32.mrf.mxu0
        %1981 = vmatprep.mubr.bf16.mxu0 0
        %1982 = vmatmul.mubr.bf16.gmra.mxu0 %v1108
        %v1983 = vpop.f32.mrf.mxu0
        %v1984 = vadd.f32 0.0, %v1983
        %v1985 = vpop.f32.mrf.mxu0
        %v1986 = vpop.f32.mrf.mxu0
        %v1987 = vadd.f32 0.0, %v1986
        %v1988 = vpop.f32.mrf.mxu0
        %1989 = vmatprep.mubr.bf16.mxu0 0
        %1990 = vmatmul.mubr.bf16.gmra.mxu0 %v1109
        %v1991 = vpop.f32.mrf.mxu0
        %v1992 = vadd.f32 0.0, %v1991
        %v1993 = vpop.f32.mrf.mxu0
        %v1994 = vpop.f32.mrf.mxu0
        %v1995 = vadd.f32 0.0, %v1994
        %v1996 = vpop.f32.mrf.mxu0
        %1997 = vmatprep.mubr.bf16.mxu0 0
        %1998 = vmatmul.mubr.bf16.gmra.mxu0 %v1110
        %v1999 = vpop.f32.mrf.mxu0
        %v2000 = vadd.f32 0.0, %v1999
        %v2001 = vpop.f32.mrf.mxu0
        %v2002 = vpop.f32.mrf.mxu0
        %v2003 = vadd.f32 0.0, %v2002
        %v2004 = vpop.f32.mrf.mxu0
        %2005 = vmatprep.mubr.bf16.mxu0 0
        %2006 = vmatmul.mubr.bf16.gmra.mxu0 %v1111
        %v2007 = vpop.f32.mrf.mxu0
        %v2008 = vadd.f32 0.0, %v2007
        %v2009 = vpop.f32.mrf.mxu0
        %v2010 = vpop.f32.mrf.mxu0
        %v2011 = vadd.f32 0.0, %v2010
        %v2012 = vpop.f32.mrf.mxu0
        %2013 = vmatprep.mubr.bf16.mxu0 0
        %2014 = vmatmul.mubr.bf16.gmra.mxu0 %v1811
        %v2015 = vpop.f32.mrf.mxu0
        %v2016 = vadd.f32 0.0, %v2015
        %v2017 = vpop.f32.mrf.mxu0
        %v2018 = vpop.f32.mrf.mxu0
        %v2019 = vadd.f32 0.0, %v2018
        %v2020 = vpop.f32.mrf.mxu0
        %2021 = vdwg.mxu0
        %v2022 = vadd.f32 %v1758, %v1896
        %v2023 = vadd.f32 %v1759, %v1899
        %v2024 = vadd.f32 %v1760, %v1904
        %v2025 = vadd.f32 %v1761, %v1907
        %v2026 = vadd.f32 %v1762, %v1912
        %v2027 = vadd.f32 %v1763, %v1915
        %v2028 = vadd.f32 %v1764, %v1920
        %v2029 = vadd.f32 %v1765, %v1923
        %v2030 = vadd.f32 %v1766, %v1928
        %v2031 = vadd.f32 %v1767, %v1931
        %v2032 = vadd.f32 %v1768, %v1936
        %v2033 = vadd.f32 %v1769, %v1939
        %v2034 = vadd.f32 %v1770, %v1944
        %v2035 = vadd.f32 %v1771, %v1947
        %v2036 = vadd.f32 %v1772, %v1952
        %v2037 = vadd.f32 %v1773, %v1955
        %v2038 = vadd.f32 %v1774, %v1960
        %v2039 = vadd.f32 %v1775, %v1963
        %v2040 = vadd.f32 %v1776, %v1968
        %v2041 = vadd.f32 %v1777, %v1971
        %v2042 = vadd.f32 %v1778, %v1976
        %v2043 = vadd.f32 %v1779, %v1979
        %v2044 = vadd.f32 %v1780, %v1984
        %v2045 = vadd.f32 %v1781, %v1987
        %v2046 = vadd.f32 %v1782, %v1992
        %v2047 = vadd.f32 %v1783, %v1995
        %v2048 = vadd.f32 %v1784, %v2000
        %v2049 = vadd.f32 %v1785, %v2003
        %v2050 = vadd.f32 %v1786, %v2008
        %v2051 = vadd.f32 %v1787, %v2011
        %v2052 = vadd.f32 %v1788, %v2016
        %v2053 = vadd.f32 %v1789, %v2019
        %v2055 = vshrl.u32 %v333, 16
        %v2057 = vrot.slane %v2055, 4
        %v2058 = vshll.u32 %v333, 16
        %v2060 = vrot.slane %v2058, 5
        %v2061 = vor.u32 %v2057, %v2060
        %v2062 = vrot.slane %v2061, 4
        %v2064 = vshll.u32 %v334, 16
        %v2066 = vrot.slane %v2064, 5
        %v2067 = vsel %vm357, %v2062, %v2066
        %v2068 = vshrl.u32 %v334, 16
        %v2070 = vrot.slane %v2068, 4
        %v2071 = vor.u32 %v2070, %v2066
        %v2072 = vrot.slane %v2071, 4
        %v2074 = vshll.u32 %v335, 16
        %v2076 = vrot.slane %v2074, 5
        %v2077 = vsel %vm357, %v2072, %v2076
        %s2078 = scalar_lea.vmem %s243, 256
        %v2079 = vld [vmem:[%s2078] sm:$0xf]
        %v2080 = vld [vmem:[%s2078 + $0x4] sm:$0xf]
        %v2081 = vld [vmem:[%s2078 + $0x8] sm:$0xf]
        %v2082 = vld [vmem:[%s2078 + $0xc] sm:$0xf]
        %v2083 = vld [vmem:[%s2078 + $0x10] sm:$0xf]
        %v2084 = vld [vmem:[%s2078 + $0x14] sm:$0xf]
        %v2085 = vld [vmem:[%s2078 + $0x18] sm:$0xf]
        %v2086 = vld [vmem:[%s2078 + $0x1c] sm:$0xf]
        %v2087 = vld [vmem:[%s2078 + $0x20] sm:$0xf]
        %v2088 = vld [vmem:[%s2078 + $0x24] sm:$0xf]
        %v2089 = vld [vmem:[%s2078 + $0x28] sm:$0xf]
        %v2090 = vld [vmem:[%s2078 + $0x2c] sm:$0xf]
        %v2091 = vld [vmem:[%s2078 + $0x30] sm:$0xf]
        %v2092 = vld [vmem:[%s2078 + $0x34] sm:$0xf]
        %v2093 = vld [vmem:[%s2078 + $0x38] sm:$0xf]
        %v2094 = vld [vmem:[%s2078 + $0x3c] sm:$0xf]
        %v2095 = vunpack.c.l.b16 %v2067
        %v2096 = vunpack.c.l.b16 %v2077
        %v2097 = vpack.c.b16 %v2096, %v2095
        %v2115 = vunpack.c.l.b16 %v2079
        %v2116 = vunpack.c.l.b16 %v2080
        %v2117 = vunpack.c.l.b16 %v2081
        %v2118 = vunpack.c.l.b16 %v2082
        %v2119 = vunpack.c.l.b16 %v2083
        %v2120 = vunpack.c.l.b16 %v2084
        %v2121 = vunpack.c.l.b16 %v2085
        %v2122 = vunpack.c.l.b16 %v2086
        %v2123 = vunpack.c.l.b16 %v2087
        %v2124 = vunpack.c.l.b16 %v2088
        %v2125 = vunpack.c.l.b16 %v2089
        %v2126 = vunpack.c.l.b16 %v2090
        %v2127 = vunpack.c.l.b16 %v2091
        %v2128 = vunpack.c.l.b16 %v2092
        %v2129 = vunpack.c.l.b16 %v2093
        %v2130 = vunpack.c.l.b16 %v2094
        %v2131 = vpack.c.b16 %v2116, %v2115
        %v2132 = vpack.c.b16 %v2118, %v2117
        %v2133 = vpack.c.b16 %v2120, %v2119
        %v2134 = vpack.c.b16 %v2122, %v2121
        %v2135 = vpack.c.b16 %v2124, %v2123
        %v2136 = vpack.c.b16 %v2126, %v2125
        %v2137 = vpack.c.b16 %v2128, %v2127
        %v2138 = vpack.c.b16 %v2130, %v2129
        %2147 = vmatprep.subr.bf16.mxu0 0
        %2148 = vmatpush1.bf16.msra.mxu0 %v2138
        %2149 = vmatprep.subr.bf16.mxu0 0
        %2150 = vmatpush1.bf16.msra.mxu0 %v2137
        %2151 = vmatprep.subr.bf16.mxu0 0
        %2152 = vmatpush1.bf16.msra.mxu0 %v2136
        %2153 = vmatprep.subr.bf16.mxu0 0
        %2154 = vmatpush1.bf16.msra.mxu0 %v2135
        %2155 = vmatprep.subr.bf16.mxu0 0
        %2156 = vmatpush1.bf16.msra.mxu0 %v2134
        %2157 = vmatprep.subr.bf16.mxu0 0
        %2158 = vmatpush1.bf16.msra.mxu0 %v2133
        %2159 = vmatprep.subr.bf16.mxu0 0
        %2160 = vmatpush1.bf16.msra.mxu0 %v2132
        %2161 = vmatprep.subr.bf16.mxu0 0
        %2162 = vmatpush1.bf16.msra.mxu0 %v2131
        %2163 = vmatprep.subr.bf16.mxu0 0
        %2164 = vmatpush2.bf16.msra.mxu0 0
        %2165 = vmatprep.subr.bf16.mxu0 0
        %2166 = vmatpush2.bf16.msra.mxu0 0
        %2167 = vmatprep.subr.bf16.mxu0 0
        %2168 = vmatpush2.bf16.msra.mxu0 0
        %2169 = vmatprep.subr.bf16.mxu0 0
        %2170 = vmatpush2.bf16.msra.mxu0 0
        %2171 = vmatprep.subr.bf16.mxu0 0
        %2172 = vmatpush2.bf16.msra.mxu0 0
        %2173 = vmatprep.subr.bf16.mxu0 0
        %2174 = vmatpush2.bf16.msra.mxu0 0
        %2175 = vmatprep.subr.bf16.mxu0 0
        %2176 = vmatpush2.bf16.msra.mxu0 0
        %2177 = vmatprep.subr.bf16.mxu0 0
        %2178 = vmatpush2.bf16.msra.mxu0 0
        %2179 = vmatprep.mubr.bf16.mxu0 0
        %2180 = vmatmul.mubr.bf16.gmra.mxu0 %v792
        %v2181 = vpop.f32.mrf.mxu0
        %v2182 = vadd.f32 0.0, %v2181
        %v2183 = vpop.f32.mrf.mxu0
        %v2184 = vpop.f32.mrf.mxu0
        %v2185 = vadd.f32 0.0, %v2184
        %v2186 = vpop.f32.mrf.mxu0
        %2187 = vmatprep.mubr.bf16.mxu0 0
        %2188 = vmatmul.mubr.bf16.gmra.mxu0 %v793
        %v2189 = vpop.f32.mrf.mxu0
        %v2190 = vadd.f32 0.0, %v2189
        %v2191 = vpop.f32.mrf.mxu0
        %v2192 = vpop.f32.mrf.mxu0
        %v2193 = vadd.f32 0.0, %v2192
        %v2194 = vpop.f32.mrf.mxu0
        %2195 = vmatprep.mubr.bf16.mxu0 0
        %2196 = vmatmul.mubr.bf16.gmra.mxu0 %v794
        %v2197 = vpop.f32.mrf.mxu0
        %v2198 = vadd.f32 0.0, %v2197
        %v2199 = vpop.f32.mrf.mxu0
        %v2200 = vpop.f32.mrf.mxu0
        %v2201 = vadd.f32 0.0, %v2200
        %v2202 = vpop.f32.mrf.mxu0
        %2203 = vmatprep.mubr.bf16.mxu0 0
        %2204 = vmatmul.mubr.bf16.gmra.mxu0 %v795
        %v2205 = vpop.f32.mrf.mxu0
        %v2206 = vadd.f32 0.0, %v2205
        %v2207 = vpop.f32.mrf.mxu0
        %v2208 = vpop.f32.mrf.mxu0
        %v2209 = vadd.f32 0.0, %v2208
        %v2210 = vpop.f32.mrf.mxu0
        %2211 = vmatprep.mubr.bf16.mxu0 0
        %2212 = vmatmul.mubr.bf16.gmra.mxu0 %v796
        %v2213 = vpop.f32.mrf.mxu0
        %v2214 = vadd.f32 0.0, %v2213
        %v2215 = vpop.f32.mrf.mxu0
        %v2216 = vpop.f32.mrf.mxu0
        %v2217 = vadd.f32 0.0, %v2216
        %v2218 = vpop.f32.mrf.mxu0
        %2219 = vmatprep.mubr.bf16.mxu0 0
        %2220 = vmatmul.mubr.bf16.gmra.mxu0 %v797
        %v2221 = vpop.f32.mrf.mxu0
        %v2222 = vadd.f32 0.0, %v2221
        %v2223 = vpop.f32.mrf.mxu0
        %v2224 = vpop.f32.mrf.mxu0
        %v2225 = vadd.f32 0.0, %v2224
        %v2226 = vpop.f32.mrf.mxu0
        %2227 = vmatprep.mubr.bf16.mxu0 0
        %2228 = vmatmul.mubr.bf16.gmra.mxu0 %v798
        %v2229 = vpop.f32.mrf.mxu0
        %v2230 = vadd.f32 0.0, %v2229
        %v2231 = vpop.f32.mrf.mxu0
        %v2232 = vpop.f32.mrf.mxu0
        %v2233 = vadd.f32 0.0, %v2232
        %v2234 = vpop.f32.mrf.mxu0
        %2235 = vmatprep.mubr.bf16.mxu0 0
        %2236 = vmatmul.mubr.bf16.gmra.mxu0 %v799
        %v2237 = vpop.f32.mrf.mxu0
        %v2238 = vadd.f32 0.0, %v2237
        %v2239 = vpop.f32.mrf.mxu0
        %v2240 = vpop.f32.mrf.mxu0
        %v2241 = vadd.f32 0.0, %v2240
        %v2242 = vpop.f32.mrf.mxu0
        %2243 = vmatprep.mubr.bf16.mxu0 0
        %2244 = vmatmul.mubr.bf16.gmra.mxu0 %v800
        %v2245 = vpop.f32.mrf.mxu0
        %v2246 = vadd.f32 0.0, %v2245
        %v2247 = vpop.f32.mrf.mxu0
        %v2248 = vpop.f32.mrf.mxu0
        %v2249 = vadd.f32 0.0, %v2248
        %v2250 = vpop.f32.mrf.mxu0
        %2251 = vmatprep.mubr.bf16.mxu0 0
        %2252 = vmatmul.mubr.bf16.gmra.mxu0 %v801
        %v2253 = vpop.f32.mrf.mxu0
        %v2254 = vadd.f32 0.0, %v2253
        %v2255 = vpop.f32.mrf.mxu0
        %v2256 = vpop.f32.mrf.mxu0
        %v2257 = vadd.f32 0.0, %v2256
        %v2258 = vpop.f32.mrf.mxu0
        %2259 = vmatprep.mubr.bf16.mxu0 0
        %2260 = vmatmul.mubr.bf16.gmra.mxu0 %v802
        %v2261 = vpop.f32.mrf.mxu0
        %v2262 = vadd.f32 0.0, %v2261
        %v2263 = vpop.f32.mrf.mxu0
        %v2264 = vpop.f32.mrf.mxu0
        %v2265 = vadd.f32 0.0, %v2264
        %v2266 = vpop.f32.mrf.mxu0
        %2267 = vmatprep.mubr.bf16.mxu0 0
        %2268 = vmatmul.mubr.bf16.gmra.mxu0 %v803
        %v2269 = vpop.f32.mrf.mxu0
        %v2270 = vadd.f32 0.0, %v2269
        %v2271 = vpop.f32.mrf.mxu0
        %v2272 = vpop.f32.mrf.mxu0
        %v2273 = vadd.f32 0.0, %v2272
        %v2274 = vpop.f32.mrf.mxu0
        %2275 = vmatprep.mubr.bf16.mxu0 0
        %2276 = vmatmul.mubr.bf16.gmra.mxu0 %v804
        %v2277 = vpop.f32.mrf.mxu0
        %v2278 = vadd.f32 0.0, %v2277
        %v2279 = vpop.f32.mrf.mxu0
        %v2280 = vpop.f32.mrf.mxu0
        %v2281 = vadd.f32 0.0, %v2280
        %v2282 = vpop.f32.mrf.mxu0
        %2283 = vmatprep.mubr.bf16.mxu0 0
        %2284 = vmatmul.mubr.bf16.gmra.mxu0 %v805
        %v2285 = vpop.f32.mrf.mxu0
        %v2286 = vadd.f32 0.0, %v2285
        %v2287 = vpop.f32.mrf.mxu0
        %v2288 = vpop.f32.mrf.mxu0
        %v2289 = vadd.f32 0.0, %v2288
        %v2290 = vpop.f32.mrf.mxu0
        %2291 = vmatprep.mubr.bf16.mxu0 0
        %2292 = vmatmul.mubr.bf16.gmra.mxu0 %v806
        %v2293 = vpop.f32.mrf.mxu0
        %v2294 = vadd.f32 0.0, %v2293
        %v2295 = vpop.f32.mrf.mxu0
        %v2296 = vpop.f32.mrf.mxu0
        %v2297 = vadd.f32 0.0, %v2296
        %v2298 = vpop.f32.mrf.mxu0
        %2299 = vmatprep.mubr.bf16.mxu0 0
        %2300 = vmatmul.mubr.bf16.gmra.mxu0 %v2097
        %v2301 = vpop.f32.mrf.mxu0
        %v2302 = vadd.f32 0.0, %v2301
        %v2303 = vpop.f32.mrf.mxu0
        %v2304 = vpop.f32.mrf.mxu0
        %v2305 = vadd.f32 0.0, %v2304
        %v2306 = vpop.f32.mrf.mxu0
        %2307 = vdwg.mxu0
        %v2308 = vadd.f32 %v2022, %v2182
        %v2309 = vadd.f32 %v2023, %v2185
        %v2310 = vadd.f32 %v2024, %v2190
        %v2311 = vadd.f32 %v2025, %v2193
        %v2312 = vadd.f32 %v2026, %v2198
        %v2313 = vadd.f32 %v2027, %v2201
        %v2314 = vadd.f32 %v2028, %v2206
        %v2315 = vadd.f32 %v2029, %v2209
        %v2316 = vadd.f32 %v2030, %v2214
        %v2317 = vadd.f32 %v2031, %v2217
        %v2318 = vadd.f32 %v2032, %v2222
        %v2319 = vadd.f32 %v2033, %v2225
        %v2320 = vadd.f32 %v2034, %v2230
        %v2321 = vadd.f32 %v2035, %v2233
        %v2322 = vadd.f32 %v2036, %v2238
        %v2323 = vadd.f32 %v2037, %v2241
        %v2324 = vadd.f32 %v2038, %v2246
        %v2325 = vadd.f32 %v2039, %v2249
        %v2326 = vadd.f32 %v2040, %v2254
        %v2327 = vadd.f32 %v2041, %v2257
        %v2328 = vadd.f32 %v2042, %v2262
        %v2329 = vadd.f32 %v2043, %v2265
        %v2330 = vadd.f32 %v2044, %v2270
        %v2331 = vadd.f32 %v2045, %v2273
        %v2332 = vadd.f32 %v2046, %v2278
        %v2333 = vadd.f32 %v2047, %v2281
        %v2334 = vadd.f32 %v2048, %v2286
        %v2335 = vadd.f32 %v2049, %v2289
        %v2336 = vadd.f32 %v2050, %v2294
        %v2337 = vadd.f32 %v2051, %v2297
        %v2338 = vadd.f32 %v2052, %v2302
        %v2339 = vadd.f32 %v2053, %v2305
        %v2341 = vrot.slane %v333, 5
        %v2342 = vrot.slane %v2341, 4
        %v2343 = vrot.slane %v334, 5
        %v2344 = vsel %vm1355, %v2342, %v2343
        %v2345 = vrot.slane %v2343, 4
        %v2346 = vrot.slane %v335, 5
        %v2347 = vsel %vm1355, %v2345, %v2346
        %s2348 = scalar_lea.vmem %s243, 320
        %v2349 = vld [vmem:[%s2348] sm:$0xf]
        %v2350 = vld [vmem:[%s2348 + $0x4] sm:$0xf]
        %v2351 = vld [vmem:[%s2348 + $0x8] sm:$0xf]
        %v2352 = vld [vmem:[%s2348 + $0xc] sm:$0xf]
        %v2353 = vld [vmem:[%s2348 + $0x10] sm:$0xf]
        %v2354 = vld [vmem:[%s2348 + $0x14] sm:$0xf]
        %v2355 = vld [vmem:[%s2348 + $0x18] sm:$0xf]
        %v2356 = vld [vmem:[%s2348 + $0x1c] sm:$0xf]
        %v2357 = vld [vmem:[%s2348 + $0x20] sm:$0xf]
        %v2358 = vld [vmem:[%s2348 + $0x24] sm:$0xf]
        %v2359 = vld [vmem:[%s2348 + $0x28] sm:$0xf]
        %v2360 = vld [vmem:[%s2348 + $0x2c] sm:$0xf]
        %v2361 = vld [vmem:[%s2348 + $0x30] sm:$0xf]
        %v2362 = vld [vmem:[%s2348 + $0x34] sm:$0xf]
        %v2363 = vld [vmem:[%s2348 + $0x38] sm:$0xf]
        %v2364 = vld [vmem:[%s2348 + $0x3c] sm:$0xf]
        %v2365 = vunpack.c.l.b16 %v2344
        %v2366 = vunpack.c.l.b16 %v2347
        %v2367 = vpack.c.b16 %v2366, %v2365
        %v2385 = vunpack.c.l.b16 %v2349
        %v2386 = vunpack.c.l.b16 %v2350
        %v2387 = vunpack.c.l.b16 %v2351
        %v2388 = vunpack.c.l.b16 %v2352
        %v2389 = vunpack.c.l.b16 %v2353
        %v2390 = vunpack.c.l.b16 %v2354
        %v2391 = vunpack.c.l.b16 %v2355
        %v2392 = vunpack.c.l.b16 %v2356
        %v2393 = vunpack.c.l.b16 %v2357
        %v2394 = vunpack.c.l.b16 %v2358
        %v2395 = vunpack.c.l.b16 %v2359
        %v2396 = vunpack.c.l.b16 %v2360
        %v2397 = vunpack.c.l.b16 %v2361
        %v2398 = vunpack.c.l.b16 %v2362
        %v2399 = vunpack.c.l.b16 %v2363
        %v2400 = vunpack.c.l.b16 %v2364
        %v2401 = vpack.c.b16 %v2386, %v2385
        %v2402 = vpack.c.b16 %v2388, %v2387
        %v2403 = vpack.c.b16 %v2390, %v2389
        %v2404 = vpack.c.b16 %v2392, %v2391
        %v2405 = vpack.c.b16 %v2394, %v2393
        %v2406 = vpack.c.b16 %v2396, %v2395
        %v2407 = vpack.c.b16 %v2398, %v2397
        %v2408 = vpack.c.b16 %v2400, %v2399
        %2417 = vmatprep.subr.bf16.mxu0 0
        %2418 = vmatpush1.bf16.msra.mxu0 %v2408
        %2419 = vmatprep.subr.bf16.mxu0 0
        %2420 = vmatpush1.bf16.msra.mxu0 %v2407
        %2421 = vmatprep.subr.bf16.mxu0 0
        %2422 = vmatpush1.bf16.msra.mxu0 %v2406
        %2423 = vmatprep.subr.bf16.mxu0 0
        %2424 = vmatpush1.bf16.msra.mxu0 %v2405
        %2425 = vmatprep.subr.bf16.mxu0 0
        %2426 = vmatpush1.bf16.msra.mxu0 %v2404
        %2427 = vmatprep.subr.bf16.mxu0 0
        %2428 = vmatpush1.bf16.msra.mxu0 %v2403
        %2429 = vmatprep.subr.bf16.mxu0 0
        %2430 = vmatpush1.bf16.msra.mxu0 %v2402
        %2431 = vmatprep.subr.bf16.mxu0 0
        %2432 = vmatpush1.bf16.msra.mxu0 %v2401
        %2433 = vmatprep.subr.bf16.mxu0 0
        %2434 = vmatpush2.bf16.msra.mxu0 0
        %2435 = vmatprep.subr.bf16.mxu0 0
        %2436 = vmatpush2.bf16.msra.mxu0 0
        %2437 = vmatprep.subr.bf16.mxu0 0
        %2438 = vmatpush2.bf16.msra.mxu0 0
        %2439 = vmatprep.subr.bf16.mxu0 0
        %2440 = vmatpush2.bf16.msra.mxu0 0
        %2441 = vmatprep.subr.bf16.mxu0 0
        %2442 = vmatpush2.bf16.msra.mxu0 0
        %2443 = vmatprep.subr.bf16.mxu0 0
        %2444 = vmatpush2.bf16.msra.mxu0 0
        %2445 = vmatprep.subr.bf16.mxu0 0
        %2446 = vmatpush2.bf16.msra.mxu0 0
        %2447 = vmatprep.subr.bf16.mxu0 0
        %2448 = vmatpush2.bf16.msra.mxu0 0
        %2449 = vmatprep.mubr.bf16.mxu0 0
        %2450 = vmatmul.mubr.bf16.gmra.mxu0 %v1518
        %v2451 = vpop.f32.mrf.mxu0
        %v2452 = vadd.f32 0.0, %v2451
        %v2453 = vpop.f32.mrf.mxu0
        %v2454 = vpop.f32.mrf.mxu0
        %v2455 = vadd.f32 0.0, %v2454
        %v2456 = vpop.f32.mrf.mxu0
        %2457 = vmatprep.mubr.bf16.mxu0 0
        %2458 = vmatmul.mubr.bf16.gmra.mxu0 %v1519
        %v2459 = vpop.f32.mrf.mxu0
        %v2460 = vadd.f32 0.0, %v2459
        %v2461 = vpop.f32.mrf.mxu0
        %v2462 = vpop.f32.mrf.mxu0
        %v2463 = vadd.f32 0.0, %v2462
        %v2464 = vpop.f32.mrf.mxu0
        %2465 = vmatprep.mubr.bf16.mxu0 0
        %2466 = vmatmul.mubr.bf16.gmra.mxu0 %v1520
        %v2467 = vpop.f32.mrf.mxu0
        %v2468 = vadd.f32 0.0, %v2467
        %v2469 = vpop.f32.mrf.mxu0
        %v2470 = vpop.f32.mrf.mxu0
        %v2471 = vadd.f32 0.0, %v2470
        %v2472 = vpop.f32.mrf.mxu0
        %2473 = vmatprep.mubr.bf16.mxu0 0
        %2474 = vmatmul.mubr.bf16.gmra.mxu0 %v1521
        %v2475 = vpop.f32.mrf.mxu0
        %v2476 = vadd.f32 0.0, %v2475
        %v2477 = vpop.f32.mrf.mxu0
        %v2478 = vpop.f32.mrf.mxu0
        %v2479 = vadd.f32 0.0, %v2478
        %v2480 = vpop.f32.mrf.mxu0
        %2481 = vmatprep.mubr.bf16.mxu0 0
        %2482 = vmatmul.mubr.bf16.gmra.mxu0 %v1522
        %v2483 = vpop.f32.mrf.mxu0
        %v2484 = vadd.f32 0.0, %v2483
        %v2485 = vpop.f32.mrf.mxu0
        %v2486 = vpop.f32.mrf.mxu0
        %v2487 = vadd.f32 0.0, %v2486
        %v2488 = vpop.f32.mrf.mxu0
        %2489 = vmatprep.mubr.bf16.mxu0 0
        %2490 = vmatmul.mubr.bf16.gmra.mxu0 %v1523
        %v2491 = vpop.f32.mrf.mxu0
        %v2492 = vadd.f32 0.0, %v2491
        %v2493 = vpop.f32.mrf.mxu0
        %v2494 = vpop.f32.mrf.mxu0
        %v2495 = vadd.f32 0.0, %v2494
        %v2496 = vpop.f32.mrf.mxu0
        %2497 = vmatprep.mubr.bf16.mxu0 0
        %2498 = vmatmul.mubr.bf16.gmra.mxu0 %v1524
        %v2499 = vpop.f32.mrf.mxu0
        %v2500 = vadd.f32 0.0, %v2499
        %v2501 = vpop.f32.mrf.mxu0
        %v2502 = vpop.f32.mrf.mxu0
        %v2503 = vadd.f32 0.0, %v2502
        %v2504 = vpop.f32.mrf.mxu0
        %2505 = vmatprep.mubr.bf16.mxu0 0
        %2506 = vmatmul.mubr.bf16.gmra.mxu0 %v1525
        %v2507 = vpop.f32.mrf.mxu0
        %v2508 = vadd.f32 0.0, %v2507
        %v2509 = vpop.f32.mrf.mxu0
        %v2510 = vpop.f32.mrf.mxu0
        %v2511 = vadd.f32 0.0, %v2510
        %v2512 = vpop.f32.mrf.mxu0
        %2513 = vmatprep.mubr.bf16.mxu0 0
        %2514 = vmatmul.mubr.bf16.gmra.mxu0 %v1526
        %v2515 = vpop.f32.mrf.mxu0
        %v2516 = vadd.f32 0.0, %v2515
        %v2517 = vpop.f32.mrf.mxu0
        %v2518 = vpop.f32.mrf.mxu0
        %v2519 = vadd.f32 0.0, %v2518
        %v2520 = vpop.f32.mrf.mxu0
        %2521 = vmatprep.mubr.bf16.mxu0 0
        %2522 = vmatmul.mubr.bf16.gmra.mxu0 %v1527
        %v2523 = vpop.f32.mrf.mxu0
        %v2524 = vadd.f32 0.0, %v2523
        %v2525 = vpop.f32.mrf.mxu0
        %v2526 = vpop.f32.mrf.mxu0
        %v2527 = vadd.f32 0.0, %v2526
        %v2528 = vpop.f32.mrf.mxu0
        %2529 = vmatprep.mubr.bf16.mxu0 0
        %2530 = vmatmul.mubr.bf16.gmra.mxu0 %v1528
        %v2531 = vpop.f32.mrf.mxu0
        %v2532 = vadd.f32 0.0, %v2531
        %v2533 = vpop.f32.mrf.mxu0
        %v2534 = vpop.f32.mrf.mxu0
        %v2535 = vadd.f32 0.0, %v2534
        %v2536 = vpop.f32.mrf.mxu0
        %2537 = vmatprep.mubr.bf16.mxu0 0
        %2538 = vmatmul.mubr.bf16.gmra.mxu0 %v1529
        %v2539 = vpop.f32.mrf.mxu0
        %v2540 = vadd.f32 0.0, %v2539
        %v2541 = vpop.f32.mrf.mxu0
        %v2542 = vpop.f32.mrf.mxu0
        %v2543 = vadd.f32 0.0, %v2542
        %v2544 = vpop.f32.mrf.mxu0
        %2545 = vmatprep.mubr.bf16.mxu0 0
        %2546 = vmatmul.mubr.bf16.gmra.mxu0 %v1530
        %v2547 = vpop.f32.mrf.mxu0
        %v2548 = vadd.f32 0.0, %v2547
        %v2549 = vpop.f32.mrf.mxu0
        %v2550 = vpop.f32.mrf.mxu0
        %v2551 = vadd.f32 0.0, %v2550
        %v2552 = vpop.f32.mrf.mxu0
        %2553 = vmatprep.mubr.bf16.mxu0 0
        %2554 = vmatmul.mubr.bf16.gmra.mxu0 %v1531
        %v2555 = vpop.f32.mrf.mxu0
        %v2556 = vadd.f32 0.0, %v2555
        %v2557 = vpop.f32.mrf.mxu0
        %v2558 = vpop.f32.mrf.mxu0
        %v2559 = vadd.f32 0.0, %v2558
        %v2560 = vpop.f32.mrf.mxu0
        %2561 = vmatprep.mubr.bf16.mxu0 0
        %2562 = vmatmul.mubr.bf16.gmra.mxu0 %v1532
        %v2563 = vpop.f32.mrf.mxu0
        %v2564 = vadd.f32 0.0, %v2563
        %v2565 = vpop.f32.mrf.mxu0
        %v2566 = vpop.f32.mrf.mxu0
        %v2567 = vadd.f32 0.0, %v2566
        %v2568 = vpop.f32.mrf.mxu0
        %2569 = vmatprep.mubr.bf16.mxu0 0
        %2570 = vmatmul.mubr.bf16.gmra.mxu0 %v2367
        %v2571 = vpop.f32.mrf.mxu0
        %v2572 = vadd.f32 0.0, %v2571
        %v2573 = vpop.f32.mrf.mxu0
        %v2574 = vpop.f32.mrf.mxu0
        %v2575 = vadd.f32 0.0, %v2574
        %v2576 = vpop.f32.mrf.mxu0
        %2577 = vdwg.mxu0
        %v2578 = vadd.f32 %v2308, %v2452
        %v2579 = vadd.f32 %v2309, %v2455
        %v2580 = vadd.f32 %v2310, %v2460
        %v2581 = vadd.f32 %v2311, %v2463
        %v2582 = vadd.f32 %v2312, %v2468
        %v2583 = vadd.f32 %v2313, %v2471
        %v2584 = vadd.f32 %v2314, %v2476
        %v2585 = vadd.f32 %v2315, %v2479
        %v2586 = vadd.f32 %v2316, %v2484
        %v2587 = vadd.f32 %v2317, %v2487
        %v2588 = vadd.f32 %v2318, %v2492
        %v2589 = vadd.f32 %v2319, %v2495
        %v2590 = vadd.f32 %v2320, %v2500
        %v2591 = vadd.f32 %v2321, %v2503
        %v2592 = vadd.f32 %v2322, %v2508
        %v2593 = vadd.f32 %v2323, %v2511
        %v2594 = vadd.f32 %v2324, %v2516
        %v2595 = vadd.f32 %v2325, %v2519
        %v2596 = vadd.f32 %v2326, %v2524
        %v2597 = vadd.f32 %v2327, %v2527
        %v2598 = vadd.f32 %v2328, %v2532
        %v2599 = vadd.f32 %v2329, %v2535
        %v2600 = vadd.f32 %v2330, %v2540
        %v2601 = vadd.f32 %v2331, %v2543
        %v2602 = vadd.f32 %v2332, %v2548
        %v2603 = vadd.f32 %v2333, %v2551
        %v2604 = vadd.f32 %v2334, %v2556
        %v2605 = vadd.f32 %v2335, %v2559
        %v2606 = vadd.f32 %v2336, %v2564
        %v2607 = vadd.f32 %v2337, %v2567
        %v2608 = vadd.f32 %v2338, %v2572
        %v2609 = vadd.f32 %v2339, %v2575
        %s2610 = scalar_lea.vmem %s243, 384
        %v2611 = vld [vmem:[%s2610] sm:$0xf]
        %v2612 = vld [vmem:[%s2610 + $0x4] sm:$0xf]
        %v2613 = vld [vmem:[%s2610 + $0x8] sm:$0xf]
        %v2614 = vld [vmem:[%s2610 + $0xc] sm:$0xf]
        %v2615 = vld [vmem:[%s2610 + $0x10] sm:$0xf]
        %v2616 = vld [vmem:[%s2610 + $0x14] sm:$0xf]
        %v2617 = vld [vmem:[%s2610 + $0x18] sm:$0xf]
        %v2618 = vld [vmem:[%s2610 + $0x1c] sm:$0xf]
        %v2619 = vld [vmem:[%s2610 + $0x20] sm:$0xf]
        %v2620 = vld [vmem:[%s2610 + $0x24] sm:$0xf]
        %v2621 = vld [vmem:[%s2610 + $0x28] sm:$0xf]
        %v2622 = vld [vmem:[%s2610 + $0x2c] sm:$0xf]
        %v2623 = vld [vmem:[%s2610 + $0x30] sm:$0xf]
        %v2624 = vld [vmem:[%s2610 + $0x34] sm:$0xf]
        %v2625 = vld [vmem:[%s2610 + $0x38] sm:$0xf]
        %v2626 = vld [vmem:[%s2610 + $0x3c] sm:$0xf]
        %v2629 = vunpack.c.l.b16 %v336
        %v2630 = vunpack.c.l.b16 %v337
        %v2631 = vpack.c.b16 %v2630, %v2629
        %v2649 = vunpack.c.l.b16 %v2611
        %v2650 = vunpack.c.l.b16 %v2612
        %v2651 = vunpack.c.l.b16 %v2613
        %v2652 = vunpack.c.l.b16 %v2614
        %v2653 = vunpack.c.l.b16 %v2615
        %v2654 = vunpack.c.l.b16 %v2616
        %v2655 = vunpack.c.l.b16 %v2617
        %v2656 = vunpack.c.l.b16 %v2618
        %v2657 = vunpack.c.l.b16 %v2619
        %v2658 = vunpack.c.l.b16 %v2620
        %v2659 = vunpack.c.l.b16 %v2621
        %v2660 = vunpack.c.l.b16 %v2622
        %v2661 = vunpack.c.l.b16 %v2623
        %v2662 = vunpack.c.l.b16 %v2624
        %v2663 = vunpack.c.l.b16 %v2625
        %v2664 = vunpack.c.l.b16 %v2626
        %v2665 = vpack.c.b16 %v2650, %v2649
        %v2666 = vpack.c.b16 %v2652, %v2651
        %v2667 = vpack.c.b16 %v2654, %v2653
        %v2668 = vpack.c.b16 %v2656, %v2655
        %v2669 = vpack.c.b16 %v2658, %v2657
        %v2670 = vpack.c.b16 %v2660, %v2659
        %v2671 = vpack.c.b16 %v2662, %v2661
        %v2672 = vpack.c.b16 %v2664, %v2663
        %2681 = vmatprep.subr.bf16.mxu0 0
        %2682 = vmatpush1.bf16.msra.mxu0 %v2672
        %2683 = vmatprep.subr.bf16.mxu0 0
        %2684 = vmatpush1.bf16.msra.mxu0 %v2671
        %2685 = vmatprep.subr.bf16.mxu0 0
        %2686 = vmatpush1.bf16.msra.mxu0 %v2670
        %2687 = vmatprep.subr.bf16.mxu0 0
        %2688 = vmatpush1.bf16.msra.mxu0 %v2669
        %2689 = vmatprep.subr.bf16.mxu0 0
        %2690 = vmatpush1.bf16.msra.mxu0 %v2668
        %2691 = vmatprep.subr.bf16.mxu0 0
        %2692 = vmatpush1.bf16.msra.mxu0 %v2667
        %2693 = vmatprep.subr.bf16.mxu0 0
        %2694 = vmatpush1.bf16.msra.mxu0 %v2666
        %2695 = vmatprep.subr.bf16.mxu0 0
        %2696 = vmatpush1.bf16.msra.mxu0 %v2665
        %2697 = vmatprep.subr.bf16.mxu0 0
        %2698 = vmatpush2.bf16.msra.mxu0 0
        %2699 = vmatprep.subr.bf16.mxu0 0
        %2700 = vmatpush2.bf16.msra.mxu0 0
        %2701 = vmatprep.subr.bf16.mxu0 0
        %2702 = vmatpush2.bf16.msra.mxu0 0
        %2703 = vmatprep.subr.bf16.mxu0 0
        %2704 = vmatpush2.bf16.msra.mxu0 0
        %2705 = vmatprep.subr.bf16.mxu0 0
        %2706 = vmatpush2.bf16.msra.mxu0 0
        %2707 = vmatprep.subr.bf16.mxu0 0
        %2708 = vmatpush2.bf16.msra.mxu0 0
        %2709 = vmatprep.subr.bf16.mxu0 0
        %2710 = vmatpush2.bf16.msra.mxu0 0
        %2711 = vmatprep.subr.bf16.mxu0 0
        %2712 = vmatpush2.bf16.msra.mxu0 0
        %2713 = vmatprep.mubr.bf16.mxu0 0
        %2714 = vmatmul.mubr.bf16.gmra.mxu0 %v1098
        %v2715 = vpop.f32.mrf.mxu0
        %v2716 = vadd.f32 0.0, %v2715
        %v2717 = vpop.f32.mrf.mxu0
        %v2718 = vpop.f32.mrf.mxu0
        %v2719 = vadd.f32 0.0, %v2718
        %v2720 = vpop.f32.mrf.mxu0
        %2721 = vmatprep.mubr.bf16.mxu0 0
        %2722 = vmatmul.mubr.bf16.gmra.mxu0 %v1099
        %v2723 = vpop.f32.mrf.mxu0
        %v2724 = vadd.f32 0.0, %v2723
        %v2725 = vpop.f32.mrf.mxu0
        %v2726 = vpop.f32.mrf.mxu0
        %v2727 = vadd.f32 0.0, %v2726
        %v2728 = vpop.f32.mrf.mxu0
        %2729 = vmatprep.mubr.bf16.mxu0 0
        %2730 = vmatmul.mubr.bf16.gmra.mxu0 %v1100
        %v2731 = vpop.f32.mrf.mxu0
        %v2732 = vadd.f32 0.0, %v2731
        %v2733 = vpop.f32.mrf.mxu0
        %v2734 = vpop.f32.mrf.mxu0
        %v2735 = vadd.f32 0.0, %v2734
        %v2736 = vpop.f32.mrf.mxu0
        %2737 = vmatprep.mubr.bf16.mxu0 0
        %2738 = vmatmul.mubr.bf16.gmra.mxu0 %v1101
        %v2739 = vpop.f32.mrf.mxu0
        %v2740 = vadd.f32 0.0, %v2739
        %v2741 = vpop.f32.mrf.mxu0
        %v2742 = vpop.f32.mrf.mxu0
        %v2743 = vadd.f32 0.0, %v2742
        %v2744 = vpop.f32.mrf.mxu0
        %2745 = vmatprep.mubr.bf16.mxu0 0
        %2746 = vmatmul.mubr.bf16.gmra.mxu0 %v1102
        %v2747 = vpop.f32.mrf.mxu0
        %v2748 = vadd.f32 0.0, %v2747
        %v2749 = vpop.f32.mrf.mxu0
        %v2750 = vpop.f32.mrf.mxu0
        %v2751 = vadd.f32 0.0, %v2750
        %v2752 = vpop.f32.mrf.mxu0
        %2753 = vmatprep.mubr.bf16.mxu0 0
        %2754 = vmatmul.mubr.bf16.gmra.mxu0 %v1103
        %v2755 = vpop.f32.mrf.mxu0
        %v2756 = vadd.f32 0.0, %v2755
        %v2757 = vpop.f32.mrf.mxu0
        %v2758 = vpop.f32.mrf.mxu0
        %v2759 = vadd.f32 0.0, %v2758
        %v2760 = vpop.f32.mrf.mxu0
        %2761 = vmatprep.mubr.bf16.mxu0 0
        %2762 = vmatmul.mubr.bf16.gmra.mxu0 %v1104
        %v2763 = vpop.f32.mrf.mxu0
        %v2764 = vadd.f32 0.0, %v2763
        %v2765 = vpop.f32.mrf.mxu0
        %v2766 = vpop.f32.mrf.mxu0
        %v2767 = vadd.f32 0.0, %v2766
        %v2768 = vpop.f32.mrf.mxu0
        %2769 = vmatprep.mubr.bf16.mxu0 0
        %2770 = vmatmul.mubr.bf16.gmra.mxu0 %v1105
        %v2771 = vpop.f32.mrf.mxu0
        %v2772 = vadd.f32 0.0, %v2771
        %v2773 = vpop.f32.mrf.mxu0
        %v2774 = vpop.f32.mrf.mxu0
        %v2775 = vadd.f32 0.0, %v2774
        %v2776 = vpop.f32.mrf.mxu0
        %2777 = vmatprep.mubr.bf16.mxu0 0
        %2778 = vmatmul.mubr.bf16.gmra.mxu0 %v1106
        %v2779 = vpop.f32.mrf.mxu0
        %v2780 = vadd.f32 0.0, %v2779
        %v2781 = vpop.f32.mrf.mxu0
        %v2782 = vpop.f32.mrf.mxu0
        %v2783 = vadd.f32 0.0, %v2782
        %v2784 = vpop.f32.mrf.mxu0
        %2785 = vmatprep.mubr.bf16.mxu0 0
        %2786 = vmatmul.mubr.bf16.gmra.mxu0 %v1107
        %v2787 = vpop.f32.mrf.mxu0
        %v2788 = vadd.f32 0.0, %v2787
        %v2789 = vpop.f32.mrf.mxu0
        %v2790 = vpop.f32.mrf.mxu0
        %v2791 = vadd.f32 0.0, %v2790
        %v2792 = vpop.f32.mrf.mxu0
        %2793 = vmatprep.mubr.bf16.mxu0 0
        %2794 = vmatmul.mubr.bf16.gmra.mxu0 %v1108
        %v2795 = vpop.f32.mrf.mxu0
        %v2796 = vadd.f32 0.0, %v2795
        %v2797 = vpop.f32.mrf.mxu0
        %v2798 = vpop.f32.mrf.mxu0
        %v2799 = vadd.f32 0.0, %v2798
        %v2800 = vpop.f32.mrf.mxu0
        %2801 = vmatprep.mubr.bf16.mxu0 0
        %2802 = vmatmul.mubr.bf16.gmra.mxu0 %v1109
        %v2803 = vpop.f32.mrf.mxu0
        %v2804 = vadd.f32 0.0, %v2803
        %v2805 = vpop.f32.mrf.mxu0
        %v2806 = vpop.f32.mrf.mxu0
        %v2807 = vadd.f32 0.0, %v2806
        %v2808 = vpop.f32.mrf.mxu0
        %2809 = vmatprep.mubr.bf16.mxu0 0
        %2810 = vmatmul.mubr.bf16.gmra.mxu0 %v1110
        %v2811 = vpop.f32.mrf.mxu0
        %v2812 = vadd.f32 0.0, %v2811
        %v2813 = vpop.f32.mrf.mxu0
        %v2814 = vpop.f32.mrf.mxu0
        %v2815 = vadd.f32 0.0, %v2814
        %v2816 = vpop.f32.mrf.mxu0
        %2817 = vmatprep.mubr.bf16.mxu0 0
        %2818 = vmatmul.mubr.bf16.gmra.mxu0 %v1111
        %v2819 = vpop.f32.mrf.mxu0
        %v2820 = vadd.f32 0.0, %v2819
        %v2821 = vpop.f32.mrf.mxu0
        %v2822 = vpop.f32.mrf.mxu0
        %v2823 = vadd.f32 0.0, %v2822
        %v2824 = vpop.f32.mrf.mxu0
        %2825 = vmatprep.mubr.bf16.mxu0 0
        %2826 = vmatmul.mubr.bf16.gmra.mxu0 %v1811
        %v2827 = vpop.f32.mrf.mxu0
        %v2828 = vadd.f32 0.0, %v2827
        %v2829 = vpop.f32.mrf.mxu0
        %v2830 = vpop.f32.mrf.mxu0
        %v2831 = vadd.f32 0.0, %v2830
        %v2832 = vpop.f32.mrf.mxu0
        %2833 = vmatprep.mubr.bf16.mxu0 0
        %2834 = vmatmul.mubr.bf16.gmra.mxu0 %v2631
        %v2835 = vpop.f32.mrf.mxu0
        %v2836 = vadd.f32 0.0, %v2835
        %v2837 = vpop.f32.mrf.mxu0
        %v2838 = vpop.f32.mrf.mxu0
        %v2839 = vadd.f32 0.0, %v2838
        %v2840 = vpop.f32.mrf.mxu0
        %2841 = vdwg.mxu0
        %v2842 = vadd.f32 %v2578, %v2716
        %v2843 = vadd.f32 %v2579, %v2719
        %v2844 = vadd.f32 %v2580, %v2724
        %v2845 = vadd.f32 %v2581, %v2727
        %v2846 = vadd.f32 %v2582, %v2732
        %v2847 = vadd.f32 %v2583, %v2735
        %v2848 = vadd.f32 %v2584, %v2740
        %v2849 = vadd.f32 %v2585, %v2743
        %v2850 = vadd.f32 %v2586, %v2748
        %v2851 = vadd.f32 %v2587, %v2751
        %v2852 = vadd.f32 %v2588, %v2756
        %v2853 = vadd.f32 %v2589, %v2759
        %v2854 = vadd.f32 %v2590, %v2764
        %v2855 = vadd.f32 %v2591, %v2767
        %v2856 = vadd.f32 %v2592, %v2772
        %v2857 = vadd.f32 %v2593, %v2775
        %v2858 = vadd.f32 %v2594, %v2780
        %v2859 = vadd.f32 %v2595, %v2783
        %v2860 = vadd.f32 %v2596, %v2788
        %v2861 = vadd.f32 %v2597, %v2791
        %v2862 = vadd.f32 %v2598, %v2796
        %v2863 = vadd.f32 %v2599, %v2799
        %v2864 = vadd.f32 %v2600, %v2804
        %v2865 = vadd.f32 %v2601, %v2807
        %v2866 = vadd.f32 %v2602, %v2812
        %v2867 = vadd.f32 %v2603, %v2815
        %v2868 = vadd.f32 %v2604, %v2820
        %v2869 = vadd.f32 %v2605, %v2823
        %v2870 = vadd.f32 %v2606, %v2828
        %v2871 = vadd.f32 %v2607, %v2831
        %v2872 = vadd.f32 %v2608, %v2836
        %v2873 = vadd.f32 %v2609, %v2839
        %v2875 = vshrl.u32 %v336, 16
        %v2877 = vrot.slane %v2875, 4
        %v2878 = vshll.u32 %v336, 16
        %v2880 = vrot.slane %v2878, 5
        %v2881 = vor.u32 %v2877, %v2880
        %v2882 = vrot.slane %v2881, 4
        %v2884 = vshll.u32 %v337, 16
        %v2886 = vrot.slane %v2884, 5
        %v2887 = vsel %vm357, %v2882, %v2886
        %v2888 = vshrl.u32 %v337, 16
        %v2890 = vrot.slane %v2888, 4
        %v2891 = vor.u32 %v2890, %v2886
        %v2892 = vrot.slane %v2891, 4
        %v2894 = vshll.u32 %v338, 16
        %v2896 = vrot.slane %v2894, 5
        %v2897 = vsel %vm357, %v2892, %v2896
        %s2898 = scalar_lea.vmem %s243, 448
        %v2899 = vld [vmem:[%s2898] sm:$0xf]
        %v2900 = vld [vmem:[%s2898 + $0x4] sm:$0xf]
        %v2901 = vld [vmem:[%s2898 + $0x8] sm:$0xf]
        %v2902 = vld [vmem:[%s2898 + $0xc] sm:$0xf]
        %v2903 = vld [vmem:[%s2898 + $0x10] sm:$0xf]
        %v2904 = vld [vmem:[%s2898 + $0x14] sm:$0xf]
        %v2905 = vld [vmem:[%s2898 + $0x18] sm:$0xf]
        %v2906 = vld [vmem:[%s2898 + $0x1c] sm:$0xf]
        %v2907 = vld [vmem:[%s2898 + $0x20] sm:$0xf]
        %v2908 = vld [vmem:[%s2898 + $0x24] sm:$0xf]
        %v2909 = vld [vmem:[%s2898 + $0x28] sm:$0xf]
        %v2910 = vld [vmem:[%s2898 + $0x2c] sm:$0xf]
        %v2911 = vld [vmem:[%s2898 + $0x30] sm:$0xf]
        %v2912 = vld [vmem:[%s2898 + $0x34] sm:$0xf]
        %v2913 = vld [vmem:[%s2898 + $0x38] sm:$0xf]
        %v2914 = vld [vmem:[%s2898 + $0x3c] sm:$0xf]
        %v2915 = vunpack.c.l.b16 %v2887
        %v2916 = vunpack.c.l.b16 %v2897
        %v2917 = vpack.c.b16 %v2916, %v2915
        %v2935 = vunpack.c.l.b16 %v2899
        %v2936 = vunpack.c.l.b16 %v2900
        %v2937 = vunpack.c.l.b16 %v2901
        %v2938 = vunpack.c.l.b16 %v2902
        %v2939 = vunpack.c.l.b16 %v2903
        %v2940 = vunpack.c.l.b16 %v2904
        %v2941 = vunpack.c.l.b16 %v2905
        %v2942 = vunpack.c.l.b16 %v2906
        %v2943 = vunpack.c.l.b16 %v2907
        %v2944 = vunpack.c.l.b16 %v2908
        %v2945 = vunpack.c.l.b16 %v2909
        %v2946 = vunpack.c.l.b16 %v2910
        %v2947 = vunpack.c.l.b16 %v2911
        %v2948 = vunpack.c.l.b16 %v2912
        %v2949 = vunpack.c.l.b16 %v2913
        %v2950 = vunpack.c.l.b16 %v2914
        %v2951 = vpack.c.b16 %v2936, %v2935
        %v2952 = vpack.c.b16 %v2938, %v2937
        %v2953 = vpack.c.b16 %v2940, %v2939
        %v2954 = vpack.c.b16 %v2942, %v2941
        %v2955 = vpack.c.b16 %v2944, %v2943
        %v2956 = vpack.c.b16 %v2946, %v2945
        %v2957 = vpack.c.b16 %v2948, %v2947
        %v2958 = vpack.c.b16 %v2950, %v2949
        %2967 = vmatprep.subr.bf16.mxu0 0
        %2968 = vmatpush1.bf16.msra.mxu0 %v2958
        %2969 = vmatprep.subr.bf16.mxu0 0
        %2970 = vmatpush1.bf16.msra.mxu0 %v2957
        %2971 = vmatprep.subr.bf16.mxu0 0
        %2972 = vmatpush1.bf16.msra.mxu0 %v2956
        %2973 = vmatprep.subr.bf16.mxu0 0
        %2974 = vmatpush1.bf16.msra.mxu0 %v2955
        %2975 = vmatprep.subr.bf16.mxu0 0
        %2976 = vmatpush1.bf16.msra.mxu0 %v2954
        %2977 = vmatprep.subr.bf16.mxu0 0
        %2978 = vmatpush1.bf16.msra.mxu0 %v2953
        %2979 = vmatprep.subr.bf16.mxu0 0
        %2980 = vmatpush1.bf16.msra.mxu0 %v2952
        %2981 = vmatprep.subr.bf16.mxu0 0
        %2982 = vmatpush1.bf16.msra.mxu0 %v2951
        %2983 = vmatprep.subr.bf16.mxu0 0
        %2984 = vmatpush2.bf16.msra.mxu0 0
        %2985 = vmatprep.subr.bf16.mxu0 0
        %2986 = vmatpush2.bf16.msra.mxu0 0
        %2987 = vmatprep.subr.bf16.mxu0 0
        %2988 = vmatpush2.bf16.msra.mxu0 0
        %2989 = vmatprep.subr.bf16.mxu0 0
        %2990 = vmatpush2.bf16.msra.mxu0 0
        %2991 = vmatprep.subr.bf16.mxu0 0
        %2992 = vmatpush2.bf16.msra.mxu0 0
        %2993 = vmatprep.subr.bf16.mxu0 0
        %2994 = vmatpush2.bf16.msra.mxu0 0
        %2995 = vmatprep.subr.bf16.mxu0 0
        %2996 = vmatpush2.bf16.msra.mxu0 0
        %2997 = vmatprep.subr.bf16.mxu0 0
        %2998 = vmatpush2.bf16.msra.mxu0 0
        %2999 = vmatprep.mubr.bf16.mxu0 0
        %3000 = vmatmul.mubr.bf16.gmra.mxu0 %v793
        %v3001 = vpop.f32.mrf.mxu0
        %v3002 = vadd.f32 0.0, %v3001
        %v3003 = vpop.f32.mrf.mxu0
        %v3004 = vpop.f32.mrf.mxu0
        %v3005 = vadd.f32 0.0, %v3004
        %v3006 = vpop.f32.mrf.mxu0
        %3007 = vmatprep.mubr.bf16.mxu0 0
        %3008 = vmatmul.mubr.bf16.gmra.mxu0 %v794
        %v3009 = vpop.f32.mrf.mxu0
        %v3010 = vadd.f32 0.0, %v3009
        %v3011 = vpop.f32.mrf.mxu0
        %v3012 = vpop.f32.mrf.mxu0
        %v3013 = vadd.f32 0.0, %v3012
        %v3014 = vpop.f32.mrf.mxu0
        %3015 = vmatprep.mubr.bf16.mxu0 0
        %3016 = vmatmul.mubr.bf16.gmra.mxu0 %v795
        %v3017 = vpop.f32.mrf.mxu0
        %v3018 = vadd.f32 0.0, %v3017
        %v3019 = vpop.f32.mrf.mxu0
        %v3020 = vpop.f32.mrf.mxu0
        %v3021 = vadd.f32 0.0, %v3020
        %v3022 = vpop.f32.mrf.mxu0
        %3023 = vmatprep.mubr.bf16.mxu0 0
        %3024 = vmatmul.mubr.bf16.gmra.mxu0 %v796
        %v3025 = vpop.f32.mrf.mxu0
        %v3026 = vadd.f32 0.0, %v3025
        %v3027 = vpop.f32.mrf.mxu0
        %v3028 = vpop.f32.mrf.mxu0
        %v3029 = vadd.f32 0.0, %v3028
        %v3030 = vpop.f32.mrf.mxu0
        %3031 = vmatprep.mubr.bf16.mxu0 0
        %3032 = vmatmul.mubr.bf16.gmra.mxu0 %v797
        %v3033 = vpop.f32.mrf.mxu0
        %v3034 = vadd.f32 0.0, %v3033
        %v3035 = vpop.f32.mrf.mxu0
        %v3036 = vpop.f32.mrf.mxu0
        %v3037 = vadd.f32 0.0, %v3036
        %v3038 = vpop.f32.mrf.mxu0
        %3039 = vmatprep.mubr.bf16.mxu0 0
        %3040 = vmatmul.mubr.bf16.gmra.mxu0 %v798
        %v3041 = vpop.f32.mrf.mxu0
        %v3042 = vadd.f32 0.0, %v3041
        %v3043 = vpop.f32.mrf.mxu0
        %v3044 = vpop.f32.mrf.mxu0
        %v3045 = vadd.f32 0.0, %v3044
        %v3046 = vpop.f32.mrf.mxu0
        %3047 = vmatprep.mubr.bf16.mxu0 0
        %3048 = vmatmul.mubr.bf16.gmra.mxu0 %v799
        %v3049 = vpop.f32.mrf.mxu0
        %v3050 = vadd.f32 0.0, %v3049
        %v3051 = vpop.f32.mrf.mxu0
        %v3052 = vpop.f32.mrf.mxu0
        %v3053 = vadd.f32 0.0, %v3052
        %v3054 = vpop.f32.mrf.mxu0
        %3055 = vmatprep.mubr.bf16.mxu0 0
        %3056 = vmatmul.mubr.bf16.gmra.mxu0 %v800
        %v3057 = vpop.f32.mrf.mxu0
        %v3058 = vadd.f32 0.0, %v3057
        %v3059 = vpop.f32.mrf.mxu0
        %v3060 = vpop.f32.mrf.mxu0
        %v3061 = vadd.f32 0.0, %v3060
        %v3062 = vpop.f32.mrf.mxu0
        %3063 = vmatprep.mubr.bf16.mxu0 0
        %3064 = vmatmul.mubr.bf16.gmra.mxu0 %v801
        %v3065 = vpop.f32.mrf.mxu0
        %v3066 = vadd.f32 0.0, %v3065
        %v3067 = vpop.f32.mrf.mxu0
        %v3068 = vpop.f32.mrf.mxu0
        %v3069 = vadd.f32 0.0, %v3068
        %v3070 = vpop.f32.mrf.mxu0
        %3071 = vmatprep.mubr.bf16.mxu0 0
        %3072 = vmatmul.mubr.bf16.gmra.mxu0 %v802
        %v3073 = vpop.f32.mrf.mxu0
        %v3074 = vadd.f32 0.0, %v3073
        %v3075 = vpop.f32.mrf.mxu0
        %v3076 = vpop.f32.mrf.mxu0
        %v3077 = vadd.f32 0.0, %v3076
        %v3078 = vpop.f32.mrf.mxu0
        %3079 = vmatprep.mubr.bf16.mxu0 0
        %3080 = vmatmul.mubr.bf16.gmra.mxu0 %v803
        %v3081 = vpop.f32.mrf.mxu0
        %v3082 = vadd.f32 0.0, %v3081
        %v3083 = vpop.f32.mrf.mxu0
        %v3084 = vpop.f32.mrf.mxu0
        %v3085 = vadd.f32 0.0, %v3084
        %v3086 = vpop.f32.mrf.mxu0
        %3087 = vmatprep.mubr.bf16.mxu0 0
        %3088 = vmatmul.mubr.bf16.gmra.mxu0 %v804
        %v3089 = vpop.f32.mrf.mxu0
        %v3090 = vadd.f32 0.0, %v3089
        %v3091 = vpop.f32.mrf.mxu0
        %v3092 = vpop.f32.mrf.mxu0
        %v3093 = vadd.f32 0.0, %v3092
        %v3094 = vpop.f32.mrf.mxu0
        %3095 = vmatprep.mubr.bf16.mxu0 0
        %3096 = vmatmul.mubr.bf16.gmra.mxu0 %v805
        %v3097 = vpop.f32.mrf.mxu0
        %v3098 = vadd.f32 0.0, %v3097
        %v3099 = vpop.f32.mrf.mxu0
        %v3100 = vpop.f32.mrf.mxu0
        %v3101 = vadd.f32 0.0, %v3100
        %v3102 = vpop.f32.mrf.mxu0
        %3103 = vmatprep.mubr.bf16.mxu0 0
        %3104 = vmatmul.mubr.bf16.gmra.mxu0 %v806
        %v3105 = vpop.f32.mrf.mxu0
        %v3106 = vadd.f32 0.0, %v3105
        %v3107 = vpop.f32.mrf.mxu0
        %v3108 = vpop.f32.mrf.mxu0
        %v3109 = vadd.f32 0.0, %v3108
        %v3110 = vpop.f32.mrf.mxu0
        %3111 = vmatprep.mubr.bf16.mxu0 0
        %3112 = vmatmul.mubr.bf16.gmra.mxu0 %v2097
        %v3113 = vpop.f32.mrf.mxu0
        %v3114 = vadd.f32 0.0, %v3113
        %v3115 = vpop.f32.mrf.mxu0
        %v3116 = vpop.f32.mrf.mxu0
        %v3117 = vadd.f32 0.0, %v3116
        %v3118 = vpop.f32.mrf.mxu0
        %3119 = vmatprep.mubr.bf16.mxu0 0
        %3120 = vmatmul.mubr.bf16.gmra.mxu0 %v2917
        %v3121 = vpop.f32.mrf.mxu0
        %v3122 = vadd.f32 0.0, %v3121
        %v3123 = vpop.f32.mrf.mxu0
        %v3124 = vpop.f32.mrf.mxu0
        %v3125 = vadd.f32 0.0, %v3124
        %v3126 = vpop.f32.mrf.mxu0
        %3127 = vdwg.mxu0
        %v3128 = vadd.f32 %v2842, %v3002
        %v3129 = vadd.f32 %v2843, %v3005
        %v3130 = vadd.f32 %v2844, %v3010
        %v3131 = vadd.f32 %v2845, %v3013
        %v3132 = vadd.f32 %v2846, %v3018
        %v3133 = vadd.f32 %v2847, %v3021
        %v3134 = vadd.f32 %v2848, %v3026
        %v3135 = vadd.f32 %v2849, %v3029
        %v3136 = vadd.f32 %v2850, %v3034
        %v3137 = vadd.f32 %v2851, %v3037
        %v3138 = vadd.f32 %v2852, %v3042
        %v3139 = vadd.f32 %v2853, %v3045
        %v3140 = vadd.f32 %v2854, %v3050
        %v3141 = vadd.f32 %v2855, %v3053
        %v3142 = vadd.f32 %v2856, %v3058
        %v3143 = vadd.f32 %v2857, %v3061
        %v3144 = vadd.f32 %v2858, %v3066
        %v3145 = vadd.f32 %v2859, %v3069
        %v3146 = vadd.f32 %v2860, %v3074
        %v3147 = vadd.f32 %v2861, %v3077
        %v3148 = vadd.f32 %v2862, %v3082
        %v3149 = vadd.f32 %v2863, %v3085
        %v3150 = vadd.f32 %v2864, %v3090
        %v3151 = vadd.f32 %v2865, %v3093
        %v3152 = vadd.f32 %v2866, %v3098
        %v3153 = vadd.f32 %v2867, %v3101
        %v3154 = vadd.f32 %v2868, %v3106
        %v3155 = vadd.f32 %v2869, %v3109
        %v3156 = vadd.f32 %v2870, %v3114
        %v3157 = vadd.f32 %v2871, %v3117
        %v3158 = vadd.f32 %v2872, %v3122
        %v3159 = vadd.f32 %v2873, %v3125
        %v3161 = vrot.slane %v336, 5
        %v3162 = vrot.slane %v3161, 4
        %v3163 = vrot.slane %v337, 5
        %v3164 = vsel %vm1355, %v3162, %v3163
        %v3165 = vrot.slane %v3163, 4
        %v3166 = vrot.slane %v338, 5
        %v3167 = vsel %vm1355, %v3165, %v3166
        %s3168 = scalar_lea.vmem %s243, 512
        %v3169 = vld [vmem:[%s3168] sm:$0xf]
        %v3170 = vld [vmem:[%s3168 + $0x4] sm:$0xf]
        %v3171 = vld [vmem:[%s3168 + $0x8] sm:$0xf]
        %v3172 = vld [vmem:[%s3168 + $0xc] sm:$0xf]
        %v3173 = vld [vmem:[%s3168 + $0x10] sm:$0xf]
        %v3174 = vld [vmem:[%s3168 + $0x14] sm:$0xf]
        %v3175 = vld [vmem:[%s3168 + $0x18] sm:$0xf]
        %v3176 = vld [vmem:[%s3168 + $0x1c] sm:$0xf]
        %v3177 = vld [vmem:[%s3168 + $0x20] sm:$0xf]
        %v3178 = vld [vmem:[%s3168 + $0x24] sm:$0xf]
        %v3179 = vld [vmem:[%s3168 + $0x28] sm:$0xf]
        %v3180 = vld [vmem:[%s3168 + $0x2c] sm:$0xf]
        %v3181 = vld [vmem:[%s3168 + $0x30] sm:$0xf]
        %v3182 = vld [vmem:[%s3168 + $0x34] sm:$0xf]
        %v3183 = vld [vmem:[%s3168 + $0x38] sm:$0xf]
        %v3184 = vld [vmem:[%s3168 + $0x3c] sm:$0xf]
        %v3185 = vunpack.c.l.b16 %v3164
        %v3186 = vunpack.c.l.b16 %v3167
        %v3187 = vpack.c.b16 %v3186, %v3185
        %v3205 = vunpack.c.l.b16 %v3169
        %v3206 = vunpack.c.l.b16 %v3170
        %v3207 = vunpack.c.l.b16 %v3171
        %v3208 = vunpack.c.l.b16 %v3172
        %v3209 = vunpack.c.l.b16 %v3173
        %v3210 = vunpack.c.l.b16 %v3174
        %v3211 = vunpack.c.l.b16 %v3175
        %v3212 = vunpack.c.l.b16 %v3176
        %v3213 = vunpack.c.l.b16 %v3177
        %v3214 = vunpack.c.l.b16 %v3178
        %v3215 = vunpack.c.l.b16 %v3179
        %v3216 = vunpack.c.l.b16 %v3180
        %v3217 = vunpack.c.l.b16 %v3181
        %v3218 = vunpack.c.l.b16 %v3182
        %v3219 = vunpack.c.l.b16 %v3183
        %v3220 = vunpack.c.l.b16 %v3184
        %v3221 = vpack.c.b16 %v3206, %v3205
        %v3222 = vpack.c.b16 %v3208, %v3207
        %v3223 = vpack.c.b16 %v3210, %v3209
        %v3224 = vpack.c.b16 %v3212, %v3211
        %v3225 = vpack.c.b16 %v3214, %v3213
        %v3226 = vpack.c.b16 %v3216, %v3215
        %v3227 = vpack.c.b16 %v3218, %v3217
        %v3228 = vpack.c.b16 %v3220, %v3219
        %3237 = vmatprep.subr.bf16.mxu0 0
        %3238 = vmatpush1.bf16.msra.mxu0 %v3228
        %3239 = vmatprep.subr.bf16.mxu0 0
        %3240 = vmatpush1.bf16.msra.mxu0 %v3227
        %3241 = vmatprep.subr.bf16.mxu0 0
        %3242 = vmatpush1.bf16.msra.mxu0 %v3226
        %3243 = vmatprep.subr.bf16.mxu0 0
        %3244 = vmatpush1.bf16.msra.mxu0 %v3225
        %3245 = vmatprep.subr.bf16.mxu0 0
        %3246 = vmatpush1.bf16.msra.mxu0 %v3224
        %3247 = vmatprep.subr.bf16.mxu0 0
        %3248 = vmatpush1.bf16.msra.mxu0 %v3223
        %3249 = vmatprep.subr.bf16.mxu0 0
        %3250 = vmatpush1.bf16.msra.mxu0 %v3222
        %3251 = vmatprep.subr.bf16.mxu0 0
        %3252 = vmatpush1.bf16.msra.mxu0 %v3221
        %3253 = vmatprep.subr.bf16.mxu0 0
        %3254 = vmatpush2.bf16.msra.mxu0 0
        %3255 = vmatprep.subr.bf16.mxu0 0
        %3256 = vmatpush2.bf16.msra.mxu0 0
        %3257 = vmatprep.subr.bf16.mxu0 0
        %3258 = vmatpush2.bf16.msra.mxu0 0
        %3259 = vmatprep.subr.bf16.mxu0 0
        %3260 = vmatpush2.bf16.msra.mxu0 0
        %3261 = vmatprep.subr.bf16.mxu0 0
        %3262 = vmatpush2.bf16.msra.mxu0 0
        %3263 = vmatprep.subr.bf16.mxu0 0
        %3264 = vmatpush2.bf16.msra.mxu0 0
        %3265 = vmatprep.subr.bf16.mxu0 0
        %3266 = vmatpush2.bf16.msra.mxu0 0
        %3267 = vmatprep.subr.bf16.mxu0 0
        %3268 = vmatpush2.bf16.msra.mxu0 0
        %3269 = vmatprep.mubr.bf16.mxu0 0
        %3270 = vmatmul.mubr.bf16.gmra.mxu0 %v1519
        %v3271 = vpop.f32.mrf.mxu0
        %v3272 = vadd.f32 0.0, %v3271
        %v3273 = vpop.f32.mrf.mxu0
        %v3274 = vpop.f32.mrf.mxu0
        %v3275 = vadd.f32 0.0, %v3274
        %v3276 = vpop.f32.mrf.mxu0
        %3277 = vmatprep.mubr.bf16.mxu0 0
        %3278 = vmatmul.mubr.bf16.gmra.mxu0 %v1520
        %v3279 = vpop.f32.mrf.mxu0
        %v3280 = vadd.f32 0.0, %v3279
        %v3281 = vpop.f32.mrf.mxu0
        %v3282 = vpop.f32.mrf.mxu0
        %v3283 = vadd.f32 0.0, %v3282
        %v3284 = vpop.f32.mrf.mxu0
        %3285 = vmatprep.mubr.bf16.mxu0 0
        %3286 = vmatmul.mubr.bf16.gmra.mxu0 %v1521
        %v3287 = vpop.f32.mrf.mxu0
        %v3288 = vadd.f32 0.0, %v3287
        %v3289 = vpop.f32.mrf.mxu0
        %v3290 = vpop.f32.mrf.mxu0
        %v3291 = vadd.f32 0.0, %v3290
        %v3292 = vpop.f32.mrf.mxu0
        %3293 = vmatprep.mubr.bf16.mxu0 0
        %3294 = vmatmul.mubr.bf16.gmra.mxu0 %v1522
        %v3295 = vpop.f32.mrf.mxu0
        %v3296 = vadd.f32 0.0, %v3295
        %v3297 = vpop.f32.mrf.mxu0
        %v3298 = vpop.f32.mrf.mxu0
        %v3299 = vadd.f32 0.0, %v3298
        %v3300 = vpop.f32.mrf.mxu0
        %3301 = vmatprep.mubr.bf16.mxu0 0
        %3302 = vmatmul.mubr.bf16.gmra.mxu0 %v1523
        %v3303 = vpop.f32.mrf.mxu0
        %v3304 = vadd.f32 0.0, %v3303
        %v3305 = vpop.f32.mrf.mxu0
        %v3306 = vpop.f32.mrf.mxu0
        %v3307 = vadd.f32 0.0, %v3306
        %v3308 = vpop.f32.mrf.mxu0
        %3309 = vmatprep.mubr.bf16.mxu0 0
        %3310 = vmatmul.mubr.bf16.gmra.mxu0 %v1524
        %v3311 = vpop.f32.mrf.mxu0
        %v3312 = vadd.f32 0.0, %v3311
        %v3313 = vpop.f32.mrf.mxu0
        %v3314 = vpop.f32.mrf.mxu0
        %v3315 = vadd.f32 0.0, %v3314
        %v3316 = vpop.f32.mrf.mxu0
        %3317 = vmatprep.mubr.bf16.mxu0 0
        %3318 = vmatmul.mubr.bf16.gmra.mxu0 %v1525
        %v3319 = vpop.f32.mrf.mxu0
        %v3320 = vadd.f32 0.0, %v3319
        %v3321 = vpop.f32.mrf.mxu0
        %v3322 = vpop.f32.mrf.mxu0
        %v3323 = vadd.f32 0.0, %v3322
        %v3324 = vpop.f32.mrf.mxu0
        %3325 = vmatprep.mubr.bf16.mxu0 0
        %3326 = vmatmul.mubr.bf16.gmra.mxu0 %v1526
        %v3327 = vpop.f32.mrf.mxu0
        %v3328 = vadd.f32 0.0, %v3327
        %v3329 = vpop.f32.mrf.mxu0
        %v3330 = vpop.f32.mrf.mxu0
        %v3331 = vadd.f32 0.0, %v3330
        %v3332 = vpop.f32.mrf.mxu0
        %3333 = vmatprep.mubr.bf16.mxu0 0
        %3334 = vmatmul.mubr.bf16.gmra.mxu0 %v1527
        %v3335 = vpop.f32.mrf.mxu0
        %v3336 = vadd.f32 0.0, %v3335
        %v3337 = vpop.f32.mrf.mxu0
        %v3338 = vpop.f32.mrf.mxu0
        %v3339 = vadd.f32 0.0, %v3338
        %v3340 = vpop.f32.mrf.mxu0
        %3341 = vmatprep.mubr.bf16.mxu0 0
        %3342 = vmatmul.mubr.bf16.gmra.mxu0 %v1528
        %v3343 = vpop.f32.mrf.mxu0
        %v3344 = vadd.f32 0.0, %v3343
        %v3345 = vpop.f32.mrf.mxu0
        %v3346 = vpop.f32.mrf.mxu0
        %v3347 = vadd.f32 0.0, %v3346
        %v3348 = vpop.f32.mrf.mxu0
        %3349 = vmatprep.mubr.bf16.mxu0 0
        %3350 = vmatmul.mubr.bf16.gmra.mxu0 %v1529
        %v3351 = vpop.f32.mrf.mxu0
        %v3352 = vadd.f32 0.0, %v3351
        %v3353 = vpop.f32.mrf.mxu0
        %v3354 = vpop.f32.mrf.mxu0
        %v3355 = vadd.f32 0.0, %v3354
        %v3356 = vpop.f32.mrf.mxu0
        %3357 = vmatprep.mubr.bf16.mxu0 0
        %3358 = vmatmul.mubr.bf16.gmra.mxu0 %v1530
        %v3359 = vpop.f32.mrf.mxu0
        %v3360 = vadd.f32 0.0, %v3359
        %v3361 = vpop.f32.mrf.mxu0
        %v3362 = vpop.f32.mrf.mxu0
        %v3363 = vadd.f32 0.0, %v3362
        %v3364 = vpop.f32.mrf.mxu0
        %3365 = vmatprep.mubr.bf16.mxu0 0
        %3366 = vmatmul.mubr.bf16.gmra.mxu0 %v1531
        %v3367 = vpop.f32.mrf.mxu0
        %v3368 = vadd.f32 0.0, %v3367
        %v3369 = vpop.f32.mrf.mxu0
        %v3370 = vpop.f32.mrf.mxu0
        %v3371 = vadd.f32 0.0, %v3370
        %v3372 = vpop.f32.mrf.mxu0
        %3373 = vmatprep.mubr.bf16.mxu0 0
        %3374 = vmatmul.mubr.bf16.gmra.mxu0 %v1532
        %v3375 = vpop.f32.mrf.mxu0
        %v3376 = vadd.f32 0.0, %v3375
        %v3377 = vpop.f32.mrf.mxu0
        %v3378 = vpop.f32.mrf.mxu0
        %v3379 = vadd.f32 0.0, %v3378
        %v3380 = vpop.f32.mrf.mxu0
        %3381 = vmatprep.mubr.bf16.mxu0 0
        %3382 = vmatmul.mubr.bf16.gmra.mxu0 %v2367
        %v3383 = vpop.f32.mrf.mxu0
        %v3384 = vadd.f32 0.0, %v3383
        %v3385 = vpop.f32.mrf.mxu0
        %v3386 = vpop.f32.mrf.mxu0
        %v3387 = vadd.f32 0.0, %v3386
        %v3388 = vpop.f32.mrf.mxu0
        %3389 = vmatprep.mubr.bf16.mxu0 0
        %3390 = vmatmul.mubr.bf16.gmra.mxu0 %v3187
        %v3391 = vpop.f32.mrf.mxu0
        %v3392 = vadd.f32 0.0, %v3391
        %v3393 = vpop.f32.mrf.mxu0
        %v3394 = vpop.f32.mrf.mxu0
        %v3395 = vadd.f32 0.0, %v3394
        %v3396 = vpop.f32.mrf.mxu0
        %3397 = vdwg.mxu0
        %v3398 = vadd.f32 %v3128, %v3272
        %v3399 = vadd.f32 %v3129, %v3275
        %v3400 = vadd.f32 %v3130, %v3280
        %v3401 = vadd.f32 %v3131, %v3283
        %v3402 = vadd.f32 %v3132, %v3288
        %v3403 = vadd.f32 %v3133, %v3291
        %v3404 = vadd.f32 %v3134, %v3296
        %v3405 = vadd.f32 %v3135, %v3299
        %v3406 = vadd.f32 %v3136, %v3304
        %v3407 = vadd.f32 %v3137, %v3307
        %v3408 = vadd.f32 %v3138, %v3312
        %v3409 = vadd.f32 %v3139, %v3315
        %v3410 = vadd.f32 %v3140, %v3320
        %v3411 = vadd.f32 %v3141, %v3323
        %v3412 = vadd.f32 %v3142, %v3328
        %v3413 = vadd.f32 %v3143, %v3331
        %v3414 = vadd.f32 %v3144, %v3336
        %v3415 = vadd.f32 %v3145, %v3339
        %v3416 = vadd.f32 %v3146, %v3344
        %v3417 = vadd.f32 %v3147, %v3347
        %v3418 = vadd.f32 %v3148, %v3352
        %v3419 = vadd.f32 %v3149, %v3355
        %v3420 = vadd.f32 %v3150, %v3360
        %v3421 = vadd.f32 %v3151, %v3363
        %v3422 = vadd.f32 %v3152, %v3368
        %v3423 = vadd.f32 %v3153, %v3371
        %v3424 = vadd.f32 %v3154, %v3376
        %v3425 = vadd.f32 %v3155, %v3379
        %v3426 = vadd.f32 %v3156, %v3384
        %v3427 = vadd.f32 %v3157, %v3387
        %v3428 = vadd.f32 %v3158, %v3392
        %v3429 = vadd.f32 %v3159, %v3395
        %v3430 = vld [vmem:[#allocation2] sm:$0xff]
        %v3431 = vld [vmem:[#allocation2 + $0x8] sm:$0xff]
        %v3432 = vld [vmem:[#allocation2 + $0x10] sm:$0xff]
        %v3433 = vld [vmem:[#allocation2 + $0x18] sm:$0xff]
        %v3434 = vld [vmem:[#allocation2 + $0x20] sm:$0xff]
        %v3435 = vld [vmem:[#allocation2 + $0x28] sm:$0xff]
        %v3436 = vld [vmem:[#allocation2 + $0x30] sm:$0xff]
        %v3437 = vld [vmem:[#allocation2 + $0x38] sm:$0xff]
        %v3438 = vld [vmem:[#allocation2 + $0x40] sm:$0xff]
        %v3439 = vld [vmem:[#allocation2 + $0x48] sm:$0xff]
        %v3440 = vld [vmem:[#allocation2 + $0x50] sm:$0xff]
        %v3441 = vld [vmem:[#allocation2 + $0x58] sm:$0xff]
        %v3442 = vld [vmem:[#allocation2 + $0x60] sm:$0xff]
        %v3443 = vld [vmem:[#allocation2 + $0x68] sm:$0xff]
        %v3444 = vld [vmem:[#allocation2 + $0x70] sm:$0xff]
        %v3445 = vld [vmem:[#allocation2 + $0x78] sm:$0xff]
        %v3446 = vld [vmem:[#allocation2 + $0x80] sm:$0xff]
        %v3447 = vld [vmem:[#allocation2 + $0x88] sm:$0xff]
        %v3448 = vld [vmem:[#allocation2 + $0x90] sm:$0xff]
        %v3449 = vld [vmem:[#allocation2 + $0x98] sm:$0xff]
        %v3450 = vld [vmem:[#allocation2 + $0xa0] sm:$0xff]
        %v3451 = vld [vmem:[#allocation2 + $0xa8] sm:$0xff]
        %v3452 = vld [vmem:[#allocation2 + $0xb0] sm:$0xff]
        %v3453 = vld [vmem:[#allocation2 + $0xb8] sm:$0xff]
        %v3454 = vld [vmem:[#allocation2 + $0xc0] sm:$0xff]
        %v3455 = vld [vmem:[#allocation2 + $0xc8] sm:$0xff]
        %v3456 = vld [vmem:[#allocation2 + $0xd0] sm:$0xff]
        %v3457 = vld [vmem:[#allocation2 + $0xd8] sm:$0xff]
        %v3458 = vld [vmem:[#allocation2 + $0xe0] sm:$0xff]
        %v3459 = vld [vmem:[#allocation2 + $0xe8] sm:$0xff]
        %v3460 = vld [vmem:[#allocation2 + $0xf0] sm:$0xff]
        %v3461 = vld [vmem:[#allocation2 + $0xf8] sm:$0xff]
        %v3462 = vadd.f32 %v3430, %v3398
        %v3463 = vadd.f32 %v3431, %v3399
        %v3464 = vadd.f32 %v3432, %v3400
        %v3465 = vadd.f32 %v3433, %v3401
        %v3466 = vadd.f32 %v3434, %v3402
        %v3467 = vadd.f32 %v3435, %v3403
        %v3468 = vadd.f32 %v3436, %v3404
        %v3469 = vadd.f32 %v3437, %v3405
        %v3470 = vadd.f32 %v3438, %v3406
        %v3471 = vadd.f32 %v3439, %v3407
        %v3472 = vadd.f32 %v3440, %v3408
        %v3473 = vadd.f32 %v3441, %v3409
        %v3474 = vadd.f32 %v3442, %v3410
        %v3475 = vadd.f32 %v3443, %v3411
        %v3476 = vadd.f32 %v3444, %v3412
        %v3477 = vadd.f32 %v3445, %v3413
        %v3478 = vadd.f32 %v3446, %v3414
        %v3479 = vadd.f32 %v3447, %v3415
        %v3480 = vadd.f32 %v3448, %v3416
        %v3481 = vadd.f32 %v3449, %v3417
        %v3482 = vadd.f32 %v3450, %v3418
        %v3483 = vadd.f32 %v3451, %v3419
        %v3484 = vadd.f32 %v3452, %v3420
        %v3485 = vadd.f32 %v3453, %v3421
        %v3486 = vadd.f32 %v3454, %v3422
        %v3487 = vadd.f32 %v3455, %v3423
        %v3488 = vadd.f32 %v3456, %v3424
        %v3489 = vadd.f32 %v3457, %v3425
        %v3490 = vadd.f32 %v3458, %v3426
        %v3491 = vadd.f32 %v3459, %v3427
        %v3492 = vadd.f32 %v3460, %v3428
        %v3493 = vadd.f32 %v3461, %v3429
        %3494 = vst [vmem:[#allocation2] sm:$0xff] %v3462
        %3495 = vst [vmem:[#allocation2 + $0x8] sm:$0xff] %v3463
        %3496 = vst [vmem:[#allocation2 + $0x10] sm:$0xff] %v3464
        %3497 = vst [vmem:[#allocation2 + $0x18] sm:$0xff] %v3465
        %3498 = vst [vmem:[#allocation2 + $0x20] sm:$0xff] %v3466
        %3499 = vst [vmem:[#allocation2 + $0x28] sm:$0xff] %v3467
        %3500 = vst [vmem:[#allocation2 + $0x30] sm:$0xff] %v3468
        %3501 = vst [vmem:[#allocation2 + $0x38] sm:$0xff] %v3469
        %3502 = vst [vmem:[#allocation2 + $0x40] sm:$0xff] %v3470
        %3503 = vst [vmem:[#allocation2 + $0x48] sm:$0xff] %v3471
        %3504 = vst [vmem:[#allocation2 + $0x50] sm:$0xff] %v3472
        %3505 = vst [vmem:[#allocation2 + $0x58] sm:$0xff] %v3473
        %3506 = vst [vmem:[#allocation2 + $0x60] sm:$0xff] %v3474
        %3507 = vst [vmem:[#allocation2 + $0x68] sm:$0xff] %v3475
        %3508 = vst [vmem:[#allocation2 + $0x70] sm:$0xff] %v3476
        %3509 = vst [vmem:[#allocation2 + $0x78] sm:$0xff] %v3477
        %3510 = vst [vmem:[#allocation2 + $0x80] sm:$0xff] %v3478
        %3511 = vst [vmem:[#allocation2 + $0x88] sm:$0xff] %v3479
        %3512 = vst [vmem:[#allocation2 + $0x90] sm:$0xff] %v3480
        %3513 = vst [vmem:[#allocation2 + $0x98] sm:$0xff] %v3481
        %3514 = vst [vmem:[#allocation2 + $0xa0] sm:$0xff] %v3482
        %3515 = vst [vmem:[#allocation2 + $0xa8] sm:$0xff] %v3483
        %3516 = vst [vmem:[#allocation2 + $0xb0] sm:$0xff] %v3484
        %3517 = vst [vmem:[#allocation2 + $0xb8] sm:$0xff] %v3485
        %3518 = vst [vmem:[#allocation2 + $0xc0] sm:$0xff] %v3486
        %3519 = vst [vmem:[#allocation2 + $0xc8] sm:$0xff] %v3487
        %3520 = vst [vmem:[#allocation2 + $0xd0] sm:$0xff] %v3488
        %3521 = vst [vmem:[#allocation2 + $0xd8] sm:$0xff] %v3489
        %3522 = vst [vmem:[#allocation2 + $0xe0] sm:$0xff] %v3490
        %3523 = vst [vmem:[#allocation2 + $0xe8] sm:$0xff] %v3491
        %3524 = vst [vmem:[#allocation2 + $0xf0] sm:$0xff] %v3492
        %3525 = vst [vmem:[#allocation2 + $0xf8] sm:$0xff] %v3493
        // Predicated region
        $region37: #{tpu_custom_call.1} parent=31 // pred_check
          %p3526 = pneg %p249
        $region38: #{tpu_custom_call.1} parent=31 // pred_check_branch
          %3528 = sbr.rel (%p3526) target = $region40
        $region39: #{tpu_custom_call.1} parent=31 // pred_region
          %v3529 = vld [vmem:[#allocation2] sm:$0xff]
          %v3530 = vld [vmem:[#allocation2 + $0x8] sm:$0xff]
          %v3531 = vld [vmem:[#allocation2 + $0x10] sm:$0xff]
          %v3532 = vld [vmem:[#allocation2 + $0x18] sm:$0xff]
          %v3533 = vld [vmem:[#allocation2 + $0x20] sm:$0xff]
          %v3534 = vld [vmem:[#allocation2 + $0x28] sm:$0xff]
          %v3535 = vld [vmem:[#allocation2 + $0x30] sm:$0xff]
          %v3536 = vld [vmem:[#allocation2 + $0x38] sm:$0xff]
          %v3537 = vld [vmem:[#allocation2 + $0x40] sm:$0xff]
          %v3538 = vld [vmem:[#allocation2 + $0x48] sm:$0xff]
          %v3539 = vld [vmem:[#allocation2 + $0x50] sm:$0xff]
          %v3540 = vld [vmem:[#allocation2 + $0x58] sm:$0xff]
          %v3541 = vld [vmem:[#allocation2 + $0x60] sm:$0xff]
          %v3542 = vld [vmem:[#allocation2 + $0x68] sm:$0xff]
          %v3543 = vld [vmem:[#allocation2 + $0x70] sm:$0xff]
          %v3544 = vld [vmem:[#allocation2 + $0x78] sm:$0xff]
          %v3545 = vld [vmem:[#allocation2 + $0x80] sm:$0xff]
          %v3546 = vld [vmem:[#allocation2 + $0x88] sm:$0xff]
          %v3547 = vld [vmem:[#allocation2 + $0x90] sm:$0xff]
          %v3548 = vld [vmem:[#allocation2 + $0x98] sm:$0xff]
          %v3549 = vld [vmem:[#allocation2 + $0xa0] sm:$0xff]
          %v3550 = vld [vmem:[#allocation2 + $0xa8] sm:$0xff]
          %v3551 = vld [vmem:[#allocation2 + $0xb0] sm:$0xff]
          %v3552 = vld [vmem:[#allocation2 + $0xb8] sm:$0xff]
          %v3553 = vld [vmem:[#allocation2 + $0xc0] sm:$0xff]
          %v3554 = vld [vmem:[#allocation2 + $0xc8] sm:$0xff]
          %v3555 = vld [vmem:[#allocation2 + $0xd0] sm:$0xff]
          %v3556 = vld [vmem:[#allocation2 + $0xd8] sm:$0xff]
          %v3557 = vld [vmem:[#allocation2 + $0xe0] sm:$0xff]
          %v3558 = vld [vmem:[#allocation2 + $0xe8] sm:$0xff]
          %v3559 = vld [vmem:[#allocation2 + $0xf0] sm:$0xff]
          %v3560 = vld [vmem:[#allocation2 + $0xf8] sm:$0xff]
          %v3561 = vld [vmem:[%s247] sm:$0x1]
          %v3563 = vlaneseq
          %v3564 = vshrl.u32 %v3563, 7
          %v3565 = vsub.s32 0, %v3564
          %v3566 = vrot.slane %v3561, %v3565
          %v3568 = vadd.f32 %v3529, %v3566
          %v3569 = vadd.f32 %v3530, %v3566
          %v3570 = vadd.f32 %v3531, %v3566
          %v3571 = vadd.f32 %v3532, %v3566
          %v3572 = vadd.f32 %v3533, %v3566
          %v3573 = vadd.f32 %v3534, %v3566
          %v3574 = vadd.f32 %v3535, %v3566
          %v3575 = vadd.f32 %v3536, %v3566
          %v3576 = vadd.f32 %v3537, %v3566
          %v3577 = vadd.f32 %v3538, %v3566
          %v3578 = vadd.f32 %v3539, %v3566
          %v3579 = vadd.f32 %v3540, %v3566
          %v3580 = vadd.f32 %v3541, %v3566
          %v3581 = vadd.f32 %v3542, %v3566
          %v3582 = vadd.f32 %v3543, %v3566
          %v3583 = vadd.f32 %v3544, %v3566
          %v3584 = vadd.f32 %v3545, %v3566
          %v3585 = vadd.f32 %v3546, %v3566
          %v3586 = vadd.f32 %v3547, %v3566
          %v3587 = vadd.f32 %v3548, %v3566
          %v3588 = vadd.f32 %v3549, %v3566
          %v3589 = vadd.f32 %v3550, %v3566
          %v3590 = vadd.f32 %v3551, %v3566
          %v3591 = vadd.f32 %v3552, %v3566
          %v3592 = vadd.f32 %v3553, %v3566
          %v3593 = vadd.f32 %v3554, %v3566
          %v3594 = vadd.f32 %v3555, %v3566
          %v3595 = vadd.f32 %v3556, %v3566
          %v3596 = vadd.f32 %v3557, %v3566
          %v3597 = vadd.f32 %v3558, %v3566
          %v3598 = vadd.f32 %v3559, %v3566
          %v3599 = vadd.f32 %v3560, %v3566
          %vm3600 = vcmp.ge.f32.partialorder %v3568, 0.0
          %vm3601 = vcmp.ge.f32.partialorder %v3569, 0.0
          %vm3602 = vcmp.ge.f32.partialorder %v3570, 0.0
          %vm3603 = vcmp.ge.f32.partialorder %v3571, 0.0
          %vm3604 = vcmp.ge.f32.partialorder %v3572, 0.0
          %vm3605 = vcmp.ge.f32.partialorder %v3573, 0.0
          %vm3606 = vcmp.ge.f32.partialorder %v3574, 0.0
          %vm3607 = vcmp.ge.f32.partialorder %v3575, 0.0
          %vm3608 = vcmp.ge.f32.partialorder %v3576, 0.0
          %vm3609 = vcmp.ge.f32.partialorder %v3577, 0.0
          %vm3610 = vcmp.ge.f32.partialorder %v3578, 0.0
          %vm3611 = vcmp.ge.f32.partialorder %v3579, 0.0
          %vm3612 = vcmp.ge.f32.partialorder %v3580, 0.0
          %vm3613 = vcmp.ge.f32.partialorder %v3581, 0.0
          %vm3614 = vcmp.ge.f32.partialorder %v3582, 0.0
          %vm3615 = vcmp.ge.f32.partialorder %v3583, 0.0
          %vm3616 = vcmp.ge.f32.partialorder %v3584, 0.0
          %vm3617 = vcmp.ge.f32.partialorder %v3585, 0.0
          %vm3618 = vcmp.ge.f32.partialorder %v3586, 0.0
          %vm3619 = vcmp.ge.f32.partialorder %v3587, 0.0
          %vm3620 = vcmp.ge.f32.partialorder %v3588, 0.0
          %vm3621 = vcmp.ge.f32.partialorder %v3589, 0.0
          %vm3622 = vcmp.ge.f32.partialorder %v3590, 0.0
          %vm3623 = vcmp.ge.f32.partialorder %v3591, 0.0
          %vm3624 = vcmp.ge.f32.partialorder %v3592, 0.0
          %vm3625 = vcmp.ge.f32.partialorder %v3593, 0.0
          %vm3626 = vcmp.ge.f32.partialorder %v3594, 0.0
          %vm3627 = vcmp.ge.f32.partialorder %v3595, 0.0
          %vm3628 = vcmp.ge.f32.partialorder %v3596, 0.0
          %vm3629 = vcmp.ge.f32.partialorder %v3597, 0.0
          %vm3630 = vcmp.ge.f32.partialorder %v3598, 0.0
          %vm3631 = vcmp.ge.f32.partialorder %v3599, 0.0
          %v3632 = vmul.f32 %v3568, 0.2
          %v3633 = vmul.f32 %v3569, 0.2
          %v3634 = vmul.f32 %v3570, 0.2
          %v3635 = vmul.f32 %v3571, 0.2
          %v3636 = vmul.f32 %v3572, 0.2
          %v3637 = vmul.f32 %v3573, 0.2
          %v3638 = vmul.f32 %v3574, 0.2
          %v3639 = vmul.f32 %v3575, 0.2
          %v3640 = vmul.f32 %v3576, 0.2
          %v3641 = vmul.f32 %v3577, 0.2
          %v3642 = vmul.f32 %v3578, 0.2
          %v3643 = vmul.f32 %v3579, 0.2
          %v3644 = vmul.f32 %v3580, 0.2
          %v3645 = vmul.f32 %v3581, 0.2
          %v3646 = vmul.f32 %v3582, 0.2
          %v3647 = vmul.f32 %v3583, 0.2
          %v3648 = vmul.f32 %v3584, 0.2
          %v3649 = vmul.f32 %v3585, 0.2
          %v3650 = vmul.f32 %v3586, 0.2
          %v3651 = vmul.f32 %v3587, 0.2
          %v3652 = vmul.f32 %v3588, 0.2
          %v3653 = vmul.f32 %v3589, 0.2
          %v3654 = vmul.f32 %v3590, 0.2
          %v3655 = vmul.f32 %v3591, 0.2
          %v3656 = vmul.f32 %v3592, 0.2
          %v3657 = vmul.f32 %v3593, 0.2
          %v3658 = vmul.f32 %v3594, 0.2
          %v3659 = vmul.f32 %v3595, 0.2
          %v3660 = vmul.f32 %v3596, 0.2
          %v3661 = vmul.f32 %v3597, 0.2
          %v3662 = vmul.f32 %v3598, 0.2
          %v3663 = vmul.f32 %v3599, 0.2
          %v3664 = vsel %vm3600, %v3568, %v3632
          %v3665 = vsel %vm3601, %v3569, %v3633
          %v3666 = vsel %vm3602, %v3570, %v3634
          %v3667 = vsel %vm3603, %v3571, %v3635
          %v3668 = vsel %vm3604, %v3572, %v3636
          %v3669 = vsel %vm3605, %v3573, %v3637
          %v3670 = vsel %vm3606, %v3574, %v3638
          %v3671 = vsel %vm3607, %v3575, %v3639
          %v3672 = vsel %vm3608, %v3576, %v3640
          %v3673 = vsel %vm3609, %v3577, %v3641
          %v3674 = vsel %vm3610, %v3578, %v3642
          %v3675 = vsel %vm3611, %v3579, %v3643
          %v3676 = vsel %vm3612, %v3580, %v3644
          %v3677 = vsel %vm3613, %v3581, %v3645
          %v3678 = vsel %vm3614, %v3582, %v3646
          %v3679 = vsel %vm3615, %v3583, %v3647
          %v3680 = vsel %vm3616, %v3584, %v3648
          %v3681 = vsel %vm3617, %v3585, %v3649
          %v3682 = vsel %vm3618, %v3586, %v3650
          %v3683 = vsel %vm3619, %v3587, %v3651
          %v3684 = vsel %vm3620, %v3588, %v3652
          %v3685 = vsel %vm3621, %v3589, %v3653
          %v3686 = vsel %vm3622, %v3590, %v3654
          %v3687 = vsel %vm3623, %v3591, %v3655
          %v3688 = vsel %vm3624, %v3592, %v3656
          %v3689 = vsel %vm3625, %v3593, %v3657
          %v3690 = vsel %vm3626, %v3594, %v3658
          %v3691 = vsel %vm3627, %v3595, %v3659
          %v3692 = vsel %vm3628, %v3596, %v3660
          %v3693 = vsel %vm3629, %v3597, %v3661
          %v3694 = vsel %vm3630, %v3598, %v3662
          %v3695 = vsel %vm3631, %v3599, %v3663
          %v3696 = vmul.f32 %v3664, 1.4142135
          %v3697 = vmul.f32 %v3665, 1.4142135
          %v3698 = vmul.f32 %v3666, 1.4142135
          %v3699 = vmul.f32 %v3667, 1.4142135
          %v3700 = vmul.f32 %v3668, 1.4142135
          %v3701 = vmul.f32 %v3669, 1.4142135
          %v3702 = vmul.f32 %v3670, 1.4142135
          %v3703 = vmul.f32 %v3671, 1.4142135
          %v3704 = vmul.f32 %v3672, 1.4142135
          %v3705 = vmul.f32 %v3673, 1.4142135
          %v3706 = vmul.f32 %v3674, 1.4142135
          %v3707 = vmul.f32 %v3675, 1.4142135
          %v3708 = vmul.f32 %v3676, 1.4142135
          %v3709 = vmul.f32 %v3677, 1.4142135
          %v3710 = vmul.f32 %v3678, 1.4142135
          %v3711 = vmul.f32 %v3679, 1.4142135
          %v3712 = vmul.f32 %v3680, 1.4142135
          %v3713 = vmul.f32 %v3681, 1.4142135
          %v3714 = vmul.f32 %v3682, 1.4142135
          %v3715 = vmul.f32 %v3683, 1.4142135
          %v3716 = vmul.f32 %v3684, 1.4142135
          %v3717 = vmul.f32 %v3685, 1.4142135
          %v3718 = vmul.f32 %v3686, 1.4142135
          %v3719 = vmul.f32 %v3687, 1.4142135
          %v3720 = vmul.f32 %v3688, 1.4142135
          %v3721 = vmul.f32 %v3689, 1.4142135
          %v3722 = vmul.f32 %v3690, 1.4142135
          %v3723 = vmul.f32 %v3691, 1.4142135
          %v3724 = vmul.f32 %v3692, 1.4142135
          %v3725 = vmul.f32 %v3693, 1.4142135
          %v3726 = vmul.f32 %v3694, 1.4142135
          %v3727 = vmul.f32 %v3695, 1.4142135
          %v3728 = vpack.c.bf16 %v3697, %v3696
          %v3729 = vpack.c.bf16 %v3699, %v3698
          %v3730 = vpack.c.bf16 %v3701, %v3700
          %v3731 = vpack.c.bf16 %v3703, %v3702
          %v3732 = vpack.c.bf16 %v3705, %v3704
          %v3733 = vpack.c.bf16 %v3707, %v3706
          %v3734 = vpack.c.bf16 %v3709, %v3708
          %v3735 = vpack.c.bf16 %v3711, %v3710
          %v3736 = vpack.c.bf16 %v3713, %v3712
          %v3737 = vpack.c.bf16 %v3715, %v3714
          %v3738 = vpack.c.bf16 %v3717, %v3716
          %v3739 = vpack.c.bf16 %v3719, %v3718
          %v3740 = vpack.c.bf16 %v3721, %v3720
          %v3741 = vpack.c.bf16 %v3723, %v3722
          %v3742 = vpack.c.bf16 %v3725, %v3724
          %v3743 = vpack.c.bf16 %v3727, %v3726
          %v3760 = vunpack.c.l.b16 %v3728
          %v3761 = vunpack.c.h.b16 %v3728
          %v3762 = vunpack.c.l.b16 %v3729
          %v3763 = vunpack.c.h.b16 %v3729
          %v3764 = vunpack.c.l.b16 %v3730
          %v3765 = vunpack.c.h.b16 %v3730
          %v3766 = vunpack.c.l.b16 %v3731
          %v3767 = vunpack.c.h.b16 %v3731
          %v3768 = vunpack.c.l.b16 %v3732
          %v3769 = vunpack.c.h.b16 %v3732
          %v3770 = vunpack.c.l.b16 %v3733
          %v3771 = vunpack.c.h.b16 %v3733
          %v3772 = vunpack.c.l.b16 %v3734
          %v3773 = vunpack.c.h.b16 %v3734
          %v3774 = vunpack.c.l.b16 %v3735
          %v3775 = vunpack.c.h.b16 %v3735
          %v3776 = vunpack.c.l.b16 %v3736
          %v3777 = vunpack.c.h.b16 %v3736
          %v3778 = vunpack.c.l.b16 %v3737
          %v3779 = vunpack.c.h.b16 %v3737
          %v3780 = vunpack.c.l.b16 %v3738
          %v3781 = vunpack.c.h.b16 %v3738
          %v3782 = vunpack.c.l.b16 %v3739
          %v3783 = vunpack.c.h.b16 %v3739
          %v3784 = vunpack.c.l.b16 %v3740
          %v3785 = vunpack.c.h.b16 %v3740
          %v3786 = vunpack.c.l.b16 %v3741
          %v3787 = vunpack.c.h.b16 %v3741
          %v3788 = vunpack.c.l.b16 %v3742
          %v3789 = vunpack.c.h.b16 %v3742
          %v3790 = vunpack.c.l.b16 %v3743
          %v3791 = vunpack.c.h.b16 %v3743
          %v3792 = vpack.c.b16 %v3760, %v3760
          %v3793 = vpack.c.b16 %v3761, %v3761
          %v3794 = vpack.c.b16 %v3762, %v3762
          %v3795 = vpack.c.b16 %v3763, %v3763
          %v3796 = vpack.c.b16 %v3764, %v3764
          %v3797 = vpack.c.b16 %v3765, %v3765
          %v3798 = vpack.c.b16 %v3766, %v3766
          %v3799 = vpack.c.b16 %v3767, %v3767
          %v3800 = vpack.c.b16 %v3768, %v3768
          %v3801 = vpack.c.b16 %v3769, %v3769
          %v3802 = vpack.c.b16 %v3770, %v3770
          %v3803 = vpack.c.b16 %v3771, %v3771
          %v3804 = vpack.c.b16 %v3772, %v3772
          %v3805 = vpack.c.b16 %v3773, %v3773
          %v3806 = vpack.c.b16 %v3774, %v3774
          %v3807 = vpack.c.b16 %v3775, %v3775
          %v3808 = vpack.c.b16 %v3776, %v3776
          %v3809 = vpack.c.b16 %v3777, %v3777
          %v3810 = vpack.c.b16 %v3778, %v3778
          %v3811 = vpack.c.b16 %v3779, %v3779
          %v3812 = vpack.c.b16 %v3780, %v3780
          %v3813 = vpack.c.b16 %v3781, %v3781
          %v3814 = vpack.c.b16 %v3782, %v3782
          %v3815 = vpack.c.b16 %v3783, %v3783
          %v3816 = vpack.c.b16 %v3784, %v3784
          %v3817 = vpack.c.b16 %v3785, %v3785
          %v3818 = vpack.c.b16 %v3786, %v3786
          %v3819 = vpack.c.b16 %v3787, %v3787
          %v3820 = vpack.c.b16 %v3788, %v3788
          %v3821 = vpack.c.b16 %v3789, %v3789
          %v3822 = vpack.c.b16 %v3790, %v3790
          %v3823 = vpack.c.b16 %v3791, %v3791
          %3856 = vst [vmem:[%s227] sm:$0xf] %v3792
          %3857 = vst [vmem:[%s227 + $0x4] sm:$0xf] %v3793
          %3858 = vst [vmem:[%s227 + $0x8] sm:$0xf] %v3794
          %3859 = vst [vmem:[%s227 + $0xc] sm:$0xf] %v3795
          %3860 = vst [vmem:[%s227 + $0x10] sm:$0xf] %v3796
          %3861 = vst [vmem:[%s227 + $0x14] sm:$0xf] %v3797
          %3862 = vst [vmem:[%s227 + $0x18] sm:$0xf] %v3798
          %3863 = vst [vmem:[%s227 + $0x1c] sm:$0xf] %v3799
          %3864 = vst [vmem:[%s227 + $0x20] sm:$0xf] %v3800
          %3865 = vst [vmem:[%s227 + $0x24] sm:$0xf] %v3801
          %3866 = vst [vmem:[%s227 + $0x28] sm:$0xf] %v3802
          %3867 = vst [vmem:[%s227 + $0x2c] sm:$0xf] %v3803
          %3868 = vst [vmem:[%s227 + $0x30] sm:$0xf] %v3804
          %3869 = vst [vmem:[%s227 + $0x34] sm:$0xf] %v3805
          %3870 = vst [vmem:[%s227 + $0x38] sm:$0xf] %v3806
          %3871 = vst [vmem:[%s227 + $0x3c] sm:$0xf] %v3807
          %3872 = vst [vmem:[%s227 + $0x40] sm:$0xf] %v3808
          %3873 = vst [vmem:[%s227 + $0x44] sm:$0xf] %v3809
          %3874 = vst [vmem:[%s227 + $0x48] sm:$0xf] %v3810
          %3875 = vst [vmem:[%s227 + $0x4c] sm:$0xf] %v3811
          %3876 = vst [vmem:[%s227 + $0x50] sm:$0xf] %v3812
          %3877 = vst [vmem:[%s227 + $0x54] sm:$0xf] %v3813
          %3878 = vst [vmem:[%s227 + $0x58] sm:$0xf] %v3814
          %3879 = vst [vmem:[%s227 + $0x5c] sm:$0xf] %v3815
          %3880 = vst [vmem:[%s227 + $0x60] sm:$0xf] %v3816
          %3881 = vst [vmem:[%s227 + $0x64] sm:$0xf] %v3817
          %3882 = vst [vmem:[%s227 + $0x68] sm:$0xf] %v3818
          %3883 = vst [vmem:[%s227 + $0x6c] sm:$0xf] %v3819
          %3884 = vst [vmem:[%s227 + $0x70] sm:$0xf] %v3820
          %3885 = vst [vmem:[%s227 + $0x74] sm:$0xf] %v3821
          %3886 = vst [vmem:[%s227 + $0x78] sm:$0xf] %v3822
          %3887 = vst [vmem:[%s227 + $0x7c] sm:$0xf] %v3823
        $region40: #{tpu_custom_call.1} parent=31 // pred_fallthru
          _
        %s3888 = sand.u32 %s128, 1
        %s3889 = scalar_lea.sflag [#allocation4], %s3888
        %s3890 = sand.u32 %s128, 1
        %s3891 = smul.addr %s3890, 128
        %s3892 = scalar_lea.vmem [#allocation3], %s3891
        // Predicated region
        $region41: #{tpu_custom_call.1} parent=31 // pred_check
          %p3893 = pneg %p138
        $region42: #{tpu_custom_call.1} parent=31 // pred_check_branch
          %3895 = sbr.rel (%p3893) target = $region44
        $region43: #{tpu_custom_call.1} parent=31 // pred_region
          %s3897 = ssub.s32 2048, 2048
          %3898 = vsyncadd %s3889, %s3897
          %s3899 = smul.addr %s22, 32
          %s3900 = sadd.s32 %s23, %s3899
          %s3901 = smul.addr %s3900, 64
          %s3902 = scalar_lea.hbm %s3, %s3901
          %s3903 = sshll.u32 %s3892, 4
          %s3904 = int_to_ptr.vmem [resolvable:$true] %s3903
          %3909 = dma.vmem_to_hbm [thread:$0]  %s3904, 2048, %s3902, %s3889, 64, 64, 4
        $region44: #{tpu_custom_call.1} parent=31 // pred_fallthru
          _
      $region32: #{tpu_custom_call.1} parent=5 // pred_fallthru
        _
      %p3910 = scmp.le.s32.totalorder 2, %s12
      // Predicated region
      $region45: #{tpu_custom_call.1} parent=5 // pred_check
        %p3911 = pneg %p3910
      $region46: #{tpu_custom_call.1} parent=5 // pred_check_branch
        %3913 = sbr.rel (%p3911) target = $region48
      $region47: #{tpu_custom_call.1} parent=5 // pred_region
        %s3914 = ssub.s32 %s12, 2
        // Predicated region
        $region49: #{tpu_custom_call.1} parent=47 // pred_check
          %p3915 = pneg %p144
        $region50: #{tpu_custom_call.1} parent=47 // pred_check_branch
          %3917 = sbr.rel (%p3915) target = $region52
        $region51: #{tpu_custom_call.1} parent=47 // pred_region
          %s3918 = sand.u32 %s129, 1
          %s3919 = scalar_lea.sflag [#allocation4], %s3918
          %s3920 = sand.u32 %s129, 1
          %s3921 = smul.addr %s3920, 128
          %s3922 = scalar_lea.vmem [#allocation3], %s3921
          %3923 = dma.done %s3919, 2048
        $region52: #{tpu_custom_call.1} parent=47 // pred_fallthru
          _
      $region48: #{tpu_custom_call.1} parent=5 // pred_fallthru
        _
    $region6: #{tpu_custom_call.1} parent=1 // loop_footer
      %s16 = sadd.s32 1, %s12
    $region7: #{tpu_custom_call.1} parent=1 // loop_footer_branch
      %11 = sbr.rel target = $region3
    $region8: #{tpu_custom_call.1} parent=1 // loop_exit
      _
    %3924 = vsyncpa [#allocation4], 1
    %s3925 = scalar_lea.sflag [#allocation4], 1
    %3926 = vsyncpa %s3925, 1

</llo_original>
